<compile_context>
chip_gen: v7x
topology: tpu7x:2x2x1
jax: 0.10.0
libtpu: 0.0.40
codegen_flags: <defaults>
</compile_context>

<pallas_src>
import functools

import jax
import jax.numpy as jnp
from jax import lax
from jax.experimental import pallas as pl
from jax.experimental.pallas import tpu as pltpu


def _round_up(x, m):
    return (x + m - 1) // m * m


# ----------------------------------------------------------------------------
# in-kernel math helpers
# ----------------------------------------------------------------------------
def _ln_padded(x, w, b, e_real, eps=1e-5):
    """LayerNorm over the last axis of a lane-padded (rows, Ep) tile.

    Real features occupy lanes [0, e_real); padded lanes of x, w, b are zero,
    so full-lane sums equal real-feature sums and the output keeps zeros in
    the padded lanes.
    """
    mu = jnp.sum(x, axis=-1, keepdims=True) * (1.0 / e_real)
    ex2 = jnp.sum(x * x, axis=-1, keepdims=True) * (1.0 / e_real)
    var = ex2 - mu * mu
    inv = lax.rsqrt(var + eps)
    return (x - mu) * inv * w + b


def _gelu_tanh(x):
    # tanh-approx GELU: the tanh lowers to the (otherwise idle) EUP slot
    # instead of a ~12-op erf polynomial on the VALU.  |err| < ~1e-3 abs.
    c = 0.7978845608028654  # sqrt(2/pi)
    return 0.5 * x * (1.0 + jnp.tanh(c * (x + 0.044715 * (x * x * x))))


# ----------------------------------------------------------------------------
# the fused ViT kernel (grid = (batch, depth))
# ----------------------------------------------------------------------------
def vit_kernel(patches_ref, convw_ref, x0add_ref,
               ln1w_ref, ln1b_ref, qkvw_ref, projw_ref, projb_ref,
               ln2w_ref, ln2b_ref, fc1w_ref, fc1b_ref, fc2w_ref, fc2b_ref,
               normw_ref, normb_ref, headw_ref, headb_ref,
               out_ref, x_s,
               *, num_heads, hd_pad, e_real, n_real, head_scale):
    d = pl.program_id(1)

    # ---- depth == 0: patch embedding + cls token + positions (stays resident)
    @pl.when(d == 0)
    def _():
        x_s[...] = (jnp.dot(patches_ref[0], convw_ref[...],
                            preferred_element_type=jnp.float32)
                    + x0add_ref[...])

    x = x_s[...]                                           # (Npad, Ep) f32
    n_pad, e_pad = x.shape
    H = num_heads

    # ---------------- attention branch ----------------
    h1 = _ln_padded(x, ln1w_ref[0], ln1b_ref[0], e_real)
    # fused QKV projection for all heads; per-head slices below are 128-lane
    # aligned so they never cause cross-lane relayouts.
    qkv = jnp.dot(h1.astype(jnp.bfloat16), qkvw_ref[0],
                  preferred_element_type=jnp.float32).astype(jnp.bfloat16)
    key_valid = lax.broadcasted_iota(jnp.int32, (n_pad, n_pad), 1) < n_real
    attn = jnp.zeros((n_pad, e_pad), jnp.float32)
    for h in range(H):                     # unrolled; every matmul has K = 128
        q = qkv[:, h * hd_pad:(h + 1) * hd_pad]
        k = qkv[:, (H + h) * hd_pad:(H + h + 1) * hd_pad]
        v = qkv[:, (2 * H + h) * hd_pad:(2 * H + h + 1) * hd_pad]
        s = lax.dot_general(q, k, (((1,), (1,)), ((), ())),
                            preferred_element_type=jnp.float32) * head_scale
        s = jnp.where(key_valid, s, -1e30)          # mask padded key rows
        m = jnp.max(s, axis=-1, keepdims=True)
        e = jnp.exp(s - m)
        p = e * pl.reciprocal(jnp.sum(e, axis=-1, keepdims=True), approx=True)
        oh = jnp.dot(p.astype(jnp.bfloat16), v,
                     preferred_element_type=jnp.float32)
        # accumulate each head straight through its slice of the output
        # projection instead of concatenating head outputs.
        attn = attn + jnp.dot(oh.astype(jnp.bfloat16), projw_ref[0, h],
                              preferred_element_type=jnp.float32)
    x = x + attn + projb_ref[0]

    # ---------------- MLP branch ----------------
    h2 = _ln_padded(x, ln2w_ref[0], ln2b_ref[0], e_real)
    f = jnp.dot(h2.astype(jnp.bfloat16), fc1w_ref[0],
                preferred_element_type=jnp.float32) + fc1b_ref[0]
    f = _gelu_tanh(f)
    x = x + (jnp.dot(f.astype(jnp.bfloat16), fc2w_ref[0],
                     preferred_element_type=jnp.float32) + fc2b_ref[0])
    x_s[...] = x

    # ---- last depth step: final LayerNorm on the CLS row + classifier head
    @pl.when(d == pl.num_programs(1) - 1)
    def _():
        xcls = _ln_padded(x[0:1, :], normw_ref[...], normb_ref[...], e_real)
        out_ref[0] = (jnp.dot(xcls.astype(jnp.bfloat16), headw_ref[...],
                              preferred_element_type=jnp.float32)
                      + headb_ref[...])


# ----------------------------------------------------------------------------
# glue: patch extraction matching Conv2d(stride=patch) + transpose(-1, 1)
# ----------------------------------------------------------------------------
def extract_patches(x_nchw, patch):
    B, C, Hh, W = x_nchw.shape
    Hp, Wp = Hh // patch, W // patch
    x = x_nchw.reshape(B, C, Hp, patch, Wp, patch)
    x = jnp.transpose(x, (0, 4, 2, 1, 3, 5))       # (B, Wp, Hp, C, pi, pj)
    return x.reshape(B, Wp * Hp, C * patch * patch)


# ----------------------------------------------------------------------------
# wrapper: pad / rearrange params, run the single pallas_call, slice padding
# ----------------------------------------------------------------------------
def vit_forward_pallas(x_nchw, params, cfg):
    B = x_nchw.shape[0]
    E, patch, Hn = cfg["embed_dim"], cfg["patch_size"], cfg["num_heads"]
    depth, nc, Cch = cfg["depth"], cfg["num_classes"], cfg["in_chans"]
    hd = E // Hn
    Hm = int(E * cfg["mlp_ratio"])
    K = Cch * patch * patch
    Np = (cfg["img_size"] // patch) ** 2
    N = Np + 1

    Ep, Kp = _round_up(E, 128), _round_up(K, 128)
    Hmp, Cp = _round_up(Hm, 128), _round_up(nc, 128)
    hdp, Npad = _round_up(hd, 128), _round_up(N, 8)
    f32, bf16 = jnp.float32, jnp.bfloat16

    def pad_to(a, shape):
        return jnp.pad(a, [(0, t - s) for s, t in zip(a.shape, shape)])

    # ---- depth-invariant operands ----------------------------------------
    convw = pad_to(params["conv_w"].reshape(E, K).T, (Kp, Ep)).astype(bf16)
    base = jnp.concatenate(
        [(params["pe_cls"][0, 0] + params["pe_pos"][0])[None, :],
         params["pe_pos"][1:] + params["conv_b"][None, :]], axis=0)   # (N, E)
    x0add = pad_to(base, (Npad, Ep)).astype(f32)
    normw = pad_to(params["norm_w"][None, :], (1, Ep)).astype(f32)
    normb = pad_to(params["norm_b"][None, :], (1, Ep)).astype(f32)
    headw = pad_to(params["head_w"].T, (Ep, Cp)).astype(bf16)
    headb = pad_to(params["head_b"][None, :], (1, Cp)).astype(f32)

    # ---- per-block operands, stacked along a leading depth axis ----------
    def stack(fn):
        return jnp.stack([fn(bp) for bp in params["blocks"]], axis=0)

    ln1w = stack(lambda bp: pad_to(bp["ln1_w"], (1, Ep))).astype(f32)
    ln1b = stack(lambda bp: pad_to(bp["ln1_b"], (1, Ep))).astype(f32)
    ln2w = stack(lambda bp: pad_to(bp["ln2_w"], (1, Ep))).astype(f32)
    ln2b = stack(lambda bp: pad_to(bp["ln2_b"], (1, Ep))).astype(f32)
    # (E, 3E) -> (Ep, 3*H*hdp); lane order = (q/k/v, head, padded head dim)
    qkvw = stack(lambda bp: pad_to(bp["qkv_wt"].reshape(E, 3, Hn, hd),
                                   (Ep, 3, Hn, hdp)).reshape(Ep, 3 * Hn * hdp)
                 ).astype(bf16)
    # (E, E) -> (H, hdp, Ep): per-head rows of the output projection
    projw = stack(lambda bp: pad_to(bp["proj_wt"].reshape(Hn, hd, E),
                                    (Hn, hdp, Ep))).astype(bf16)
    projb = stack(lambda bp: pad_to(bp["proj_b"], (1, Ep))).astype(f32)
    fc1w = stack(lambda bp: pad_to(bp["fc1_wt"], (Ep, Hmp))).astype(bf16)
    fc1b = stack(lambda bp: pad_to(bp["fc1_b"], (1, Hmp))).astype(f32)
    fc2w = stack(lambda bp: pad_to(bp["fc2_wt"], (Hmp, Ep))).astype(bf16)
    fc2b = stack(lambda bp: pad_to(bp["fc2_b"], (1, Ep))).astype(f32)

    # ---- data: patches occupy rows [1, N); row 0 / pad rows / pad lanes = 0
    patches = extract_patches(x_nchw, patch)                       # (B, Np, K)
    patches_pad = jnp.pad(
        patches, ((0, 0), (1, Npad - 1 - Np), (0, Kp - K))).astype(bf16)

    kern = functools.partial(
        vit_kernel, num_heads=Hn, hd_pad=hdp, e_real=E, n_real=N,
        head_scale=float(hd) ** -0.5)

    qkv_lanes = 3 * Hn * hdp
    out = pl.pallas_call(
        kern,
        out_shape=jax.ShapeDtypeStruct((B, 1, Cp), jnp.float32),
        grid=(B, depth),
        in_specs=[
            pl.BlockSpec((1, Npad, Kp), lambda b, d: (b, 0, 0)),
            pl.BlockSpec((Kp, Ep), lambda b, d: (0, 0)),
            pl.BlockSpec((Npad, Ep), lambda b, d: (0, 0)),
            pl.BlockSpec((1, 1, Ep), lambda b, d: (d, 0, 0)),
            pl.BlockSpec((1, 1, Ep), lambda b, d: (d, 0, 0)),
            pl.BlockSpec((1, Ep, qkv_lanes), lambda b, d: (d, 0, 0)),
            pl.BlockSpec((1, Hn, hdp, Ep), lambda b, d: (d, 0, 0, 0)),
            pl.BlockSpec((1, 1, Ep), lambda b, d: (d, 0, 0)),
            pl.BlockSpec((1, 1, Ep), lambda b, d: (d, 0, 0)),
            pl.BlockSpec((1, 1, Ep), lambda b, d: (d, 0, 0)),
            pl.BlockSpec((1, Ep, Hmp), lambda b, d: (d, 0, 0)),
            pl.BlockSpec((1, 1, Hmp), lambda b, d: (d, 0, 0)),
            pl.BlockSpec((1, Hmp, Ep), lambda b, d: (d, 0, 0)),
            pl.BlockSpec((1, 1, Ep), lambda b, d: (d, 0, 0)),
            pl.BlockSpec((1, Ep), lambda b, d: (0, 0)),
            pl.BlockSpec((1, Ep), lambda b, d: (0, 0)),
            pl.BlockSpec((Ep, Cp), lambda b, d: (0, 0)),
            pl.BlockSpec((1, Cp), lambda b, d: (0, 0)),
        ],
        out_specs=pl.BlockSpec((1, 1, Cp), lambda b, d: (b, 0, 0)),
        scratch_shapes=[pltpu.VMEM((Npad, Ep), jnp.float32)],
        compiler_params=pltpu.CompilerParams(
            dimension_semantics=("parallel", "arbitrary")),
    )(patches_pad, convw, x0add, ln1w, ln1b, qkvw, projw, projb,
      ln2w, ln2b, fc1w, fc1b, fc2w, fc2b, normw, normb, headw, headb)

    return out[:, 0, :nc]


# ----------------------------------------------------------------------------
# pure-JAX reference (mirrors the PyTorch module exactly, f32 / exact GELU)
# ----------------------------------------------------------------------------
def vit_forward_reference(x_nchw, params, cfg):
    E, patch, num_heads = cfg["embed_dim"], cfg["patch_size"], cfg["num_heads"]
    B = x_nchw.shape[0]

    patches = extract_patches(x_nchw, patch)
    w_mat = params["conv_w"].reshape(E, -1).T
    pe = patches @ w_mat + params["conv_b"]                          # (B, Np, E)
    cls = jnp.broadcast_to(params["pe_cls"], (B, 1, E))
    x = jnp.concatenate([cls, pe], axis=1) + params["pe_pos"][None]

    def ln(t, w, b, eps=1e-5):
        mu = jnp.mean(t, axis=-1, keepdims=True)
        var = jnp.mean((t - mu) ** 2, axis=-1, keepdims=True)
        return (t - mu) / jnp.sqrt(var + eps) * w + b

    for bp in params["blocks"]:
        Bn, N, C = x.shape
        hd = C // num_heads
        h = ln(x, bp["ln1_w"][0], bp["ln1_b"][0])
        qkv = h @ bp["qkv_wt"]                                       # (B, N, 3C)
        qkv = qkv.reshape(Bn, N, 3, num_heads, hd).transpose(2, 0, 3, 1, 4)
        q, k, v = qkv[0], qkv[1], qkv[2]
        attn = jnp.einsum("bhnd,bhmd->bhnm", q, k) * hd ** -0.5
        attn = jax.nn.softmax(attn, axis=-1)
        o = jnp.einsum("bhnm,bhmd->bhnd", attn, v)
        o = o.transpose(0, 2, 1, 3).reshape(Bn, N, C)
        x = x + (o @ bp["proj_wt"] + bp["proj_b"][0])
        h2 = ln(x, bp["ln2_w"][0], bp["ln2_b"][0])
        f = h2 @ bp["fc1_wt"] + bp["fc1_b"][0]
        f = 0.5 * f * (1.0 + jax.scipy.special.erf(f / jnp.sqrt(2.0)))  # exact
        x = x + (f @ bp["fc2_wt"] + bp["fc2_b"][0])

    x = ln(x, params["norm_w"], params["norm_b"])
    return x[:, 0] @ params["head_w"].T + params["head_b"]


# ----------------------------------------------------------------------------
# deterministic parameter construction (torch Linear layout: (out, in))
# ----------------------------------------------------------------------------
def make_params(key, cfg):
    E, C, patch = cfg["embed_dim"], cfg["in_chans"], cfg["patch_size"]
    Np = (cfg["img_size"] // patch) ** 2
    Hm = int(E * cfg["mlp_ratio"])
    nc = cfg["num_classes"]

    def nrm(k, shape, scale=0.02):
        return scale * jax.random.normal(k, shape, dtype=jnp.float32)

    keys = iter(jax.random.split(key, 8 + 12 * cfg["depth"]))
    params = {
        "conv_w": nrm(next(keys), (E, C, patch, patch)),
        "conv_b": nrm(next(keys), (E,)),
        "pe_cls": nrm(next(keys), (1, 1, E)),
        "pe_pos": nrm(next(keys), (Np + 1, E)),
        "norm_w": jnp.ones((E,), jnp.float32),
        "norm_b": jnp.zeros((E,), jnp.float32),
        "head_w": nrm(next(keys), (nc, E)),
        "head_b": nrm(next(keys), (nc,)),
        "blocks": [],
    }
    for _ in range(cfg["depth"]):
        qkv_w = nrm(next(keys), (3 * E, E))    # qkv_bias falsy -> no bias
        proj_w = nrm(next(keys), (E, E))
        fc1_w = nrm(next(keys), (Hm, E))
        fc2_w = nrm(next(keys), (E, Hm))
        params["blocks"].append({
            "ln1_w": jnp.ones((1, E), jnp.float32),
            "ln1_b": jnp.zeros((1, E), jnp.float32),
            "qkv_wt": qkv_w.T,                 # (E, 3E) so kernel does x @ W
            "proj_wt": proj_w.T,               # (E, E)
            "proj_b": nrm(next(keys), (E,)).reshape(1, E),
            "ln2_w": jnp.ones((1, E), jnp.float32),
            "ln2_b": jnp.zeros((1, E), jnp.float32),
            "fc1_wt": fc1_w.T,                 # (E, Hm)
            "fc1_b": nrm(next(keys), (Hm,)).reshape(1, Hm),
            "fc2_wt": fc2_w.T,                 # (Hm, E)
            "fc2_b": nrm(next(keys), (E,)).reshape(1, E),
        })
        next(keys); next(keys); next(keys); next(keys)  # keep split count fixed
    return params


# ----------------------------------------------------------------------------
if __name__ == "__main__":
    cfg = dict(img_size=16, patch_size=4, in_chans=3, num_classes=10,
               embed_dim=32, depth=2, num_heads=4, mlp_ratio=4.0)
    # Dropout layers (attn/proj/pos/path) are identity at p=0.0 / eval.

    key = jax.random.PRNGKey(0)
    kx, kp = jax.random.split(key)
    x = jax.random.normal(kx, (2, cfg["in_chans"], cfg["img_size"], cfg["img_size"]),
                          dtype=jnp.float32)
    params = make_params(kp, cfg)

    out = vit_forward_pallas(x, params, cfg)
    out = jax.block_until_ready(out)

    ref = vit_forward_reference(x, params, cfg)
    assert out.shape == (2, cfg["num_classes"]), out.shape
    max_err = float(jnp.max(jnp.abs(out - ref)))
    # bf16 matmul operands + tanh-approx GELU vs the exact-erf f32 reference.
    assert max_err < 2e-2, f"mismatch vs reference: {max_err}"

    print("KERNEL_OK")
</pallas_src>

<mosaic_0001>
module attributes {stable_mosaic.version = 11 : i64} {
  func.func @vit_kernel(%arg0: i32, %arg1: i32, %arg2: memref<1x24x128xbf16, #tpu.memory_space<vmem>>, %arg3: memref<128x128xbf16, #tpu.memory_space<vmem>>, %arg4: memref<24x128xf32, #tpu.memory_space<vmem>>, %arg5: memref<1x1x128xf32, #tpu.memory_space<vmem>>, %arg6: memref<1x1x128xf32, #tpu.memory_space<vmem>>, %arg7: memref<1x128x1536xbf16, #tpu.memory_space<vmem>>, %arg8: memref<1x4x128x128xbf16, #tpu.memory_space<vmem>>, %arg9: memref<1x1x128xf32, #tpu.memory_space<vmem>>, %arg10: memref<1x1x128xf32, #tpu.memory_space<vmem>>, %arg11: memref<1x1x128xf32, #tpu.memory_space<vmem>>, %arg12: memref<1x128x128xbf16, #tpu.memory_space<vmem>>, %arg13: memref<1x1x128xf32, #tpu.memory_space<vmem>>, %arg14: memref<1x128x128xbf16, #tpu.memory_space<vmem>>, %arg15: memref<1x1x128xf32, #tpu.memory_space<vmem>>, %arg16: memref<1x128xf32, #tpu.memory_space<vmem>>, %arg17: memref<1x128xf32, #tpu.memory_space<vmem>>, %arg18: memref<128x128xbf16, #tpu.memory_space<vmem>>, %arg19: memref<1x128xf32, #tpu.memory_space<vmem>>, %arg20: memref<1x1x128xf32, #tpu.memory_space<vmem>>, %arg21: memref<24x128xf32, #tpu.memory_space<vmem>>) attributes {dimension_semantics = [#tpu.dimension_semantics<parallel>, #tpu.dimension_semantics<arbitrary>], iteration_bounds = array<i64: 2, 2>, scalar_prefetch = 0 : i64, scratch_operands = 1 : i64, tpu.core_type = #tpu.core_type<tc>, window_params = [{transform_indices = @transform_0, window_bounds = array<i64: 1, 24, 128>}, {pipeline_mode = #tpu.pipeline_mode<synchronous>, transform_indices = @transform_1, window_bounds = array<i64: 128, 128>}, {pipeline_mode = #tpu.pipeline_mode<synchronous>, transform_indices = @transform_2, window_bounds = array<i64: 24, 128>}, {transform_indices = @transform_3, window_bounds = array<i64: 1, 1, 128>}, {transform_indices = @transform_4, window_bounds = array<i64: 1, 1, 128>}, {transform_indices = @transform_5, window_bounds = array<i64: 1, 128, 1536>}, {transform_indices = @transform_6, window_bounds = array<i64: 1, 4, 128, 128>}, {transform_indices = @transform_7, window_bounds = array<i64: 1, 1, 128>}, {transform_indices = @transform_8, window_bounds = array<i64: 1, 1, 128>}, {transform_indices = @transform_9, window_bounds = array<i64: 1, 1, 128>}, {transform_indices = @transform_10, window_bounds = array<i64: 1, 128, 128>}, {transform_indices = @transform_11, window_bounds = array<i64: 1, 1, 128>}, {transform_indices = @transform_12, window_bounds = array<i64: 1, 128, 128>}, {transform_indices = @transform_13, window_bounds = array<i64: 1, 1, 128>}, {pipeline_mode = #tpu.pipeline_mode<synchronous>, transform_indices = @transform_14, window_bounds = array<i64: 1, 128>}, {pipeline_mode = #tpu.pipeline_mode<synchronous>, transform_indices = @transform_15, window_bounds = array<i64: 1, 128>}, {pipeline_mode = #tpu.pipeline_mode<synchronous>, transform_indices = @transform_16, window_bounds = array<i64: 128, 128>}, {pipeline_mode = #tpu.pipeline_mode<synchronous>, transform_indices = @transform_17, window_bounds = array<i64: 1, 128>}, {transform_indices = @transform_18, window_bounds = array<i64: 1, 1, 128>}]} {
    %c0_i32 = arith.constant 0 : i32
    %0 = arith.cmpi eq, %arg1, %c0_i32 : i32
    %1 = arith.extui %0 : i1 to i32
    %c0_i32_0 = arith.constant 0 : i32
    %2 = arith.cmpi ne, %1, %c0_i32_0 : i32
    scf.if %2 {
      %c0_93 = arith.constant 0 : index
      %c0_94 = arith.constant 0 : index
      %c0_95 = arith.constant 0 : index
      %204 = vector.load %arg2[%c0_93, %c0_94, %c0_95] : memref<1x24x128xbf16, #tpu.memory_space<vmem>>, vector<1x24x128xbf16>
      %205 = vector.shape_cast %204 : vector<1x24x128xbf16> to vector<24x128xbf16>
      %c0_96 = arith.constant 0 : index
      %c0_97 = arith.constant 0 : index
      %206 = vector.load %arg3[%c0_96, %c0_97] : memref<128x128xbf16, #tpu.memory_space<vmem>>, vector<128x128xbf16>
      %cst_98 = arith.constant dense<0.000000e+00> : vector<24x128xf32>
      %207 = tpu.matmul %205, %206, %cst_98 {dimension_numbers = #tpu.dot_dimension_numbers<[1], [0], [0], [1], [0, 0, 1, 1], [], []>} : vector<24x128xbf16>, vector<128x128xbf16>, vector<24x128xf32> -> vector<24x128xf32>
      %c0_99 = arith.constant 0 : index
      %c0_100 = arith.constant 0 : index
      %208 = vector.load %arg4[%c0_99, %c0_100] : memref<24x128xf32, #tpu.memory_space<vmem>>, vector<24x128xf32>
      %209 = arith.addf %207, %208 : vector<24x128xf32>
      %c0_101 = arith.constant 0 : index
      %c0_102 = arith.constant 0 : index
      %210 = vector.load %arg21[%c0_101, %c0_102] : memref<24x128xf32, #tpu.memory_space<vmem>>, vector<24x128xf32>
      tpu.vector_store %arg21[%c0_101, %c0_102], %209 {strides = array<i32>} : memref<24x128xf32, #tpu.memory_space<vmem>>, vector<24x128xf32>,
    } else {
    }
    %c0 = arith.constant 0 : index
    %c0_1 = arith.constant 0 : index
    %3 = vector.load %arg21[%c0, %c0_1] : memref<24x128xf32, #tpu.memory_space<vmem>>, vector<24x128xf32>
    %c0_2 = arith.constant 0 : index
    %c0_3 = arith.constant 0 : index
    %c0_4 = arith.constant 0 : index
    %4 = vector.load %arg5[%c0_2, %c0_3, %c0_4] : memref<1x1x128xf32, #tpu.memory_space<vmem>>, vector<1x1x128xf32>
    %5 = vector.shape_cast %4 : vector<1x1x128xf32> to vector<1x128xf32>
    %c0_5 = arith.constant 0 : index
    %c0_6 = arith.constant 0 : index
    %c0_7 = arith.constant 0 : index
    %6 = vector.load %arg6[%c0_5, %c0_6, %c0_7] : memref<1x1x128xf32, #tpu.memory_space<vmem>>, vector<1x1x128xf32>
    %7 = vector.shape_cast %6 : vector<1x1x128xf32> to vector<1x128xf32>
    %cst = arith.constant dense<0.000000e+00> : vector<24xf32>
    %8 = vector.multi_reduction <add>, %3, %cst [1] : vector<24x128xf32> to vector<24xf32>
    %9 = vector.shape_cast %8 : vector<24xf32> to vector<24x1xf32>
    %cst_8 = arith.constant 3.125000e-02 : f32
    %10 = vector.broadcast %cst_8 : f32 to vector<24x1xf32>
    %11 = arith.mulf %9, %10 : vector<24x1xf32>
    %12 = arith.mulf %3, %3 : vector<24x128xf32>
    %cst_9 = arith.constant dense<0.000000e+00> : vector<24xf32>
    %13 = vector.multi_reduction <add>, %12, %cst_9 [1] : vector<24x128xf32> to vector<24xf32>
    %14 = vector.shape_cast %13 : vector<24xf32> to vector<24x1xf32>
    %cst_10 = arith.constant 3.125000e-02 : f32
    %15 = vector.broadcast %cst_10 : f32 to vector<24x1xf32>
    %16 = arith.mulf %14, %15 : vector<24x1xf32>
    %17 = arith.mulf %11, %11 : vector<24x1xf32>
    %18 = arith.subf %16, %17 : vector<24x1xf32>
    %cst_11 = arith.constant 9.99999974E-6 : f32
    %19 = vector.broadcast %cst_11 : f32 to vector<24x1xf32>
    %20 = arith.addf %18, %19 : vector<24x1xf32>
    %21 = math.rsqrt %20 : vector<24x1xf32>
    %22 = vector.broadcast %11 : vector<24x1xf32> to vector<24x128xf32>
    %23 = arith.subf %3, %22 : vector<24x128xf32>
    %24 = vector.broadcast %21 : vector<24x1xf32> to vector<24x128xf32>
    %25 = arith.mulf %23, %24 : vector<24x128xf32>
    %26 = vector.broadcast %5 : vector<1x128xf32> to vector<24x128xf32>
    %27 = arith.mulf %25, %26 : vector<24x128xf32>
    %28 = vector.broadcast %7 : vector<1x128xf32> to vector<24x128xf32>
    %29 = arith.addf %27, %28 : vector<24x128xf32>
    %30 = arith.truncf %29 : vector<24x128xf32> to vector<24x128xbf16>
    %c0_12 = arith.constant 0 : index
    %c0_13 = arith.constant 0 : index
    %c0_14 = arith.constant 0 : index
    %31 = vector.load %arg7[%c0_12, %c0_13, %c0_14] : memref<1x128x1536xbf16, #tpu.memory_space<vmem>>, vector<1x128x1536xbf16>
    %32 = vector.shape_cast %31 : vector<1x128x1536xbf16> to vector<128x1536xbf16>
    %cst_15 = arith.constant dense<0.000000e+00> : vector<24x1536xf32>
    %33 = tpu.matmul %30, %32, %cst_15 {dimension_numbers = #tpu.dot_dimension_numbers<[1], [0], [0], [1], [0, 0, 1, 1], [], []>} : vector<24x128xbf16>, vector<128x1536xbf16>, vector<24x1536xf32> -> vector<24x1536xf32>
    %34 = arith.truncf %33 : vector<24x1536xf32> to vector<24x1536xbf16>
    %35 = tpu.iota {dimensions = array<i32: 1>} : vector<24x24xi32>
    %c17_i32 = arith.constant 17 : i32
    %36 = vector.broadcast %c17_i32 : i32 to vector<24x24xi32>
    %37 = arith.cmpi slt, %35, %36 : vector<24x24xi32>
    %cst_16 = arith.constant 0.000000e+00 : f32
    %38 = vector.broadcast %cst_16 : f32 to vector<24x128xf32>
    %39 = vector.extract_strided_slice %34 {offsets = [0, 0], sizes = [24, 128], strides = [1, 1]} : vector<24x1536xbf16> to vector<24x128xbf16>
    %40 = vector.extract_strided_slice %34 {offsets = [0, 512], sizes = [24, 128], strides = [1, 1]} : vector<24x1536xbf16> to vector<24x128xbf16>
    %41 = vector.extract_strided_slice %34 {offsets = [0, 1024], sizes = [24, 128], strides = [1, 1]} : vector<24x1536xbf16> to vector<24x128xbf16>
    %cst_17 = arith.constant dense<0.000000e+00> : vector<24x24xf32>
    %42 = tpu.matmul %39, %40, %cst_17 {dimension_numbers = #tpu.dot_dimension_numbers<[1], [1], [0], [0], [0, 0, 1, 0], [], []>} : vector<24x128xbf16>, vector<24x128xbf16>, vector<24x24xf32> -> vector<24x24xf32>
    %cst_18 = arith.constant 0.353553385 : f32
    %43 = vector.broadcast %cst_18 : f32 to vector<24x24xf32>
    %44 = arith.mulf %42, %43 : vector<24x24xf32>
    %cst_19 = arith.constant -1.000000e+30 : f32
    %45 = vector.broadcast %cst_19 : f32 to vector<24x24xf32>
    %46 = arith.select %37, %44, %45 : vector<24x24xi1>, vector<24x24xf32>
    %cst_20 = arith.constant dense<0xFF800000> : vector<24xf32>
    %47 = vector.multi_reduction <maximumf>, %46, %cst_20 [1] : vector<24x24xf32> to vector<24xf32>
    %48 = vector.shape_cast %47 : vector<24xf32> to vector<24x1xf32>
    %49 = vector.broadcast %48 : vector<24x1xf32> to vector<24x24xf32>
    %50 = arith.subf %46, %49 : vector<24x24xf32>
    %51 = math.exp %50 : vector<24x24xf32>
    %cst_21 = arith.constant dense<0.000000e+00> : vector<24xf32>
    %52 = vector.multi_reduction <add>, %51, %cst_21 [1] : vector<24x24xf32> to vector<24xf32>
    %53 = vector.shape_cast %52 : vector<24xf32> to vector<24x1xf32>
    %54 = tpu.reciprocal %53 {approx = true} : vector<24x1xf32> -> vector<24x1xf32>
    %55 = vector.broadcast %54 : vector<24x1xf32> to vector<24x24xf32>
    %56 = arith.mulf %51, %55 : vector<24x24xf32>
    %57 = arith.truncf %56 : vector<24x24xf32> to vector<24x24xbf16>
    %cst_22 = arith.constant dense<0.000000e+00> : vector<24x128xf32>
    %58 = tpu.matmul %57, %41, %cst_22 {dimension_numbers = #tpu.dot_dimension_numbers<[1], [0], [0], [1], [0, 0, 1, 1], [], []>} : vector<24x24xbf16>, vector<24x128xbf16>, vector<24x128xf32> -> vector<24x128xf32>
    %59 = arith.truncf %58 : vector<24x128xf32> to vector<24x128xbf16>
    %c0_23 = arith.constant 0 : index
    %c0_24 = arith.constant 0 : index
    %c0_25 = arith.constant 0 : index
    %c0_26 = arith.constant 0 : index
    %60 = vector.load %arg8[%c0_23, %c0_24, %c0_25, %c0_26] : memref<1x4x128x128xbf16, #tpu.memory_space<vmem>>, vector<1x1x128x128xbf16>
    %61 = vector.shape_cast %60 : vector<1x1x128x128xbf16> to vector<128x128xbf16>
    %cst_27 = arith.constant dense<0.000000e+00> : vector<24x128xf32>
    %62 = tpu.matmul %59, %61, %cst_27 {dimension_numbers = #tpu.dot_dimension_numbers<[1], [0], [0], [1], [0, 0, 1, 1], [], []>} : vector<24x128xbf16>, vector<128x128xbf16>, vector<24x128xf32> -> vector<24x128xf32>
    %63 = arith.addf %38, %62 : vector<24x128xf32>
    %64 = vector.extract_strided_slice %34 {offsets = [0, 128], sizes = [24, 128], strides = [1, 1]} : vector<24x1536xbf16> to vector<24x128xbf16>
    %65 = vector.extract_strided_slice %34 {offsets = [0, 640], sizes = [24, 128], strides = [1, 1]} : vector<24x1536xbf16> to vector<24x128xbf16>
    %66 = vector.extract_strided_slice %34 {offsets = [0, 1152], sizes = [24, 128], strides = [1, 1]} : vector<24x1536xbf16> to vector<24x128xbf16>
    %cst_28 = arith.constant dense<0.000000e+00> : vector<24x24xf32>
    %67 = tpu.matmul %64, %65, %cst_28 {dimension_numbers = #tpu.dot_dimension_numbers<[1], [1], [0], [0], [0, 0, 1, 0], [], []>} : vector<24x128xbf16>, vector<24x128xbf16>, vector<24x24xf32> -> vector<24x24xf32>
    %cst_29 = arith.constant 0.353553385 : f32
    %68 = vector.broadcast %cst_29 : f32 to vector<24x24xf32>
    %69 = arith.mulf %67, %68 : vector<24x24xf32>
    %cst_30 = arith.constant -1.000000e+30 : f32
    %70 = vector.broadcast %cst_30 : f32 to vector<24x24xf32>
    %71 = arith.select %37, %69, %70 : vector<24x24xi1>, vector<24x24xf32>
    %cst_31 = arith.constant dense<0xFF800000> : vector<24xf32>
    %72 = vector.multi_reduction <maximumf>, %71, %cst_31 [1] : vector<24x24xf32> to vector<24xf32>
    %73 = vector.shape_cast %72 : vector<24xf32> to vector<24x1xf32>
    %74 = vector.broadcast %73 : vector<24x1xf32> to vector<24x24xf32>
    %75 = arith.subf %71, %74 : vector<24x24xf32>
    %76 = math.exp %75 : vector<24x24xf32>
    %cst_32 = arith.constant dense<0.000000e+00> : vector<24xf32>
    %77 = vector.multi_reduction <add>, %76, %cst_32 [1] : vector<24x24xf32> to vector<24xf32>
    %78 = vector.shape_cast %77 : vector<24xf32> to vector<24x1xf32>
    %79 = tpu.reciprocal %78 {approx = true} : vector<24x1xf32> -> vector<24x1xf32>
    %80 = vector.broadcast %79 : vector<24x1xf32> to vector<24x24xf32>
    %81 = arith.mulf %76, %80 : vector<24x24xf32>
    %82 = arith.truncf %81 : vector<24x24xf32> to vector<24x24xbf16>
    %cst_33 = arith.constant dense<0.000000e+00> : vector<24x128xf32>
    %83 = tpu.matmul %82, %66, %cst_33 {dimension_numbers = #tpu.dot_dimension_numbers<[1], [0], [0], [1], [0, 0, 1, 1], [], []>} : vector<24x24xbf16>, vector<24x128xbf16>, vector<24x128xf32> -> vector<24x128xf32>
    %84 = arith.truncf %83 : vector<24x128xf32> to vector<24x128xbf16>
    %c0_34 = arith.constant 0 : index
    %c1 = arith.constant 1 : index
    %c0_35 = arith.constant 0 : index
    %c0_36 = arith.constant 0 : index
    %85 = vector.load %arg8[%c0_34, %c1, %c0_35, %c0_36] : memref<1x4x128x128xbf16, #tpu.memory_space<vmem>>, vector<1x1x128x128xbf16>
    %86 = vector.shape_cast %85 : vector<1x1x128x128xbf16> to vector<128x128xbf16>
    %cst_37 = arith.constant dense<0.000000e+00> : vector<24x128xf32>
    %87 = tpu.matmul %84, %86, %cst_37 {dimension_numbers = #tpu.dot_dimension_numbers<[1], [0], [0], [1], [0, 0, 1, 1], [], []>} : vector<24x128xbf16>, vector<128x128xbf16>, vector<24x128xf32> -> vector<24x128xf32>
    %88 = arith.addf %63, %87 : vector<24x128xf32>
    %89 = vector.extract_strided_slice %34 {offsets = [0, 256], sizes = [24, 128], strides = [1, 1]} : vector<24x1536xbf16> to vector<24x128xbf16>
    %90 = vector.extract_strided_slice %34 {offsets = [0, 768], sizes = [24, 128], strides = [1, 1]} : vector<24x1536xbf16> to vector<24x128xbf16>
    %91 = vector.extract_strided_slice %34 {offsets = [0, 1280], sizes = [24, 128], strides = [1, 1]} : vector<24x1536xbf16> to vector<24x128xbf16>
    %cst_38 = arith.constant dense<0.000000e+00> : vector<24x24xf32>
    %92 = tpu.matmul %89, %90, %cst_38 {dimension_numbers = #tpu.dot_dimension_numbers<[1], [1], [0], [0], [0, 0, 1, 0], [], []>} : vector<24x128xbf16>, vector<24x128xbf16>, vector<24x24xf32> -> vector<24x24xf32>
    %cst_39 = arith.constant 0.353553385 : f32
    %93 = vector.broadcast %cst_39 : f32 to vector<24x24xf32>
    %94 = arith.mulf %92, %93 : vector<24x24xf32>
    %cst_40 = arith.constant -1.000000e+30 : f32
    %95 = vector.broadcast %cst_40 : f32 to vector<24x24xf32>
    %96 = arith.select %37, %94, %95 : vector<24x24xi1>, vector<24x24xf32>
    %cst_41 = arith.constant dense<0xFF800000> : vector<24xf32>
    %97 = vector.multi_reduction <maximumf>, %96, %cst_41 [1] : vector<24x24xf32> to vector<24xf32>
    %98 = vector.shape_cast %97 : vector<24xf32> to vector<24x1xf32>
    %99 = vector.broadcast %98 : vector<24x1xf32> to vector<24x24xf32>
    %100 = arith.subf %96, %99 : vector<24x24xf32>
    %101 = math.exp %100 : vector<24x24xf32>
    %cst_42 = arith.constant dense<0.000000e+00> : vector<24xf32>
    %102 = vector.multi_reduction <add>, %101, %cst_42 [1] : vector<24x24xf32> to vector<24xf32>
    %103 = vector.shape_cast %102 : vector<24xf32> to vector<24x1xf32>
    %104 = tpu.reciprocal %103 {approx = true} : vector<24x1xf32> -> vector<24x1xf32>
    %105 = vector.broadcast %104 : vector<24x1xf32> to vector<24x24xf32>
    %106 = arith.mulf %101, %105 : vector<24x24xf32>
    %107 = arith.truncf %106 : vector<24x24xf32> to vector<24x24xbf16>
    %cst_43 = arith.constant dense<0.000000e+00> : vector<24x128xf32>
    %108 = tpu.matmul %107, %91, %cst_43 {dimension_numbers = #tpu.dot_dimension_numbers<[1], [0], [0], [1], [0, 0, 1, 1], [], []>} : vector<24x24xbf16>, vector<24x128xbf16>, vector<24x128xf32> -> vector<24x128xf32>
    %109 = arith.truncf %108 : vector<24x128xf32> to vector<24x128xbf16>
    %c0_44 = arith.constant 0 : index
    %c2 = arith.constant 2 : index
    %c0_45 = arith.constant 0 : index
    %c0_46 = arith.constant 0 : index
    %110 = vector.load %arg8[%c0_44, %c2, %c0_45, %c0_46] : memref<1x4x128x128xbf16, #tpu.memory_space<vmem>>, vector<1x1x128x128xbf16>
    %111 = vector.shape_cast %110 : vector<1x1x128x128xbf16> to vector<128x128xbf16>
    %cst_47 = arith.constant dense<0.000000e+00> : vector<24x128xf32>
    %112 = tpu.matmul %109, %111, %cst_47 {dimension_numbers = #tpu.dot_dimension_numbers<[1], [0], [0], [1], [0, 0, 1, 1], [], []>} : vector<24x128xbf16>, vector<128x128xbf16>, vector<24x128xf32> -> vector<24x128xf32>
    %113 = arith.addf %88, %112 : vector<24x128xf32>
    %114 = vector.extract_strided_slice %34 {offsets = [0, 384], sizes = [24, 128], strides = [1, 1]} : vector<24x1536xbf16> to vector<24x128xbf16>
    %115 = vector.extract_strided_slice %34 {offsets = [0, 896], sizes = [24, 128], strides = [1, 1]} : vector<24x1536xbf16> to vector<24x128xbf16>
    %116 = vector.extract_strided_slice %34 {offsets = [0, 1408], sizes = [24, 128], strides = [1, 1]} : vector<24x1536xbf16> to vector<24x128xbf16>
    %cst_48 = arith.constant dense<0.000000e+00> : vector<24x24xf32>
    %117 = tpu.matmul %114, %115, %cst_48 {dimension_numbers = #tpu.dot_dimension_numbers<[1], [1], [0], [0], [0, 0, 1, 0], [], []>} : vector<24x128xbf16>, vector<24x128xbf16>, vector<24x24xf32> -> vector<24x24xf32>
    %cst_49 = arith.constant 0.353553385 : f32
    %118 = vector.broadcast %cst_49 : f32 to vector<24x24xf32>
    %119 = arith.mulf %117, %118 : vector<24x24xf32>
    %cst_50 = arith.constant -1.000000e+30 : f32
    %120 = vector.broadcast %cst_50 : f32 to vector<24x24xf32>
    %121 = arith.select %37, %119, %120 : vector<24x24xi1>, vector<24x24xf32>
    %cst_51 = arith.constant dense<0xFF800000> : vector<24xf32>
    %122 = vector.multi_reduction <maximumf>, %121, %cst_51 [1] : vector<24x24xf32> to vector<24xf32>
    %123 = vector.shape_cast %122 : vector<24xf32> to vector<24x1xf32>
    %124 = vector.broadcast %123 : vector<24x1xf32> to vector<24x24xf32>
    %125 = arith.subf %121, %124 : vector<24x24xf32>
    %126 = math.exp %125 : vector<24x24xf32>
    %cst_52 = arith.constant dense<0.000000e+00> : vector<24xf32>
    %127 = vector.multi_reduction <add>, %126, %cst_52 [1] : vector<24x24xf32> to vector<24xf32>
    %128 = vector.shape_cast %127 : vector<24xf32> to vector<24x1xf32>
    %129 = tpu.reciprocal %128 {approx = true} : vector<24x1xf32> -> vector<24x1xf32>
    %130 = vector.broadcast %129 : vector<24x1xf32> to vector<24x24xf32>
    %131 = arith.mulf %126, %130 : vector<24x24xf32>
    %132 = arith.truncf %131 : vector<24x24xf32> to vector<24x24xbf16>
    %cst_53 = arith.constant dense<0.000000e+00> : vector<24x128xf32>
    %133 = tpu.matmul %132, %116, %cst_53 {dimension_numbers = #tpu.dot_dimension_numbers<[1], [0], [0], [1], [0, 0, 1, 1], [], []>} : vector<24x24xbf16>, vector<24x128xbf16>, vector<24x128xf32> -> vector<24x128xf32>
    %134 = arith.truncf %133 : vector<24x128xf32> to vector<24x128xbf16>
    %c0_54 = arith.constant 0 : index
    %c3 = arith.constant 3 : index
    %c0_55 = arith.constant 0 : index
    %c0_56 = arith.constant 0 : index
    %135 = vector.load %arg8[%c0_54, %c3, %c0_55, %c0_56] : memref<1x4x128x128xbf16, #tpu.memory_space<vmem>>, vector<1x1x128x128xbf16>
    %136 = vector.shape_cast %135 : vector<1x1x128x128xbf16> to vector<128x128xbf16>
    %cst_57 = arith.constant dense<0.000000e+00> : vector<24x128xf32>
    %137 = tpu.matmul %134, %136, %cst_57 {dimension_numbers = #tpu.dot_dimension_numbers<[1], [0], [0], [1], [0, 0, 1, 1], [], []>} : vector<24x128xbf16>, vector<128x128xbf16>, vector<24x128xf32> -> vector<24x128xf32>
    %138 = arith.addf %113, %137 : vector<24x128xf32>
    %139 = arith.addf %3, %138 : vector<24x128xf32>
    %c0_58 = arith.constant 0 : index
    %c0_59 = arith.constant 0 : index
    %c0_60 = arith.constant 0 : index
    %140 = vector.load %arg9[%c0_58, %c0_59, %c0_60] : memref<1x1x128xf32, #tpu.memory_space<vmem>>, vector<1x1x128xf32>
    %141 = vector.shape_cast %140 : vector<1x1x128xf32> to vector<1x128xf32>
    %142 = vector.broadcast %141 : vector<1x128xf32> to vector<24x128xf32>
    %143 = arith.addf %139, %142 : vector<24x128xf32>
    %c0_61 = arith.constant 0 : index
    %c0_62 = arith.constant 0 : index
    %c0_63 = arith.constant 0 : index
    %144 = vector.load %arg10[%c0_61, %c0_62, %c0_63] : memref<1x1x128xf32, #tpu.memory_space<vmem>>, vector<1x1x128xf32>
    %145 = vector.shape_cast %144 : vector<1x1x128xf32> to vector<1x128xf32>
    %c0_64 = arith.constant 0 : index
    %c0_65 = arith.constant 0 : index
    %c0_66 = arith.constant 0 : index
    %146 = vector.load %arg11[%c0_64, %c0_65, %c0_66] : memref<1x1x128xf32, #tpu.memory_space<vmem>>, vector<1x1x128xf32>
    %147 = vector.shape_cast %146 : vector<1x1x128xf32> to vector<1x128xf32>
    %cst_67 = arith.constant dense<0.000000e+00> : vector<24xf32>
    %148 = vector.multi_reduction <add>, %143, %cst_67 [1] : vector<24x128xf32> to vector<24xf32>
    %149 = vector.shape_cast %148 : vector<24xf32> to vector<24x1xf32>
    %cst_68 = arith.constant 3.125000e-02 : f32
    %150 = vector.broadcast %cst_68 : f32 to vector<24x1xf32>
    %151 = arith.mulf %149, %150 : vector<24x1xf32>
    %152 = arith.mulf %143, %143 : vector<24x128xf32>
    %cst_69 = arith.constant dense<0.000000e+00> : vector<24xf32>
    %153 = vector.multi_reduction <add>, %152, %cst_69 [1] : vector<24x128xf32> to vector<24xf32>
    %154 = vector.shape_cast %153 : vector<24xf32> to vector<24x1xf32>
    %cst_70 = arith.constant 3.125000e-02 : f32
    %155 = vector.broadcast %cst_70 : f32 to vector<24x1xf32>
    %156 = arith.mulf %154, %155 : vector<24x1xf32>
    %157 = arith.mulf %151, %151 : vector<24x1xf32>
    %158 = arith.subf %156, %157 : vector<24x1xf32>
    %cst_71 = arith.constant 9.99999974E-6 : f32
    %159 = vector.broadcast %cst_71 : f32 to vector<24x1xf32>
    %160 = arith.addf %158, %159 : vector<24x1xf32>
    %161 = math.rsqrt %160 : vector<24x1xf32>
    %162 = vector.broadcast %151 : vector<24x1xf32> to vector<24x128xf32>
    %163 = arith.subf %143, %162 : vector<24x128xf32>
    %164 = vector.broadcast %161 : vector<24x1xf32> to vector<24x128xf32>
    %165 = arith.mulf %163, %164 : vector<24x128xf32>
    %166 = vector.broadcast %145 : vector<1x128xf32> to vector<24x128xf32>
    %167 = arith.mulf %165, %166 : vector<24x128xf32>
    %168 = vector.broadcast %147 : vector<1x128xf32> to vector<24x128xf32>
    %169 = arith.addf %167, %168 : vector<24x128xf32>
    %170 = arith.truncf %169 : vector<24x128xf32> to vector<24x128xbf16>
    %c0_72 = arith.constant 0 : index
    %c0_73 = arith.constant 0 : index
    %c0_74 = arith.constant 0 : index
    %171 = vector.load %arg12[%c0_72, %c0_73, %c0_74] : memref<1x128x128xbf16, #tpu.memory_space<vmem>>, vector<1x128x128xbf16>
    %172 = vector.shape_cast %171 : vector<1x128x128xbf16> to vector<128x128xbf16>
    %cst_75 = arith.constant dense<0.000000e+00> : vector<24x128xf32>
    %173 = tpu.matmul %170, %172, %cst_75 {dimension_numbers = #tpu.dot_dimension_numbers<[1], [0], [0], [1], [0, 0, 1, 1], [], []>} : vector<24x128xbf16>, vector<128x128xbf16>, vector<24x128xf32> -> vector<24x128xf32>
    %c0_76 = arith.constant 0 : index
    %c0_77 = arith.constant 0 : index
    %c0_78 = arith.constant 0 : index
    %174 = vector.load %arg13[%c0_76, %c0_77, %c0_78] : memref<1x1x128xf32, #tpu.memory_space<vmem>>, vector<1x1x128xf32>
    %175 = vector.shape_cast %174 : vector<1x1x128xf32> to vector<1x128xf32>
    %176 = vector.broadcast %175 : vector<1x128xf32> to vector<24x128xf32>
    %177 = arith.addf %173, %176 : vector<24x128xf32>
    %cst_79 = arith.constant 5.000000e-01 : f32
    %178 = vector.broadcast %cst_79 : f32 to vector<24x128xf32>
    %179 = arith.mulf %178, %177 : vector<24x128xf32>
    %180 = arith.mulf %177, %177 : vector<24x128xf32>
    %181 = arith.mulf %180, %177 : vector<24x128xf32>
    %cst_80 = arith.constant 4.471500e-02 : f32
    %182 = vector.broadcast %cst_80 : f32 to vector<24x128xf32>
    %183 = arith.mulf %182, %181 : vector<24x128xf32>
    %184 = arith.addf %177, %183 : vector<24x128xf32>
    %cst_81 = arith.constant 0.797884583 : f32
    %185 = vector.broadcast %cst_81 : f32 to vector<24x128xf32>
    %186 = arith.mulf %185, %184 : vector<24x128xf32>
    %187 = math.tanh %186 : vector<24x128xf32>
    %cst_82 = arith.constant 1.000000e+00 : f32
    %188 = vector.broadcast %cst_82 : f32 to vector<24x128xf32>
    %189 = arith.addf %188, %187 : vector<24x128xf32>
    %190 = arith.mulf %179, %189 : vector<24x128xf32>
    %191 = arith.truncf %190 : vector<24x128xf32> to vector<24x128xbf16>
    %c0_83 = arith.constant 0 : index
    %c0_84 = arith.constant 0 : index
    %c0_85 = arith.constant 0 : index
    %192 = vector.load %arg14[%c0_83, %c0_84, %c0_85] : memref<1x128x128xbf16, #tpu.memory_space<vmem>>, vector<1x128x128xbf16>
    %193 = vector.shape_cast %192 : vector<1x128x128xbf16> to vector<128x128xbf16>
    %cst_86 = arith.constant dense<0.000000e+00> : vector<24x128xf32>
    %194 = tpu.matmul %191, %193, %cst_86 {dimension_numbers = #tpu.dot_dimension_numbers<[1], [0], [0], [1], [0, 0, 1, 1], [], []>} : vector<24x128xbf16>, vector<128x128xbf16>, vector<24x128xf32> -> vector<24x128xf32>
    %c0_87 = arith.constant 0 : index
    %c0_88 = arith.constant 0 : index
    %c0_89 = arith.constant 0 : index
    %195 = vector.load %arg15[%c0_87, %c0_88, %c0_89] : memref<1x1x128xf32, #tpu.memory_space<vmem>>, vector<1x1x128xf32>
    %196 = vector.shape_cast %195 : vector<1x1x128xf32> to vector<1x128xf32>
    %197 = vector.broadcast %196 : vector<1x128xf32> to vector<24x128xf32>
    %198 = arith.addf %194, %197 : vector<24x128xf32>
    %199 = arith.addf %143, %198 : vector<24x128xf32>
    %c0_90 = arith.constant 0 : index
    %c0_91 = arith.constant 0 : index
    %200 = vector.load %arg21[%c0_90, %c0_91] : memref<24x128xf32, #tpu.memory_space<vmem>>, vector<24x128xf32>
    tpu.vector_store %arg21[%c0_90, %c0_91], %199 {strides = array<i32>} : memref<24x128xf32, #tpu.memory_space<vmem>>, vector<24x128xf32>,
    %c1_i32 = arith.constant 1 : i32
    %201 = arith.cmpi eq, %arg1, %c1_i32 : i32
    %202 = arith.extui %201 : i1 to i32
    %c0_i32_92 = arith.constant 0 : i32
    %203 = arith.cmpi ne, %202, %c0_i32_92 : i32
    scf.if %203 {
      %204 = vector.extract_strided_slice %199 {offsets = [0, 0], sizes = [1, 128], strides = [1, 1]} : vector<24x128xf32> to vector<1x128xf32>
      %c0_93 = arith.constant 0 : index
      %c0_94 = arith.constant 0 : index
      %205 = vector.load %arg16[%c0_93, %c0_94] : memref<1x128xf32, #tpu.memory_space<vmem>>, vector<1x128xf32>
      %c0_95 = arith.constant 0 : index
      %c0_96 = arith.constant 0 : index
      %206 = vector.load %arg17[%c0_95, %c0_96] : memref<1x128xf32, #tpu.memory_space<vmem>>, vector<1x128xf32>
      %cst_97 = arith.constant dense<0.000000e+00> : vector<1xf32>
      %207 = vector.multi_reduction <add>, %204, %cst_97 [1] : vector<1x128xf32> to vector<1xf32>
      %208 = vector.shape_cast %207 : vector<1xf32> to vector<1x1xf32>
      %cst_98 = arith.constant 3.125000e-02 : f32
      %209 = vector.broadcast %cst_98 : f32 to vector<1x1xf32>
      %210 = arith.mulf %208, %209 : vector<1x1xf32>
      %211 = arith.mulf %204, %204 : vector<1x128xf32>
      %cst_99 = arith.constant dense<0.000000e+00> : vector<1xf32>
      %212 = vector.multi_reduction <add>, %211, %cst_99 [1] : vector<1x128xf32> to vector<1xf32>
      %213 = vector.shape_cast %212 : vector<1xf32> to vector<1x1xf32>
      %cst_100 = arith.constant 3.125000e-02 : f32
      %214 = vector.broadcast %cst_100 : f32 to vector<1x1xf32>
      %215 = arith.mulf %213, %214 : vector<1x1xf32>
      %216 = arith.mulf %210, %210 : vector<1x1xf32>
      %217 = arith.subf %215, %216 : vector<1x1xf32>
      %cst_101 = arith.constant 9.99999974E-6 : f32
      %218 = vector.broadcast %cst_101 : f32 to vector<1x1xf32>
      %219 = arith.addf %217, %218 : vector<1x1xf32>
      %220 = math.rsqrt %219 : vector<1x1xf32>
      %221 = vector.broadcast %210 : vector<1x1xf32> to vector<1x128xf32>
      %222 = arith.subf %204, %221 : vector<1x128xf32>
      %223 = vector.broadcast %220 : vector<1x1xf32> to vector<1x128xf32>
      %224 = arith.mulf %222, %223 : vector<1x128xf32>
      %225 = arith.mulf %224, %205 : vector<1x128xf32>
      %226 = arith.addf %225, %206 : vector<1x128xf32>
      %227 = arith.truncf %226 : vector<1x128xf32> to vector<1x128xbf16>
      %c0_102 = arith.constant 0 : index
      %c0_103 = arith.constant 0 : index
      %228 = vector.load %arg18[%c0_102, %c0_103] : memref<128x128xbf16, #tpu.memory_space<vmem>>, vector<128x128xbf16>
      %cst_104 = arith.constant dense<0.000000e+00> : vector<1x128xf32>
      %229 = tpu.matmul %227, %228, %cst_104 {dimension_numbers = #tpu.dot_dimension_numbers<[1], [0], [0], [1], [0, 0, 1, 1], [], []>} : vector<1x128xbf16>, vector<128x128xbf16>, vector<1x128xf32> -> vector<1x128xf32>
      %c0_105 = arith.constant 0 : index
      %c0_106 = arith.constant 0 : index
      %230 = vector.load %arg19[%c0_105, %c0_106] : memref<1x128xf32, #tpu.memory_space<vmem>>, vector<1x128xf32>
      %231 = arith.addf %229, %230 : vector<1x128xf32>
      %c0_107 = arith.constant 0 : index
      %c0_108 = arith.constant 0 : index
      %c0_109 = arith.constant 0 : index
      %232 = vector.load %arg20[%c0_107, %c0_108, %c0_109] : memref<1x1x128xf32, #tpu.memory_space<vmem>>, vector<1x1x128xf32>
      %233 = vector.shape_cast %232 : vector<1x1x128xf32> to vector<1x128xf32>
      %234 = vector.shape_cast %231 : vector<1x128xf32> to vector<1x1x128xf32>
      tpu.vector_store %arg20[%c0_107, %c0_108, %c0_109], %234 {strides = array<i32>} : memref<1x1x128xf32, #tpu.memory_space<vmem>>, vector<1x1x128xf32>,
    } else {
    }
    return
  }
  func.func @transform_0(%arg0: i32, %arg1: i32) -> (i32, i32, i32) {
    %c0_i32 = arith.constant 0 : i32
    %c0_i32_0 = arith.constant 0 : i32
    %c0_i32_1 = arith.constant 0 : i32
    return %arg0, %c0_i32, %c0_i32_0 : i32, i32, i32
  }
  func.func @transform_1(%arg0: i32, %arg1: i32) -> (i32, i32) {
    %c0_i32 = arith.constant 0 : i32
    %c0_i32_0 = arith.constant 0 : i32
    %c0_i32_1 = arith.constant 0 : i32
    return %c0_i32, %c0_i32_0 : i32, i32
  }
  func.func @transform_2(%arg0: i32, %arg1: i32) -> (i32, i32) {
    %c0_i32 = arith.constant 0 : i32
    %c0_i32_0 = arith.constant 0 : i32
    %c0_i32_1 = arith.constant 0 : i32
    return %c0_i32, %c0_i32_0 : i32, i32
  }
  func.func @transform_3(%arg0: i32, %arg1: i32) -> (i32, i32, i32) {
    %c0_i32 = arith.constant 0 : i32
    %c0_i32_0 = arith.constant 0 : i32
    %c0_i32_1 = arith.constant 0 : i32
    return %arg1, %c0_i32, %c0_i32_0 : i32, i32, i32
  }
  func.func @transform_4(%arg0: i32, %arg1: i32) -> (i32, i32, i32) {
    %c0_i32 = arith.constant 0 : i32
    %c0_i32_0 = arith.constant 0 : i32
    %c0_i32_1 = arith.constant 0 : i32
    return %arg1, %c0_i32, %c0_i32_0 : i32, i32, i32
  }
  func.func @transform_5(%arg0: i32, %arg1: i32) -> (i32, i32, i32) {
    %c0_i32 = arith.constant 0 : i32
    %c0_i32_0 = arith.constant 0 : i32
    %c0_i32_1 = arith.constant 0 : i32
    return %arg1, %c0_i32, %c0_i32_0 : i32, i32, i32
  }
  func.func @transform_6(%arg0: i32, %arg1: i32) -> (i32, i32, i32, i32) {
    %c0_i32 = arith.constant 0 : i32
    %c0_i32_0 = arith.constant 0 : i32
    %c0_i32_1 = arith.constant 0 : i32
    %c0_i32_2 = arith.constant 0 : i32
    return %arg1, %c0_i32, %c0_i32_0, %c0_i32_1 : i32, i32, i32, i32
  }
  func.func @transform_7(%arg0: i32, %arg1: i32) -> (i32, i32, i32) {
    %c0_i32 = arith.constant 0 : i32
    %c0_i32_0 = arith.constant 0 : i32
    %c0_i32_1 = arith.constant 0 : i32
    return %arg1, %c0_i32, %c0_i32_0 : i32, i32, i32
  }
  func.func @transform_8(%arg0: i32, %arg1: i32) -> (i32, i32, i32) {
    %c0_i32 = arith.constant 0 : i32
    %c0_i32_0 = arith.constant 0 : i32
    %c0_i32_1 = arith.constant 0 : i32
    return %arg1, %c0_i32, %c0_i32_0 : i32, i32, i32
  }
  func.func @transform_9(%arg0: i32, %arg1: i32) -> (i32, i32, i32) {
    %c0_i32 = arith.constant 0 : i32
    %c0_i32_0 = arith.constant 0 : i32
    %c0_i32_1 = arith.constant 0 : i32
    return %arg1, %c0_i32, %c0_i32_0 : i32, i32, i32
  }
  func.func @transform_10(%arg0: i32, %arg1: i32) -> (i32, i32, i32) {
    %c0_i32 = arith.constant 0 : i32
    %c0_i32_0 = arith.constant 0 : i32
    %c0_i32_1 = arith.constant 0 : i32
    return %arg1, %c0_i32, %c0_i32_0 : i32, i32, i32
  }
  func.func @transform_11(%arg0: i32, %arg1: i32) -> (i32, i32, i32) {
    %c0_i32 = arith.constant 0 : i32
    %c0_i32_0 = arith.constant 0 : i32
    %c0_i32_1 = arith.constant 0 : i32
    return %arg1, %c0_i32, %c0_i32_0 : i32, i32, i32
  }
  func.func @transform_12(%arg0: i32, %arg1: i32) -> (i32, i32, i32) {
    %c0_i32 = arith.constant 0 : i32
    %c0_i32_0 = arith.constant 0 : i32
    %c0_i32_1 = arith.constant 0 : i32
    return %arg1, %c0_i32, %c0_i32_0 : i32, i32, i32
  }
  func.func @transform_13(%arg0: i32, %arg1: i32) -> (i32, i32, i32) {
    %c0_i32 = arith.constant 0 : i32
    %c0_i32_0 = arith.constant 0 : i32
    %c0_i32_1 = arith.constant 0 : i32
    return %arg1, %c0_i32, %c0_i32_0 : i32, i32, i32
  }
  func.func @transform_14(%arg0: i32, %arg1: i32) -> (i32, i32) {
    %c0_i32 = arith.constant 0 : i32
    %c0_i32_0 = arith.constant 0 : i32
    %c0_i32_1 = arith.constant 0 : i32
    return %c0_i32, %c0_i32_0 : i32, i32
  }
  func.func @transform_15(%arg0: i32, %arg1: i32) -> (i32, i32) {
    %c0_i32 = arith.constant 0 : i32
    %c0_i32_0 = arith.constant 0 : i32
    %c0_i32_1 = arith.constant 0 : i32
    return %c0_i32, %c0_i32_0 : i32, i32
  }
  func.func @transform_16(%arg0: i32, %arg1: i32) -> (i32, i32) {
    %c0_i32 = arith.constant 0 : i32
    %c0_i32_0 = arith.constant 0 : i32
    %c0_i32_1 = arith.constant 0 : i32
    return %c0_i32, %c0_i32_0 : i32, i32
  }
  func.func @transform_17(%arg0: i32, %arg1: i32) -> (i32, i32) {
    %c0_i32 = arith.constant 0 : i32
    %c0_i32_0 = arith.constant 0 : i32
    %c0_i32_1 = arith.constant 0 : i32
    return %c0_i32, %c0_i32_0 : i32, i32
  }
  func.func @transform_18(%arg0: i32, %arg1: i32) -> (i32, i32, i32) {
    %c0_i32 = arith.constant 0 : i32
    %c0_i32_0 = arith.constant 0 : i32
    %c0_i32_1 = arith.constant 0 : i32
    return %arg0, %c0_i32, %c0_i32_0 : i32, i32, i32
  }
}

</mosaic_0001>

<llo_original>
// kernel: tpu_custom_call.1
$region0: #{tpu_custom_call.1}
  #allocation0 [shape = 'u32[]', space=smem, size = 0x4, offset = 0x4, fixed_abs, tag = 'smem constant byte address 0x4 - core index']
  #allocation1 [shape = 'u32[144,128]{1,0:T(1,128)}', space=vmem, size = 0x12000, scoped, tag = 'internal scratch']
  #allocation2 [shape = 'f32[24,128]{1,0:T(8,128)}', space=vmem, size = 0x3000, scoped, tag = 'scratch operand']
  %s0 = inlined_call_operand.hbm [shape: bf16[2,24,128], index: 0, kind: input, shape index: {}]
  %s1 = inlined_call_operand.hbm [shape: bf16[128,128], index: 1, kind: input, shape index: {}]
  %s2 = inlined_call_operand.hbm [shape: f32[24,128], index: 2, kind: input, shape index: {}]
  %s3 = inlined_call_operand.vmem [shape: f32[2,1,128], index: 3, kind: input, shape index: {}]
  %s4 = inlined_call_operand.vmem [shape: f32[2,1,128], index: 4, kind: input, shape index: {}]
  %s5 = inlined_call_operand.hbm [shape: bf16[2,128,1536], index: 5, kind: input, shape index: {}]
  %s6 = inlined_call_operand.hbm [shape: bf16[2,4,128,128], index: 6, kind: input, shape index: {}]
  %s7 = inlined_call_operand.vmem [shape: f32[2,1,128], index: 7, kind: input, shape index: {}]
  %s8 = inlined_call_operand.vmem [shape: f32[2,1,128], index: 8, kind: input, shape index: {}]
  %s9 = inlined_call_operand.vmem [shape: f32[2,1,128], index: 9, kind: input, shape index: {}]
  %s10 = inlined_call_operand.hbm [shape: bf16[2,128,128], index: 10, kind: input, shape index: {}]
  %s11 = inlined_call_operand.vmem [shape: f32[2,1,128], index: 11, kind: input, shape index: {}]
  %s12 = inlined_call_operand.hbm [shape: bf16[2,128,128], index: 12, kind: input, shape index: {}]
  %s13 = inlined_call_operand.vmem [shape: f32[2,1,128], index: 13, kind: input, shape index: {}]
  %s14 = inlined_call_operand.vmem [shape: f32[1,128], index: 14, kind: input, shape index: {}]
  %s15 = inlined_call_operand.vmem [shape: f32[1,128], index: 15, kind: input, shape index: {}]
  %s16 = inlined_call_operand.hbm [shape: bf16[128,128], index: 16, kind: input, shape index: {}]
  %s17 = inlined_call_operand.vmem [shape: f32[1,128], index: 17, kind: input, shape index: {}]
  %s18 = inlined_call_operand.hbm [shape: f32[2,1,128], index: 18, kind: output, shape index: {}]
  %s19 = sld [smem:[#allocation0]]
  $region145: #{tpu_custom_call.1} parent=0
    _
  %s21 = ssub.s32 1, %s19
  %s22 = scalar_select 0, %s21, %s19
  $region1: #{tpu_custom_call.1} parent=0
    #allocation3 [shape = 'u8[12288]{0}', space=vmem, size = 0x3000, scoped, tag = 'input window, operand 0']
    #allocation4 [shape = 's32[2]{0}', space=sflag, size = 0x8, scoped, tag = 'scoped memory for tpu_custom_call.1']
    #allocation5 [shape = 's32[2]{0}', space=sflag, size = 0x8, scoped, tag = 'scoped memory for tpu_custom_call.1']
    #allocation6 [shape = 'u8[32768]{0}', space=vmem, size = 0x8000, scoped, tag = 'input window, operand 1, single buffered']
    #allocation7 [shape = 's32[1]{0}', space=sflag, size = 0x4, scoped, tag = 'scoped memory for tpu_custom_call.1']
    #allocation8 [shape = 'u8[12288]{0}', space=vmem, size = 0x3000, scoped, tag = 'input window, operand 2, single buffered']
    #allocation9 [shape = 'u8[786432]{0}', space=vmem, size = 0xc0000, scoped, tag = 'input window, operand 5']
    #allocation10 [shape = 's32[2]{0}', space=sflag, size = 0x8, scoped, tag = 'scoped memory for tpu_custom_call.1']
    #allocation11 [shape = 'u8[262144]{0}', space=vmem, size = 0x40000, scoped, tag = 'input window, operand 6']
    #allocation12 [shape = 'u8[65536]{0}', space=vmem, size = 0x10000, scoped, tag = 'input window, operand 10']
    #allocation13 [shape = 's32[2]{0}', space=sflag, size = 0x8, scoped, tag = 'scoped memory for tpu_custom_call.1']
    #allocation14 [shape = 'u8[65536]{0}', space=vmem, size = 0x10000, scoped, tag = 'input window, operand 12']
    #allocation15 [shape = 'u8[32768]{0}', space=vmem, size = 0x8000, scoped, tag = 'input window, operand 16, single buffered']
    #allocation16 [shape = 's32[1]{0}', space=sflag, size = 0x4, scoped, tag = 'scoped memory for tpu_custom_call.1']
    #allocation17 [shape = 'u8[1024]{0}', space=vmem, size = 0x400, scoped, tag = 'output window, operand 0']
    %23 = vsyncpa [#allocation4], 0
    %s24 = scalar_lea.sflag [#allocation4], 1
    %25 = vsyncpa %s24, 0
    %26 = vsyncpa [#allocation7], 0
    %27 = vsyncpa [#allocation10], 0
    %s28 = scalar_lea.sflag [#allocation10], 1
    %29 = vsyncpa %s28, 0
    %30 = vsyncpa [#allocation13], 0
    %s31 = scalar_lea.sflag [#allocation13], 1
    %32 = vsyncpa %s31, 0
    %33 = vsyncpa [#allocation16], 0
    %34 = vsyncpa [#allocation5], 0
    %s35 = scalar_lea.sflag [#allocation5], 1
    %36 = vsyncpa %s35, 0
    loop: start=0, step=1, limit=6
    $region2: #{tpu_custom_call.1} parent=1 // loop_pre_header
      _
    $region3: #{tpu_custom_call.1} parent=1 // loop_header
      %s38 = sphi 0, %s42
      %p39 = scmp.ge.s32.totalorder %s38, 6
      %s45 = sphi 0, %s57
      %s46 = sphi 0, %s53
      %s47 = sphi 0, %s45
      %s48 = sphi 0, %s46
      %s49 = sphi 0, %s47
      %s50 = sphi 0, %s48
      %s60 = sphi 0, %s62
      %s63 = sphi 0, %s60
      %s64 = sphi 0, %s63
      %s80 = sphi 0, %s64
      %s84 = sphi 0, %s84
      %s86 = sphi 0, %s84
      %s87 = sphi 0, %s86
      %s101 = sphi 0, %s87
      %s105 = sphi 0, %s105
      %s107 = sphi 0, %s105
      %s108 = sphi 0, %s107
      %s122 = sphi 0, %s108
      %s128 = sphi 0, %s130
      %s131 = sphi 0, %s128
      %s132 = sphi 0, %s131
      %s148 = sphi 0, %s132
      %s154 = sphi 0, %s156
      %s157 = sphi 0, %s154
      %s158 = sphi 0, %s157
      %s174 = sphi 0, %s158
      %s180 = sphi 0, %s182
      %s183 = sphi 0, %s180
      %s184 = sphi 0, %s183
      %s200 = sphi 0, %s184
      %s206 = sphi 0, %s208
      %s209 = sphi 0, %s206
      %s210 = sphi 0, %s209
      %s226 = sphi 0, %s210
      %s232 = sphi 0, %s234
      %s235 = sphi 0, %s232
      %s236 = sphi 0, %s235
      %s252 = sphi 0, %s236
      %s258 = sphi 0, %s260
      %s261 = sphi 0, %s258
      %s262 = sphi 0, %s261
      %s278 = sphi 0, %s262
      %s284 = sphi 0, %s286
      %s287 = sphi 0, %s284
      %s288 = sphi 0, %s287
      %s304 = sphi 0, %s288
      %s310 = sphi 0, %s312
      %s313 = sphi 0, %s310
      %s314 = sphi 0, %s313
      %s330 = sphi 0, %s314
      %s336 = sphi 0, %s338
      %s339 = sphi 0, %s336
      %s340 = sphi 0, %s339
      %s356 = sphi 0, %s340
      %s362 = sphi 0, %s364
      %s365 = sphi 0, %s362
      %s366 = sphi 0, %s365
      %s382 = sphi 0, %s366
      %s388 = sphi 0, %s390
      %s391 = sphi 0, %s388
      %s392 = sphi 0, %s391
      %s408 = sphi 0, %s392
      %s412 = sphi 0, %s412
      %s414 = sphi 0, %s412
      %s415 = sphi 0, %s414
      %s429 = sphi 0, %s415
      %s433 = sphi 0, %s433
      %s435 = sphi 0, %s433
      %s436 = sphi 0, %s435
      %s450 = sphi 0, %s436
      %s454 = sphi 0, %s454
      %s456 = sphi 0, %s454
      %s457 = sphi 0, %s456
      %s471 = sphi 0, %s457
      %s475 = sphi 0, %s475
      %s477 = sphi 0, %s475
      %s478 = sphi 0, %s477
      %s492 = sphi 0, %s478
      %s498 = sphi 0, %s500
      %s501 = sphi 0, %s498
      %s502 = sphi 0, %s501
      %s518 = sphi 0, %s502
    $region4: #{tpu_custom_call.1} parent=1 // loop_header_branch
      %41 = sbr.rel (%p39) target = $region8
    $region5: #{tpu_custom_call.1} parent=1 // loop_body
      %s43 = ssub.s32 %s38, 1
      %s44 = ssub.s32 %s38, 2
      %s51 = sadd.s32 1, %s46
      %p52 = scmp.ge.s32.totalorder %s51, 2
      %s53 = scalar_select %p52, 0, %s51
      %s54 = sadd.s32 1, %s45
      %s55 = scalar_select %p52, %s54, %s45
      %p56 = scmp.ge.s32.totalorder %s55, 2
      %s57 = scalar_select %p56, 0, %s55
      %s58 = ssub.s32 %s45, %s57
      %p59 = scmp.eq.s32.totalorder %s58, 0
      %s61 = sadd.s32 %s60, 1
      %s62 = scalar_select %p59, %s60, %s61
      %p65 = pneg %p59
      %p66 = scmp.eq.s32.totalorder %s38, 3
      %p67 = por %p65, %p66
      %p68 = scmp.ne.s32.totalorder %s60, %s63
      %p69 = scmp.eq.s32.totalorder %s38, 0
      %p70 = por %p68, %p69
      %p71 = scmp.ne.s32.totalorder %s60, %s63
      %p72 = scmp.eq.s32.totalorder %s43, 3
      %p73 = por %p71, %p72
      %p74 = scmp.ne.s32.totalorder %s63, %s64
      %p75 = scmp.eq.s32.totalorder %s43, 0
      %p76 = por %p74, %p75
      %p77 = scmp.ne.s32.totalorder %s63, %s64
      %p78 = scmp.eq.s32.totalorder %s44, 3
      %p79 = por %p77, %p78
      %p81 = scmp.ne.s32.totalorder %s64, %s80
      %p82 = scmp.eq.s32.totalorder %s44, 0
      %p83 = por %p81, %p82
      %s85 = sadd.s32 %s84, 1
      %p88 = scmp.eq.s32.totalorder %s38, 3
      %p89 = scmp.ne.s32.totalorder %s84, %s86
      %p90 = scmp.eq.s32.totalorder %s38, 0
      %p91 = por %p89, %p90
      %p92 = scmp.ne.s32.totalorder %s84, %s86
      %p93 = scmp.eq.s32.totalorder %s43, 3
      %p94 = por %p92, %p93
      %p95 = scmp.ne.s32.totalorder %s86, %s87
      %p96 = scmp.eq.s32.totalorder %s43, 0
      %p97 = por %p95, %p96
      %p98 = scmp.ne.s32.totalorder %s86, %s87
      %p99 = scmp.eq.s32.totalorder %s44, 3
      %p100 = por %p98, %p99
      %p102 = scmp.ne.s32.totalorder %s87, %s101
      %p103 = scmp.eq.s32.totalorder %s44, 0
      %p104 = por %p102, %p103
      %s106 = sadd.s32 %s105, 1
      %p109 = scmp.eq.s32.totalorder %s38, 3
      %p110 = scmp.ne.s32.totalorder %s105, %s107
      %p111 = scmp.eq.s32.totalorder %s38, 0
      %p112 = por %p110, %p111
      %p113 = scmp.ne.s32.totalorder %s105, %s107
      %p114 = scmp.eq.s32.totalorder %s43, 3
      %p115 = por %p113, %p114
      %p116 = scmp.ne.s32.totalorder %s107, %s108
      %p117 = scmp.eq.s32.totalorder %s43, 0
      %p118 = por %p116, %p117
      %p119 = scmp.ne.s32.totalorder %s107, %s108
      %p120 = scmp.eq.s32.totalorder %s44, 3
      %p121 = por %p119, %p120
      %p123 = scmp.ne.s32.totalorder %s108, %s122
      %p124 = scmp.eq.s32.totalorder %s44, 0
      %p125 = por %p123, %p124
      %s126 = ssub.s32 %s46, %s53
      %p127 = scmp.eq.s32.totalorder %s126, 0
      %s129 = sadd.s32 %s128, 1
      %s130 = scalar_select %p127, %s128, %s129
      %p133 = pneg %p127
      %p134 = scmp.eq.s32.totalorder %s38, 3
      %p135 = por %p133, %p134
      %p136 = scmp.ne.s32.totalorder %s128, %s131
      %p137 = scmp.eq.s32.totalorder %s38, 0
      %p138 = por %p136, %p137
      %p139 = scmp.ne.s32.totalorder %s128, %s131
      %p140 = scmp.eq.s32.totalorder %s43, 3
      %p141 = por %p139, %p140
      %p142 = scmp.ne.s32.totalorder %s131, %s132
      %p143 = scmp.eq.s32.totalorder %s43, 0
      %p144 = por %p142, %p143
      %p145 = scmp.ne.s32.totalorder %s131, %s132
      %p146 = scmp.eq.s32.totalorder %s44, 3
      %p147 = por %p145, %p146
      %p149 = scmp.ne.s32.totalorder %s132, %s148
      %p150 = scmp.eq.s32.totalorder %s44, 0
      %p151 = por %p149, %p150
      %s152 = ssub.s32 %s46, %s53
      %p153 = scmp.eq.s32.totalorder %s152, 0
      %s155 = sadd.s32 %s154, 1
      %s156 = scalar_select %p153, %s154, %s155
      %p159 = pneg %p153
      %p160 = scmp.eq.s32.totalorder %s38, 3
      %p161 = por %p159, %p160
      %p162 = scmp.ne.s32.totalorder %s154, %s157
      %p163 = scmp.eq.s32.totalorder %s38, 0
      %p164 = por %p162, %p163
      %p165 = scmp.ne.s32.totalorder %s154, %s157
      %p166 = scmp.eq.s32.totalorder %s43, 3
      %p167 = por %p165, %p166
      %p168 = scmp.ne.s32.totalorder %s157, %s158
      %p169 = scmp.eq.s32.totalorder %s43, 0
      %p170 = por %p168, %p169
      %p171 = scmp.ne.s32.totalorder %s157, %s158
      %p172 = scmp.eq.s32.totalorder %s44, 3
      %p173 = por %p171, %p172
      %p175 = scmp.ne.s32.totalorder %s158, %s174
      %p176 = scmp.eq.s32.totalorder %s44, 0
      %p177 = por %p175, %p176
      %s178 = ssub.s32 %s46, %s53
      %p179 = scmp.eq.s32.totalorder %s178, 0
      %s181 = sadd.s32 %s180, 1
      %s182 = scalar_select %p179, %s180, %s181
      %p185 = pneg %p179
      %p186 = scmp.eq.s32.totalorder %s38, 3
      %p187 = por %p185, %p186
      %p188 = scmp.ne.s32.totalorder %s180, %s183
      %p189 = scmp.eq.s32.totalorder %s38, 0
      %p190 = por %p188, %p189
      %p191 = scmp.ne.s32.totalorder %s180, %s183
      %p192 = scmp.eq.s32.totalorder %s43, 3
      %p193 = por %p191, %p192
      %p194 = scmp.ne.s32.totalorder %s183, %s184
      %p195 = scmp.eq.s32.totalorder %s43, 0
      %p196 = por %p194, %p195
      %p197 = scmp.ne.s32.totalorder %s183, %s184
      %p198 = scmp.eq.s32.totalorder %s44, 3
      %p199 = por %p197, %p198
      %p201 = scmp.ne.s32.totalorder %s184, %s200
      %p202 = scmp.eq.s32.totalorder %s44, 0
      %p203 = por %p201, %p202
      %s204 = ssub.s32 %s46, %s53
      %p205 = scmp.eq.s32.totalorder %s204, 0
      %s207 = sadd.s32 %s206, 1
      %s208 = scalar_select %p205, %s206, %s207
      %p211 = pneg %p205
      %p212 = scmp.eq.s32.totalorder %s38, 3
      %p213 = por %p211, %p212
      %p214 = scmp.ne.s32.totalorder %s206, %s209
      %p215 = scmp.eq.s32.totalorder %s38, 0
      %p216 = por %p214, %p215
      %p217 = scmp.ne.s32.totalorder %s206, %s209
      %p218 = scmp.eq.s32.totalorder %s43, 3
      %p219 = por %p217, %p218
      %p220 = scmp.ne.s32.totalorder %s209, %s210
      %p221 = scmp.eq.s32.totalorder %s43, 0
      %p222 = por %p220, %p221
      %p223 = scmp.ne.s32.totalorder %s209, %s210
      %p224 = scmp.eq.s32.totalorder %s44, 3
      %p225 = por %p223, %p224
      %p227 = scmp.ne.s32.totalorder %s210, %s226
      %p228 = scmp.eq.s32.totalorder %s44, 0
      %p229 = por %p227, %p228
      %s230 = ssub.s32 %s46, %s53
      %p231 = scmp.eq.s32.totalorder %s230, 0
      %s233 = sadd.s32 %s232, 1
      %s234 = scalar_select %p231, %s232, %s233
      %p237 = pneg %p231
      %p238 = scmp.eq.s32.totalorder %s38, 3
      %p239 = por %p237, %p238
      %p240 = scmp.ne.s32.totalorder %s232, %s235
      %p241 = scmp.eq.s32.totalorder %s38, 0
      %p242 = por %p240, %p241
      %p243 = scmp.ne.s32.totalorder %s232, %s235
      %p244 = scmp.eq.s32.totalorder %s43, 3
      %p245 = por %p243, %p244
      %p246 = scmp.ne.s32.totalorder %s235, %s236
      %p247 = scmp.eq.s32.totalorder %s43, 0
      %p248 = por %p246, %p247
      %p249 = scmp.ne.s32.totalorder %s235, %s236
      %p250 = scmp.eq.s32.totalorder %s44, 3
      %p251 = por %p249, %p250
      %p253 = scmp.ne.s32.totalorder %s236, %s252
      %p254 = scmp.eq.s32.totalorder %s44, 0
      %p255 = por %p253, %p254
      %s256 = ssub.s32 %s46, %s53
      %p257 = scmp.eq.s32.totalorder %s256, 0
      %s259 = sadd.s32 %s258, 1
      %s260 = scalar_select %p257, %s258, %s259
      %p263 = pneg %p257
      %p264 = scmp.eq.s32.totalorder %s38, 3
      %p265 = por %p263, %p264
      %p266 = scmp.ne.s32.totalorder %s258, %s261
      %p267 = scmp.eq.s32.totalorder %s38, 0
      %p268 = por %p266, %p267
      %p269 = scmp.ne.s32.totalorder %s258, %s261
      %p270 = scmp.eq.s32.totalorder %s43, 3
      %p271 = por %p269, %p270
      %p272 = scmp.ne.s32.totalorder %s261, %s262
      %p273 = scmp.eq.s32.totalorder %s43, 0
      %p274 = por %p272, %p273
      %p275 = scmp.ne.s32.totalorder %s261, %s262
      %p276 = scmp.eq.s32.totalorder %s44, 3
      %p277 = por %p275, %p276
      %p279 = scmp.ne.s32.totalorder %s262, %s278
      %p280 = scmp.eq.s32.totalorder %s44, 0
      %p281 = por %p279, %p280
      %s282 = ssub.s32 %s46, %s53
      %p283 = scmp.eq.s32.totalorder %s282, 0
      %s285 = sadd.s32 %s284, 1
      %s286 = scalar_select %p283, %s284, %s285
      %p289 = pneg %p283
      %p290 = scmp.eq.s32.totalorder %s38, 3
      %p291 = por %p289, %p290
      %p292 = scmp.ne.s32.totalorder %s284, %s287
      %p293 = scmp.eq.s32.totalorder %s38, 0
      %p294 = por %p292, %p293
      %p295 = scmp.ne.s32.totalorder %s284, %s287
      %p296 = scmp.eq.s32.totalorder %s43, 3
      %p297 = por %p295, %p296
      %p298 = scmp.ne.s32.totalorder %s287, %s288
      %p299 = scmp.eq.s32.totalorder %s43, 0
      %p300 = por %p298, %p299
      %p301 = scmp.ne.s32.totalorder %s287, %s288
      %p302 = scmp.eq.s32.totalorder %s44, 3
      %p303 = por %p301, %p302
      %p305 = scmp.ne.s32.totalorder %s288, %s304
      %p306 = scmp.eq.s32.totalorder %s44, 0
      %p307 = por %p305, %p306
      %s308 = ssub.s32 %s46, %s53
      %p309 = scmp.eq.s32.totalorder %s308, 0
      %s311 = sadd.s32 %s310, 1
      %s312 = scalar_select %p309, %s310, %s311
      %p315 = pneg %p309
      %p316 = scmp.eq.s32.totalorder %s38, 3
      %p317 = por %p315, %p316
      %p318 = scmp.ne.s32.totalorder %s310, %s313
      %p319 = scmp.eq.s32.totalorder %s38, 0
      %p320 = por %p318, %p319
      %p321 = scmp.ne.s32.totalorder %s310, %s313
      %p322 = scmp.eq.s32.totalorder %s43, 3
      %p323 = por %p321, %p322
      %p324 = scmp.ne.s32.totalorder %s313, %s314
      %p325 = scmp.eq.s32.totalorder %s43, 0
      %p326 = por %p324, %p325
      %p327 = scmp.ne.s32.totalorder %s313, %s314
      %p328 = scmp.eq.s32.totalorder %s44, 3
      %p329 = por %p327, %p328
      %p331 = scmp.ne.s32.totalorder %s314, %s330
      %p332 = scmp.eq.s32.totalorder %s44, 0
      %p333 = por %p331, %p332
      %s334 = ssub.s32 %s46, %s53
      %p335 = scmp.eq.s32.totalorder %s334, 0
      %s337 = sadd.s32 %s336, 1
      %s338 = scalar_select %p335, %s336, %s337
      %p341 = pneg %p335
      %p342 = scmp.eq.s32.totalorder %s38, 3
      %p343 = por %p341, %p342
      %p344 = scmp.ne.s32.totalorder %s336, %s339
      %p345 = scmp.eq.s32.totalorder %s38, 0
      %p346 = por %p344, %p345
      %p347 = scmp.ne.s32.totalorder %s336, %s339
      %p348 = scmp.eq.s32.totalorder %s43, 3
      %p349 = por %p347, %p348
      %p350 = scmp.ne.s32.totalorder %s339, %s340
      %p351 = scmp.eq.s32.totalorder %s43, 0
      %p352 = por %p350, %p351
      %p353 = scmp.ne.s32.totalorder %s339, %s340
      %p354 = scmp.eq.s32.totalorder %s44, 3
      %p355 = por %p353, %p354
      %p357 = scmp.ne.s32.totalorder %s340, %s356
      %p358 = scmp.eq.s32.totalorder %s44, 0
      %p359 = por %p357, %p358
      %s360 = ssub.s32 %s46, %s53
      %p361 = scmp.eq.s32.totalorder %s360, 0
      %s363 = sadd.s32 %s362, 1
      %s364 = scalar_select %p361, %s362, %s363
      %p367 = pneg %p361
      %p368 = scmp.eq.s32.totalorder %s38, 3
      %p369 = por %p367, %p368
      %p370 = scmp.ne.s32.totalorder %s362, %s365
      %p371 = scmp.eq.s32.totalorder %s38, 0
      %p372 = por %p370, %p371
      %p373 = scmp.ne.s32.totalorder %s362, %s365
      %p374 = scmp.eq.s32.totalorder %s43, 3
      %p375 = por %p373, %p374
      %p376 = scmp.ne.s32.totalorder %s365, %s366
      %p377 = scmp.eq.s32.totalorder %s43, 0
      %p378 = por %p376, %p377
      %p379 = scmp.ne.s32.totalorder %s365, %s366
      %p380 = scmp.eq.s32.totalorder %s44, 3
      %p381 = por %p379, %p380
      %p383 = scmp.ne.s32.totalorder %s366, %s382
      %p384 = scmp.eq.s32.totalorder %s44, 0
      %p385 = por %p383, %p384
      %s386 = ssub.s32 %s46, %s53
      %p387 = scmp.eq.s32.totalorder %s386, 0
      %s389 = sadd.s32 %s388, 1
      %s390 = scalar_select %p387, %s388, %s389
      %p393 = pneg %p387
      %p394 = scmp.eq.s32.totalorder %s38, 3
      %p395 = por %p393, %p394
      %p396 = scmp.ne.s32.totalorder %s388, %s391
      %p397 = scmp.eq.s32.totalorder %s38, 0
      %p398 = por %p396, %p397
      %p399 = scmp.ne.s32.totalorder %s388, %s391
      %p400 = scmp.eq.s32.totalorder %s43, 3
      %p401 = por %p399, %p400
      %p402 = scmp.ne.s32.totalorder %s391, %s392
      %p403 = scmp.eq.s32.totalorder %s43, 0
      %p404 = por %p402, %p403
      %p405 = scmp.ne.s32.totalorder %s391, %s392
      %p406 = scmp.eq.s32.totalorder %s44, 3
      %p407 = por %p405, %p406
      %p409 = scmp.ne.s32.totalorder %s392, %s408
      %p410 = scmp.eq.s32.totalorder %s44, 0
      %p411 = por %p409, %p410
      %s413 = sadd.s32 %s412, 1
      %p416 = scmp.eq.s32.totalorder %s38, 3
      %p417 = scmp.ne.s32.totalorder %s412, %s414
      %p418 = scmp.eq.s32.totalorder %s38, 0
      %p419 = por %p417, %p418
      %p420 = scmp.ne.s32.totalorder %s412, %s414
      %p421 = scmp.eq.s32.totalorder %s43, 3
      %p422 = por %p420, %p421
      %p423 = scmp.ne.s32.totalorder %s414, %s415
      %p424 = scmp.eq.s32.totalorder %s43, 0
      %p425 = por %p423, %p424
      %p426 = scmp.ne.s32.totalorder %s414, %s415
      %p427 = scmp.eq.s32.totalorder %s44, 3
      %p428 = por %p426, %p427
      %p430 = scmp.ne.s32.totalorder %s415, %s429
      %p431 = scmp.eq.s32.totalorder %s44, 0
      %p432 = por %p430, %p431
      %s434 = sadd.s32 %s433, 1
      %p437 = scmp.eq.s32.totalorder %s38, 3
      %p438 = scmp.ne.s32.totalorder %s433, %s435
      %p439 = scmp.eq.s32.totalorder %s38, 0
      %p440 = por %p438, %p439
      %p441 = scmp.ne.s32.totalorder %s433, %s435
      %p442 = scmp.eq.s32.totalorder %s43, 3
      %p443 = por %p441, %p442
      %p444 = scmp.ne.s32.totalorder %s435, %s436
      %p445 = scmp.eq.s32.totalorder %s43, 0
      %p446 = por %p444, %p445
      %p447 = scmp.ne.s32.totalorder %s435, %s436
      %p448 = scmp.eq.s32.totalorder %s44, 3
      %p449 = por %p447, %p448
      %p451 = scmp.ne.s32.totalorder %s436, %s450
      %p452 = scmp.eq.s32.totalorder %s44, 0
      %p453 = por %p451, %p452
      %s455 = sadd.s32 %s454, 1
      %p458 = scmp.eq.s32.totalorder %s38, 3
      %p459 = scmp.ne.s32.totalorder %s454, %s456
      %p460 = scmp.eq.s32.totalorder %s38, 0
      %p461 = por %p459, %p460
      %p462 = scmp.ne.s32.totalorder %s454, %s456
      %p463 = scmp.eq.s32.totalorder %s43, 3
      %p464 = por %p462, %p463
      %p465 = scmp.ne.s32.totalorder %s456, %s457
      %p466 = scmp.eq.s32.totalorder %s43, 0
      %p467 = por %p465, %p466
      %p468 = scmp.ne.s32.totalorder %s456, %s457
      %p469 = scmp.eq.s32.totalorder %s44, 3
      %p470 = por %p468, %p469
      %p472 = scmp.ne.s32.totalorder %s457, %s471
      %p473 = scmp.eq.s32.totalorder %s44, 0
      %p474 = por %p472, %p473
      %s476 = sadd.s32 %s475, 1
      %p479 = scmp.eq.s32.totalorder %s38, 3
      %p480 = scmp.ne.s32.totalorder %s475, %s477
      %p481 = scmp.eq.s32.totalorder %s38, 0
      %p482 = por %p480, %p481
      %p483 = scmp.ne.s32.totalorder %s475, %s477
      %p484 = scmp.eq.s32.totalorder %s43, 3
      %p485 = por %p483, %p484
      %p486 = scmp.ne.s32.totalorder %s477, %s478
      %p487 = scmp.eq.s32.totalorder %s43, 0
      %p488 = por %p486, %p487
      %p489 = scmp.ne.s32.totalorder %s477, %s478
      %p490 = scmp.eq.s32.totalorder %s44, 3
      %p491 = por %p489, %p490
      %p493 = scmp.ne.s32.totalorder %s478, %s492
      %p494 = scmp.eq.s32.totalorder %s44, 0
      %p495 = por %p493, %p494
      %s496 = ssub.s32 %s45, %s57
      %p497 = scmp.eq.s32.totalorder %s496, 0
      %s499 = sadd.s32 %s498, 1
      %s500 = scalar_select %p497, %s498, %s499
      %p503 = pneg %p497
      %p504 = scmp.eq.s32.totalorder %s38, 3
      %p505 = por %p503, %p504
      %p506 = scmp.ne.s32.totalorder %s498, %s501
      %p507 = scmp.eq.s32.totalorder %s38, 0
      %p508 = por %p506, %p507
      %p509 = scmp.ne.s32.totalorder %s498, %s501
      %p510 = scmp.eq.s32.totalorder %s43, 3
      %p511 = por %p509, %p510
      %p512 = scmp.ne.s32.totalorder %s501, %s502
      %p513 = scmp.eq.s32.totalorder %s43, 0
      %p514 = por %p512, %p513
      %p515 = scmp.ne.s32.totalorder %s501, %s502
      %p516 = scmp.eq.s32.totalorder %s44, 3
      %p517 = por %p515, %p516
      %p519 = scmp.ne.s32.totalorder %s502, %s518
      %p520 = scmp.eq.s32.totalorder %s44, 0
      %p521 = por %p519, %p520
      %p522 = scmp.le.s32.totalorder 1, %s38
      %p523 = scmp.lt.s32.totalorder %s38, 5
      %p524 = pnand %p522, %p523
      %p525 = pneg %p524
      // Predicated region
      $region9: #{tpu_custom_call.1} parent=5 // pred_check
        _
      $region10: #{tpu_custom_call.1} parent=5 // pred_check_branch
        %527 = sbr.rel (%p524) target = $region12
      $region11: #{tpu_custom_call.1} parent=5 // pred_region
        %s528 = ssub.s32 %s38, 1
        // Predicated region
        $region13: #{tpu_custom_call.1} parent=11 // pred_check
          %p529 = pneg %p97
        $region14: #{tpu_custom_call.1} parent=11 // pred_check_branch
          %531 = sbr.rel (%p529) target = $region16
        $region15: #{tpu_custom_call.1} parent=11 // pred_region
          %s533 = ssub.s32 1024, 1024
          %534 = vsyncadd [#allocation7], %s533
          %s535 = sshll.u32 [#allocation6], 4
          %s536 = int_to_ptr.vmem [resolvable:$true] %s535
          %541 = dma.hbm_to_vmem [thread:$0]  %s1, 1024, %s536, [#allocation7], 64, 64, 4
        $region16: #{tpu_custom_call.1} parent=11 // pred_fallthru
          _
        // Predicated region
        $region17: #{tpu_custom_call.1} parent=11 // pred_check
          %p542 = pneg %p118
        $region18: #{tpu_custom_call.1} parent=11 // pred_check_branch
          %544 = sbr.rel (%p542) target = $region20
        $region19: #{tpu_custom_call.1} parent=11 // pred_region
          %s546 = ssub.s32 384, 384
          %547 = vsyncadd [#allocation7], %s546
          %s548 = sshll.u32 [#allocation8], 4
          %s549 = int_to_ptr.vmem [resolvable:$true] %s548
          %554 = dma.hbm_to_vmem [thread:$0]  %s2, 384, %s549, [#allocation7], 128, 128, 8
        $region20: #{tpu_custom_call.1} parent=11 // pred_fallthru
          _
        // Predicated region
        $region21: #{tpu_custom_call.1} parent=11 // pred_check
          %p555 = pneg %p425
        $region22: #{tpu_custom_call.1} parent=11 // pred_check_branch
          %557 = sbr.rel (%p555) target = $region24
        $region23: #{tpu_custom_call.1} parent=11 // pred_region
          _
        $region24: #{tpu_custom_call.1} parent=11 // pred_fallthru
          _
        // Predicated region
        $region25: #{tpu_custom_call.1} parent=11 // pred_check
          %p558 = pneg %p446
        $region26: #{tpu_custom_call.1} parent=11 // pred_check_branch
          %560 = sbr.rel (%p558) target = $region28
        $region27: #{tpu_custom_call.1} parent=11 // pred_region
          _
        $region28: #{tpu_custom_call.1} parent=11 // pred_fallthru
          _
        // Predicated region
        $region29: #{tpu_custom_call.1} parent=11 // pred_check
          %p561 = pneg %p467
        $region30: #{tpu_custom_call.1} parent=11 // pred_check_branch
          %563 = sbr.rel (%p561) target = $region32
        $region31: #{tpu_custom_call.1} parent=11 // pred_region
          %s565 = ssub.s32 1024, 1024
          %566 = vsyncadd [#allocation16], %s565
          %s567 = sshll.u32 [#allocation15], 4
          %s568 = int_to_ptr.vmem [resolvable:$true] %s567
          %573 = dma.hbm_to_vmem [thread:$0]  %s16, 1024, %s568, [#allocation16], 64, 64, 4
        $region32: #{tpu_custom_call.1} parent=11 // pred_fallthru
          _
        // Predicated region
        $region33: #{tpu_custom_call.1} parent=11 // pred_check
          %p574 = pneg %p488
        $region34: #{tpu_custom_call.1} parent=11 // pred_check_branch
          %576 = sbr.rel (%p574) target = $region36
        $region35: #{tpu_custom_call.1} parent=11 // pred_region
          _
        $region36: #{tpu_custom_call.1} parent=11 // pred_fallthru
          _
      $region12: #{tpu_custom_call.1} parent=5 // pred_fallthru
        _
      %p577 = scmp.lt.s32.totalorder %s38, 4
      // Predicated region
      $region37: #{tpu_custom_call.1} parent=5 // pred_check
        %p578 = pneg %p577
      $region38: #{tpu_custom_call.1} parent=5 // pred_check_branch
        %580 = sbr.rel (%p578) target = $region40
      $region39: #{tpu_custom_call.1} parent=5 // pred_region
        // Predicated region
        $region41: #{tpu_custom_call.1} parent=39 // pred_check
          %p581 = pneg %p70
        $region42: #{tpu_custom_call.1} parent=39 // pred_check_branch
          %583 = sbr.rel (%p581) target = $region44
        $region43: #{tpu_custom_call.1} parent=39 // pred_region
          %s584 = sand.u32 %s60, 1
          %s585 = scalar_lea.sflag [#allocation4], %s584
          %s586 = sand.u32 %s60, 1
          %s587 = smul.addr %s586, 12
          %s588 = scalar_lea.vmem [#allocation3], %s587
          %s590 = ssub.s32 192, 192
          %591 = vsyncadd %s585, %s590
          %s592 = smul.addr %s45, 3
          %s593 = smul.addr %s592, 64
          %s594 = scalar_lea.hbm %s0, %s593
          %s595 = sshll.u32 %s588, 4
          %s596 = int_to_ptr.vmem [resolvable:$true] %s595
          %601 = dma.hbm_to_vmem [thread:$0]  %s594, 192, %s596, %s585, 64, 64, 4
        $region44: #{tpu_custom_call.1} parent=39 // pred_fallthru
          _
        // Predicated region
        $region45: #{tpu_custom_call.1} parent=39 // pred_check
          %p602 = pneg %p138
        $region46: #{tpu_custom_call.1} parent=39 // pred_check_branch
          %604 = sbr.rel (%p602) target = $region48
        $region47: #{tpu_custom_call.1} parent=39 // pred_region
          %p605 = scmp.lt.s32.totalorder %s46, 1
          %s606 = scalar_select %p605, %s46, 1
          %s607 = scalar_lea.vmem %s3, %s606
        $region48: #{tpu_custom_call.1} parent=39 // pred_fallthru
          _
        // Predicated region
        $region49: #{tpu_custom_call.1} parent=39 // pred_check
          %p608 = pneg %p164
        $region50: #{tpu_custom_call.1} parent=39 // pred_check_branch
          %610 = sbr.rel (%p608) target = $region52
        $region51: #{tpu_custom_call.1} parent=39 // pred_region
          %p611 = scmp.lt.s32.totalorder %s46, 1
          %s612 = scalar_select %p611, %s46, 1
          %s613 = scalar_lea.vmem %s4, %s612
        $region52: #{tpu_custom_call.1} parent=39 // pred_fallthru
          _
        // Predicated region
        $region53: #{tpu_custom_call.1} parent=39 // pred_check
          %p614 = pneg %p190
        $region54: #{tpu_custom_call.1} parent=39 // pred_check_branch
          %616 = sbr.rel (%p614) target = $region56
        $region55: #{tpu_custom_call.1} parent=39 // pred_region
          %s617 = sand.u32 %s38, 1
          %s618 = scalar_lea.sflag [#allocation10], %s617
          %s619 = sand.u32 %s180, 1
          %s620 = smul.addr %s619, 768
          %s621 = scalar_lea.vmem [#allocation9], %s620
          %s623 = ssub.s32 12288, 12288
          %624 = vsyncadd %s618, %s623
          %s625 = smul.addr %s46, 192
          %s626 = smul.addr %s625, 64
          %s627 = scalar_lea.hbm %s5, %s626
          %s628 = sshll.u32 %s621, 4
          %s629 = int_to_ptr.vmem [resolvable:$true] %s628
          %634 = dma.hbm_to_vmem [thread:$0]  %s627, 12288, %s629, %s618, 768, 768, 48
        $region56: #{tpu_custom_call.1} parent=39 // pred_fallthru
          _
        // Predicated region
        $region57: #{tpu_custom_call.1} parent=39 // pred_check
          %p635 = pneg %p216
        $region58: #{tpu_custom_call.1} parent=39 // pred_check_branch
          %637 = sbr.rel (%p635) target = $region60
        $region59: #{tpu_custom_call.1} parent=39 // pred_region
          %s638 = sand.u32 %s38, 1
          %s639 = scalar_lea.sflag [#allocation10], %s638
          %s640 = sand.u32 %s206, 1
          %s641 = smul.addr %s640, 256
          %s642 = scalar_lea.vmem [#allocation11], %s641
          %s644 = ssub.s32 4096, 4096
          %645 = vsyncadd %s639, %s644
          %s646 = smul.addr %s46, 64
          %s647 = smul.addr %s646, 64
          %s648 = scalar_lea.hbm %s6, %s647
          %s649 = sshll.u32 %s642, 4
          %s650 = int_to_ptr.vmem [resolvable:$true] %s649
          %655 = dma.hbm_to_vmem [thread:$0]  %s648, 4096, %s650, %s639, 64, 64, 4
        $region60: #{tpu_custom_call.1} parent=39 // pred_fallthru
          _
        // Predicated region
        $region61: #{tpu_custom_call.1} parent=39 // pred_check
          %p656 = pneg %p242
        $region62: #{tpu_custom_call.1} parent=39 // pred_check_branch
          %658 = sbr.rel (%p656) target = $region64
        $region63: #{tpu_custom_call.1} parent=39 // pred_region
          %p659 = scmp.lt.s32.totalorder %s46, 1
          %s660 = scalar_select %p659, %s46, 1
          %s661 = scalar_lea.vmem %s7, %s660
        $region64: #{tpu_custom_call.1} parent=39 // pred_fallthru
          _
        // Predicated region
        $region65: #{tpu_custom_call.1} parent=39 // pred_check
          %p662 = pneg %p268
        $region66: #{tpu_custom_call.1} parent=39 // pred_check_branch
          %664 = sbr.rel (%p662) target = $region68
        $region67: #{tpu_custom_call.1} parent=39 // pred_region
          %p665 = scmp.lt.s32.totalorder %s46, 1
          %s666 = scalar_select %p665, %s46, 1
          %s667 = scalar_lea.vmem %s8, %s666
        $region68: #{tpu_custom_call.1} parent=39 // pred_fallthru
          _
        // Predicated region
        $region69: #{tpu_custom_call.1} parent=39 // pred_check
          %p668 = pneg %p294
        $region70: #{tpu_custom_call.1} parent=39 // pred_check_branch
          %670 = sbr.rel (%p668) target = $region72
        $region71: #{tpu_custom_call.1} parent=39 // pred_region
          %p671 = scmp.lt.s32.totalorder %s46, 1
          %s672 = scalar_select %p671, %s46, 1
          %s673 = scalar_lea.vmem %s9, %s672
        $region72: #{tpu_custom_call.1} parent=39 // pred_fallthru
          _
        // Predicated region
        $region73: #{tpu_custom_call.1} parent=39 // pred_check
          %p674 = pneg %p320
        $region74: #{tpu_custom_call.1} parent=39 // pred_check_branch
          %676 = sbr.rel (%p674) target = $region76
        $region75: #{tpu_custom_call.1} parent=39 // pred_region
          %s677 = sand.u32 %s38, 1
          %s678 = scalar_lea.sflag [#allocation13], %s677
          %s679 = sand.u32 %s310, 1
          %s680 = smul.addr %s679, 64
          %s681 = scalar_lea.vmem [#allocation12], %s680
          %s683 = ssub.s32 1024, 1024
          %684 = vsyncadd %s678, %s683
          %s685 = smul.addr %s46, 16
          %s686 = smul.addr %s685, 64
          %s687 = scalar_lea.hbm %s10, %s686
          %s688 = sshll.u32 %s681, 4
          %s689 = int_to_ptr.vmem [resolvable:$true] %s688
          %694 = dma.hbm_to_vmem [thread:$0]  %s687, 1024, %s689, %s678, 64, 64, 4
        $region76: #{tpu_custom_call.1} parent=39 // pred_fallthru
          _
        // Predicated region
        $region77: #{tpu_custom_call.1} parent=39 // pred_check
          %p695 = pneg %p346
        $region78: #{tpu_custom_call.1} parent=39 // pred_check_branch
          %697 = sbr.rel (%p695) target = $region80
        $region79: #{tpu_custom_call.1} parent=39 // pred_region
          %p698 = scmp.lt.s32.totalorder %s46, 1
          %s699 = scalar_select %p698, %s46, 1
          %s700 = scalar_lea.vmem %s11, %s699
        $region80: #{tpu_custom_call.1} parent=39 // pred_fallthru
          _
        // Predicated region
        $region81: #{tpu_custom_call.1} parent=39 // pred_check
          %p701 = pneg %p372
        $region82: #{tpu_custom_call.1} parent=39 // pred_check_branch
          %703 = sbr.rel (%p701) target = $region84
        $region83: #{tpu_custom_call.1} parent=39 // pred_region
          %s704 = sand.u32 %s38, 1
          %s705 = scalar_lea.sflag [#allocation13], %s704
          %s706 = sand.u32 %s362, 1
          %s707 = smul.addr %s706, 64
          %s708 = scalar_lea.vmem [#allocation14], %s707
          %s710 = ssub.s32 1024, 1024
          %711 = vsyncadd %s705, %s710
          %s712 = smul.addr %s46, 16
          %s713 = smul.addr %s712, 64
          %s714 = scalar_lea.hbm %s12, %s713
          %s715 = sshll.u32 %s708, 4
          %s716 = int_to_ptr.vmem [resolvable:$true] %s715
          %721 = dma.hbm_to_vmem [thread:$0]  %s714, 1024, %s716, %s705, 64, 64, 4
        $region84: #{tpu_custom_call.1} parent=39 // pred_fallthru
          _
        // Predicated region
        $region85: #{tpu_custom_call.1} parent=39 // pred_check
          %p722 = pneg %p398
        $region86: #{tpu_custom_call.1} parent=39 // pred_check_branch
          %724 = sbr.rel (%p722) target = $region88
        $region87: #{tpu_custom_call.1} parent=39 // pred_region
          %p725 = scmp.lt.s32.totalorder %s46, 1
          %s726 = scalar_select %p725, %s46, 1
          %s727 = scalar_lea.vmem %s13, %s726
        $region88: #{tpu_custom_call.1} parent=39 // pred_fallthru
          _
      $region40: #{tpu_custom_call.1} parent=5 // pred_fallthru
        _
      %p728 = scmp.le.s32.totalorder 1, %s38
      %p729 = scmp.lt.s32.totalorder %s38, 5
      %p730 = pnand %p728, %p729
      %p731 = pneg %p730
      // Predicated region
      $region89: #{tpu_custom_call.1} parent=5 // pred_check
        _
      $region90: #{tpu_custom_call.1} parent=5 // pred_check_branch
        %733 = sbr.rel (%p730) target = $region92
      $region91: #{tpu_custom_call.1} parent=5 // pred_region
        %s734 = ssub.s32 %s38, 1
        %s735 = sand.u32 %s63, 1
        %s736 = scalar_lea.sflag [#allocation4], %s735
        %s737 = sand.u32 %s63, 1
        %s738 = smul.addr %s737, 12
        %s739 = scalar_lea.vmem [#allocation3], %s738
        // Predicated region
        $region93: #{tpu_custom_call.1} parent=91 // pred_check
          %p740 = pneg %p76
        $region94: #{tpu_custom_call.1} parent=91 // pred_check_branch
          %742 = sbr.rel (%p740) target = $region96
        $region95: #{tpu_custom_call.1} parent=91 // pred_region
          %743 = dma.done %s736, 192
        $region96: #{tpu_custom_call.1} parent=91 // pred_fallthru
          _
        // Predicated region
        $region97: #{tpu_custom_call.1} parent=91 // pred_check
          %p744 = pneg %p97
        $region98: #{tpu_custom_call.1} parent=91 // pred_check_branch
          %746 = sbr.rel (%p744) target = $region100
        $region99: #{tpu_custom_call.1} parent=91 // pred_region
          %747 = dma.done [#allocation7], 1024
        $region100: #{tpu_custom_call.1} parent=91 // pred_fallthru
          _
        // Predicated region
        $region101: #{tpu_custom_call.1} parent=91 // pred_check
          %p748 = pneg %p118
        $region102: #{tpu_custom_call.1} parent=91 // pred_check_branch
          %750 = sbr.rel (%p748) target = $region104
        $region103: #{tpu_custom_call.1} parent=91 // pred_region
          %751 = dma.done [#allocation7], 384
        $region104: #{tpu_custom_call.1} parent=91 // pred_fallthru
          _
        %s752 = sand.u32 %s43, 1
        %s753 = scalar_lea.sflag [#allocation10], %s752
        %s754 = sand.u32 %s183, 1
        %s755 = smul.addr %s754, 768
        %s756 = scalar_lea.vmem [#allocation9], %s755
        // Predicated region
        $region105: #{tpu_custom_call.1} parent=91 // pred_check
          %p757 = pneg %p196
        $region106: #{tpu_custom_call.1} parent=91 // pred_check_branch
          %759 = sbr.rel (%p757) target = $region108
        $region107: #{tpu_custom_call.1} parent=91 // pred_region
          %760 = dma.done %s753, 12288
        $region108: #{tpu_custom_call.1} parent=91 // pred_fallthru
          _
        %s761 = sand.u32 %s43, 1
        %s762 = scalar_lea.sflag [#allocation10], %s761
        %s763 = sand.u32 %s209, 1
        %s764 = smul.addr %s763, 256
        %s765 = scalar_lea.vmem [#allocation11], %s764
        // Predicated region
        $region109: #{tpu_custom_call.1} parent=91 // pred_check
          %p766 = pneg %p222
        $region110: #{tpu_custom_call.1} parent=91 // pred_check_branch
          %768 = sbr.rel (%p766) target = $region112
        $region111: #{tpu_custom_call.1} parent=91 // pred_region
          %769 = dma.done %s762, 4096
        $region112: #{tpu_custom_call.1} parent=91 // pred_fallthru
          _
        %s770 = sand.u32 %s43, 1
        %s771 = scalar_lea.sflag [#allocation13], %s770
        %s772 = sand.u32 %s313, 1
        %s773 = smul.addr %s772, 64
        %s774 = scalar_lea.vmem [#allocation12], %s773
        // Predicated region
        $region113: #{tpu_custom_call.1} parent=91 // pred_check
          %p775 = pneg %p326
        $region114: #{tpu_custom_call.1} parent=91 // pred_check_branch
          %777 = sbr.rel (%p775) target = $region116
        $region115: #{tpu_custom_call.1} parent=91 // pred_region
          %778 = dma.done %s771, 1024
        $region116: #{tpu_custom_call.1} parent=91 // pred_fallthru
          _
        %s779 = sand.u32 %s43, 1
        %s780 = scalar_lea.sflag [#allocation13], %s779
        %s781 = sand.u32 %s365, 1
        %s782 = smul.addr %s781, 64
        %s783 = scalar_lea.vmem [#allocation14], %s782
        // Predicated region
        $region117: #{tpu_custom_call.1} parent=91 // pred_check
          %p784 = pneg %p378
        $region118: #{tpu_custom_call.1} parent=91 // pred_check_branch
          %786 = sbr.rel (%p784) target = $region120
        $region119: #{tpu_custom_call.1} parent=91 // pred_region
          %787 = dma.done %s780, 1024
        $region120: #{tpu_custom_call.1} parent=91 // pred_fallthru
          _
        // Predicated region
        $region121: #{tpu_custom_call.1} parent=91 // pred_check
          %p788 = pneg %p467
        $region122: #{tpu_custom_call.1} parent=91 // pred_check_branch
          %790 = sbr.rel (%p788) target = $region124
        $region123: #{tpu_custom_call.1} parent=91 // pred_region
          %791 = dma.done [#allocation16], 1024
        $region124: #{tpu_custom_call.1} parent=91 // pred_fallthru
          _
        %s792 = sand.u32 %s63, 1
        %s793 = scalar_lea.sflag [#allocation4], %s792
        %s794 = sand.u32 %s63, 1
        %s795 = smul.addr %s794, 12
        %s796 = scalar_lea.vmem [#allocation3], %s795
        %p797 = pneg %p76
        %p798 = pneg %p73
        %p799 = pneg %p97
        %p800 = pneg %p94
        %p801 = pneg %p118
        %p802 = pneg %p115
        %p803 = scmp.lt.s32.totalorder %s48, 1
        %s804 = scalar_select %p803, %s48, 1
        %s805 = scalar_lea.vmem %s3, %s804
        %p806 = pneg %p144
        %p807 = pneg %p141
        %p808 = scmp.lt.s32.totalorder %s48, 1
        %s809 = scalar_select %p808, %s48, 1
        %s810 = scalar_lea.vmem %s4, %s809
        %p811 = pneg %p170
        %p812 = pneg %p167
        %s813 = sand.u32 %s43, 1
        %s814 = scalar_lea.sflag [#allocation10], %s813
        %s815 = sand.u32 %s183, 1
        %s816 = smul.addr %s815, 768
        %s817 = scalar_lea.vmem [#allocation9], %s816
        %p818 = pneg %p196
        %p819 = pneg %p193
        %s820 = sand.u32 %s43, 1
        %s821 = scalar_lea.sflag [#allocation10], %s820
        %s822 = sand.u32 %s209, 1
        %s823 = smul.addr %s822, 256
        %s824 = scalar_lea.vmem [#allocation11], %s823
        %p825 = pneg %p222
        %p826 = pneg %p219
        %p827 = scmp.lt.s32.totalorder %s48, 1
        %s828 = scalar_select %p827, %s48, 1
        %s829 = scalar_lea.vmem %s7, %s828
        %p830 = pneg %p248
        %p831 = pneg %p245
        %p832 = scmp.lt.s32.totalorder %s48, 1
        %s833 = scalar_select %p832, %s48, 1
        %s834 = scalar_lea.vmem %s8, %s833
        %p835 = pneg %p274
        %p836 = pneg %p271
        %p837 = scmp.lt.s32.totalorder %s48, 1
        %s838 = scalar_select %p837, %s48, 1
        %s839 = scalar_lea.vmem %s9, %s838
        %p840 = pneg %p300
        %p841 = pneg %p297
        %s842 = sand.u32 %s43, 1
        %s843 = scalar_lea.sflag [#allocation13], %s842
        %s844 = sand.u32 %s313, 1
        %s845 = smul.addr %s844, 64
        %s846 = scalar_lea.vmem [#allocation12], %s845
        %p847 = pneg %p326
        %p848 = pneg %p323
        %p849 = scmp.lt.s32.totalorder %s48, 1
        %s850 = scalar_select %p849, %s48, 1
        %s851 = scalar_lea.vmem %s11, %s850
        %p852 = pneg %p352
        %p853 = pneg %p349
        %s854 = sand.u32 %s43, 1
        %s855 = scalar_lea.sflag [#allocation13], %s854
        %s856 = sand.u32 %s365, 1
        %s857 = smul.addr %s856, 64
        %s858 = scalar_lea.vmem [#allocation14], %s857
        %p859 = pneg %p378
        %p860 = pneg %p375
        %p861 = scmp.lt.s32.totalorder %s48, 1
        %s862 = scalar_select %p861, %s48, 1
        %s863 = scalar_lea.vmem %s13, %s862
        %p864 = pneg %p404
        %p865 = pneg %p401
        %p866 = pneg %p425
        %p867 = pneg %p422
        %p868 = pneg %p446
        %p869 = pneg %p443
        %p870 = pneg %p467
        %p871 = pneg %p464
        %p872 = pneg %p488
        %p873 = pneg %p485
        %p874 = pneg %p514
        %p875 = pneg %p511
        %s876 = sand.u32 %s501, 1
        %s877 = scalar_lea.sflag [#allocation5], %s876
        %s878 = sand.u32 %s501, 1
        %s879 = scalar_lea.vmem [#allocation17], %s878
        %p880 = scmp.lt.s32.totalorder %s48, 1
        %s881 = scalar_select %p880, %s48, 1
        %s882 = scalar_lea.vmem %s3, %s881
        %p883 = scmp.lt.s32.totalorder %s48, 1
        %s884 = scalar_select %p883, %s48, 1
        %s885 = scalar_lea.vmem %s4, %s884
        %p886 = scmp.lt.s32.totalorder %s48, 1
        %s887 = scalar_select %p886, %s48, 1
        %s888 = scalar_lea.vmem %s7, %s887
        %p889 = scmp.lt.s32.totalorder %s48, 1
        %s890 = scalar_select %p889, %s48, 1
        %s891 = scalar_lea.vmem %s8, %s890
        %p892 = scmp.lt.s32.totalorder %s48, 1
        %s893 = scalar_select %p892, %s48, 1
        %s894 = scalar_lea.vmem %s9, %s893
        %p895 = scmp.lt.s32.totalorder %s48, 1
        %s896 = scalar_select %p895, %s48, 1
        %s897 = scalar_lea.vmem %s11, %s896
        %p898 = scmp.lt.s32.totalorder %s48, 1
        %s899 = scalar_select %p898, %s48, 1
        %s900 = scalar_lea.vmem %s13, %s899
        %p902 = scmp.eq.s32.totalorder %s48, 0
        // Predicated region
        $region125: #{tpu_custom_call.1} parent=91 // pred_check
          %p903 = pneg %p902
        $region126: #{tpu_custom_call.1} parent=91 // pred_check_branch
          %905 = sbr.rel (%p903) target = $region128
        $region127: #{tpu_custom_call.1} parent=91 // pred_region
          %v906 = vld [vmem:[%s739] sm:$0xf]
          %v907 = vld [vmem:[%s739 + $0x4] sm:$0xf]
          %v908 = vld [vmem:[%s739 + $0x8] sm:$0xf]
          %v909 = vld [vmem:[#allocation6] sm:$0xf]
          %v910 = vld [vmem:[#allocation6 + $0x4] sm:$0xf]
          %v911 = vld [vmem:[#allocation6 + $0x8] sm:$0xf]
          %v912 = vld [vmem:[#allocation6 + $0xc] sm:$0xf]
          %v913 = vld [vmem:[#allocation6 + $0x10] sm:$0xf]
          %v914 = vld [vmem:[#allocation6 + $0x14] sm:$0xf]
          %v915 = vld [vmem:[#allocation6 + $0x18] sm:$0xf]
          %v916 = vld [vmem:[#allocation6 + $0x1c] sm:$0xf]
          %v917 = vld [vmem:[#allocation6 + $0x20] sm:$0xf]
          %v918 = vld [vmem:[#allocation6 + $0x24] sm:$0xf]
          %v919 = vld [vmem:[#allocation6 + $0x28] sm:$0xf]
          %v920 = vld [vmem:[#allocation6 + $0x2c] sm:$0xf]
          %v921 = vld [vmem:[#allocation6 + $0x30] sm:$0xf]
          %v922 = vld [vmem:[#allocation6 + $0x34] sm:$0xf]
          %v923 = vld [vmem:[#allocation6 + $0x38] sm:$0xf]
          %v924 = vld [vmem:[#allocation6 + $0x3c] sm:$0xf]
          %v925 = vld [vmem:[#allocation8] sm:$0xff]
          %v926 = vld [vmem:[#allocation8 + $0x8] sm:$0xff]
          %v927 = vld [vmem:[#allocation8 + $0x10] sm:$0xff]
          %v931 = vunpack.c.l.b16 %v906
          %v932 = vunpack.c.l.b16 %v907
          %v933 = vunpack.c.l.b16 %v908
          %v934 = vpack.c.b16 %v932, %v931
          %v935 = vpack.c.b16 %v933, %v933
          %v954 = vunpack.c.l.b16 %v909
          %v955 = vunpack.c.l.b16 %v910
          %v956 = vunpack.c.l.b16 %v911
          %v957 = vunpack.c.l.b16 %v912
          %v958 = vunpack.c.l.b16 %v913
          %v959 = vunpack.c.l.b16 %v914
          %v960 = vunpack.c.l.b16 %v915
          %v961 = vunpack.c.l.b16 %v916
          %v962 = vunpack.c.l.b16 %v917
          %v963 = vunpack.c.l.b16 %v918
          %v964 = vunpack.c.l.b16 %v919
          %v965 = vunpack.c.l.b16 %v920
          %v966 = vunpack.c.l.b16 %v921
          %v967 = vunpack.c.l.b16 %v922
          %v968 = vunpack.c.l.b16 %v923
          %v969 = vunpack.c.l.b16 %v924
          %v970 = vpack.c.b16 %v955, %v954
          %v971 = vpack.c.b16 %v957, %v956
          %v972 = vpack.c.b16 %v959, %v958
          %v973 = vpack.c.b16 %v961, %v960
          %v974 = vpack.c.b16 %v963, %v962
          %v975 = vpack.c.b16 %v965, %v964
          %v976 = vpack.c.b16 %v967, %v966
          %v977 = vpack.c.b16 %v969, %v968
          %986 = vmatprep.subr.bf16.mxu0 0
          %987 = vmatpush1.bf16.msra.mxu0 %v970
          %988 = vmatprep.subr.bf16.mxu0 0
          %989 = vmatpush1.bf16.msra.mxu0 %v971
          %990 = vmatprep.subr.bf16.mxu0 0
          %991 = vmatpush1.bf16.msra.mxu0 %v972
          %992 = vmatprep.subr.bf16.mxu0 0
          %993 = vmatpush1.bf16.msra.mxu0 %v973
          %994 = vmatprep.subr.bf16.mxu0 0
          %995 = vmatpush1.bf16.msra.mxu0 %v974
          %996 = vmatprep.subr.bf16.mxu0 0
          %997 = vmatpush1.bf16.msra.mxu0 %v975
          %998 = vmatprep.subr.bf16.mxu0 0
          %999 = vmatpush1.bf16.msra.mxu0 %v976
          %1000 = vmatprep.subr.bf16.mxu0 0
          %1001 = vmatpush1.bf16.msra.mxu0 %v977
          %1002 = vmatprep.subr.bf16.mxu0 0
          %1003 = vmatpush1.bf16.msra.mxu0 0
          %1004 = vmatprep.subr.bf16.mxu0 0
          %1005 = vmatpush1.bf16.msra.mxu0 0
          %1006 = vmatprep.subr.bf16.mxu0 0
          %1007 = vmatpush1.bf16.msra.mxu0 0
          %1008 = vmatprep.subr.bf16.mxu0 0
          %1009 = vmatpush1.bf16.msra.mxu0 0
          %1010 = vmatprep.subr.bf16.mxu0 0
          %1011 = vmatpush1.bf16.msra.mxu0 0
          %1012 = vmatprep.subr.bf16.mxu0 0
          %1013 = vmatpush1.bf16.msra.mxu0 0
          %1014 = vmatprep.subr.bf16.mxu0 0
          %1015 = vmatpush1.bf16.msra.mxu0 0
          %1016 = vmatprep.subr.bf16.mxu0 0
          %1017 = vmatpush1.bf16.msra.mxu0 0
          %1018 = vmatprep.mubr.bf16.mxu0 0
          %1019 = vmatmul.mubr.bf16.gmra.mrb[0].mxu0 %v934
          %v1020 = vpop.f32.mrb[0].mxu0
          %v1021 = vadd.f32 %v925, %v1020
          %v1022 = vpop.f32.mrb[0].mxu0
          %v1023 = vpop.f32.mrb[0].mxu0
          %v1024 = vadd.f32 %v926, %v1023
          %v1025 = vpop.f32.mrb[0].mxu0
          %1026 = vmatprep.mubr.bf16.mxu0 0
          %1027 = vmatmul.mubr.bf16.gmra.mrb[0].mxu0 %v935
          %v1028 = vpop.f32.mrb[0].mxu0
          %v1029 = vadd.f32 %v927, %v1028
          %v1030 = vpop.f32.mrb[0].mxu0
          %v1031 = vpop.f32.mrb[0].mxu0
          %v1032 = vpop.f32.mrb[0].mxu0
          %1033 = vdwg.mxu0
          %1034 = vst [vmem:[#allocation2] sm:$0xff] %v1021
          %1035 = vst [vmem:[#allocation2 + $0x8] sm:$0xff] %v1024
          %1036 = vst [vmem:[#allocation2 + $0x10] sm:$0xff] %v1029
        $region128: #{tpu_custom_call.1} parent=91 // pred_fallthru
          _
        %v1037 = vld [vmem:[#allocation2] sm:$0xff]
        %v1038 = vld [vmem:[#allocation2 + $0x8] sm:$0xff]
        %v1039 = vld [vmem:[#allocation2 + $0x10] sm:$0xff]
        %v1040 = vld [vmem:[%s882] sm:$0x1]
        %v1041 = vld [vmem:[%s885] sm:$0x1]
        %1042 = vadd.xlane.f32.xlu0 %v1037
        %v1043 = vpop.xlane.xlu0 %1042
        %1044 = vadd.xlane.f32.xlu0 %v1038
        %v1045 = vpop.xlane.xlu0 %1044
        %1046 = vadd.xlane.f32.xlu0 %v1039
        %v1047 = vpop.xlane.xlu0 %1046
        %v1048 = vmul.f32 %v1043, 0.03125
        %v1049 = vmul.f32 %v1045, 0.03125
        %v1050 = vmul.f32 %v1047, 0.03125
        %v1051 = vmul.f32 %v1037, %v1037
        %v1052 = vmul.f32 %v1038, %v1038
        %v1053 = vmul.f32 %v1039, %v1039
        %1054 = vadd.xlane.f32.xlu0 %v1051
        %v1055 = vpop.xlane.xlu0 %1054
        %1056 = vadd.xlane.f32.xlu0 %v1052
        %v1057 = vpop.xlane.xlu0 %1056
        %1058 = vadd.xlane.f32.xlu0 %v1053
        %v1059 = vpop.xlane.xlu0 %1058
        %v1060 = vmul.f32 %v1055, 0.03125
        %v1061 = vmul.f32 %v1057, 0.03125
        %v1062 = vmul.f32 %v1059, 0.03125
        %v1063 = vmul.f32 %v1048, %v1048
        %v1064 = vmul.f32 %v1049, %v1049
        %v1065 = vmul.f32 %v1050, %v1050
        %v1066 = vsub.f32 %v1060, %v1063
        %v1067 = vsub.f32 %v1061, %v1064
        %v1068 = vsub.f32 %v1062, %v1065
        %v1069 = vadd.f32 %v1066, 1e-05
        %v1070 = vadd.f32 %v1067, 1e-05
        %v1071 = vadd.f32 %v1068, 1e-05
        %v1072 = vrsqrt.pop %v1069
        %v1073 = vrsqrt.pop %v1070
        %v1074 = vrsqrt.pop %v1071
        %v1075 = vsub.f32 %v1037, %v1048
        %v1076 = vsub.f32 %v1038, %v1049
        %v1077 = vsub.f32 %v1039, %v1050
        %v1078 = vmul.f32 %v1075, %v1072
        %v1079 = vmul.f32 %v1076, %v1073
        %v1080 = vmul.f32 %v1077, %v1074
        %v1082 = vlaneseq
        %v1083 = vshrl.u32 %v1082, 7
        %v1084 = vsub.s32 0, %v1083
        %v1085 = vrot.slane %v1040, %v1084
        %v1087 = vmul.f32 %v1078, %v1085
        %v1088 = vmul.f32 %v1079, %v1085
        %v1089 = vmul.f32 %v1080, %v1085
        %v1091 = vlaneseq
        %v1092 = vshrl.u32 %v1091, 7
        %v1093 = vsub.s32 0, %v1092
        %v1094 = vrot.slane %v1041, %v1093
        %v1096 = vadd.f32 %v1087, %v1094
        %v1097 = vadd.f32 %v1088, %v1094
        %v1098 = vadd.f32 %v1089, %v1094
        %v1099 = vpack.c.bf16 %v1097, %v1096
        %v1100 = vpack.c.bf16 %v1098, %v1098
        %v1101 = vld [vmem:[%s756] sm:$0xff]
        %v1102 = vld [vmem:[%s756 + $0x8] sm:$0xff]
        %v1103 = vld [vmem:[%s756 + $0x10] sm:$0xff]
        %v1104 = vld [vmem:[%s756 + $0x18] sm:$0xff]
        %v1105 = vld [vmem:[%s756 + $0x20] sm:$0xff]
        %v1106 = vld [vmem:[%s756 + $0x28] sm:$0xff]
        %v1107 = vld [vmem:[%s756 + $0x30] sm:$0xff]
        %v1108 = vld [vmem:[%s756 + $0x38] sm:$0xff]
        %v1109 = vld [vmem:[%s756 + $0x40] sm:$0xff]
        %v1110 = vld [vmem:[%s756 + $0x48] sm:$0xff]
        %v1111 = vld [vmem:[%s756 + $0x50] sm:$0xff]
        %v1112 = vld [vmem:[%s756 + $0x58] sm:$0xff]
        %v1113 = vld [vmem:[%s756 + $0x60] sm:$0xff]
        %v1114 = vld [vmem:[%s756 + $0x68] sm:$0xff]
        %v1115 = vld [vmem:[%s756 + $0x70] sm:$0xff]
        %v1116 = vld [vmem:[%s756 + $0x78] sm:$0xff]
        %v1117 = vld [vmem:[%s756 + $0x80] sm:$0xff]
        %v1118 = vld [vmem:[%s756 + $0x88] sm:$0xff]
        %v1119 = vld [vmem:[%s756 + $0x90] sm:$0xff]
        %v1120 = vld [vmem:[%s756 + $0x98] sm:$0xff]
        %v1121 = vld [vmem:[%s756 + $0xa0] sm:$0xff]
        %v1122 = vld [vmem:[%s756 + $0xa8] sm:$0xff]
        %v1123 = vld [vmem:[%s756 + $0xb0] sm:$0xff]
        %v1124 = vld [vmem:[%s756 + $0xb8] sm:$0xff]
        %v1125 = vld [vmem:[%s756 + $0xc0] sm:$0xff]
        %v1126 = vld [vmem:[%s756 + $0xc8] sm:$0xff]
        %v1127 = vld [vmem:[%s756 + $0xd0] sm:$0xff]
        %v1128 = vld [vmem:[%s756 + $0xd8] sm:$0xff]
        %v1129 = vld [vmem:[%s756 + $0xe0] sm:$0xff]
        %v1130 = vld [vmem:[%s756 + $0xe8] sm:$0xff]
        %v1131 = vld [vmem:[%s756 + $0xf0] sm:$0xff]
        %v1132 = vld [vmem:[%s756 + $0xf8] sm:$0xff]
        %v1133 = vld [vmem:[%s756 + $0x100] sm:$0xff]
        %v1134 = vld [vmem:[%s756 + $0x108] sm:$0xff]
        %v1135 = vld [vmem:[%s756 + $0x110] sm:$0xff]
        %v1136 = vld [vmem:[%s756 + $0x118] sm:$0xff]
        %v1137 = vld [vmem:[%s756 + $0x120] sm:$0xff]
        %v1138 = vld [vmem:[%s756 + $0x128] sm:$0xff]
        %v1139 = vld [vmem:[%s756 + $0x130] sm:$0xff]
        %v1140 = vld [vmem:[%s756 + $0x138] sm:$0xff]
        %v1141 = vld [vmem:[%s756 + $0x140] sm:$0xff]
        %v1142 = vld [vmem:[%s756 + $0x148] sm:$0xff]
        %v1143 = vld [vmem:[%s756 + $0x150] sm:$0xff]
        %v1144 = vld [vmem:[%s756 + $0x158] sm:$0xff]
        %v1145 = vld [vmem:[%s756 + $0x160] sm:$0xff]
        %v1146 = vld [vmem:[%s756 + $0x168] sm:$0xff]
        %v1147 = vld [vmem:[%s756 + $0x170] sm:$0xff]
        %v1148 = vld [vmem:[%s756 + $0x178] sm:$0xff]
        %v1149 = vld [vmem:[%s756 + $0x180] sm:$0xff]
        %v1150 = vld [vmem:[%s756 + $0x188] sm:$0xff]
        %v1151 = vld [vmem:[%s756 + $0x190] sm:$0xff]
        %v1152 = vld [vmem:[%s756 + $0x198] sm:$0xff]
        %v1153 = vld [vmem:[%s756 + $0x1a0] sm:$0xff]
        %v1154 = vld [vmem:[%s756 + $0x1a8] sm:$0xff]
        %v1155 = vld [vmem:[%s756 + $0x1b0] sm:$0xff]
        %v1156 = vld [vmem:[%s756 + $0x1b8] sm:$0xff]
        %v1157 = vld [vmem:[%s756 + $0x1c0] sm:$0xff]
        %v1158 = vld [vmem:[%s756 + $0x1c8] sm:$0xff]
        %v1159 = vld [vmem:[%s756 + $0x1d0] sm:$0xff]
        %v1160 = vld [vmem:[%s756 + $0x1d8] sm:$0xff]
        %v1161 = vld [vmem:[%s756 + $0x1e0] sm:$0xff]
        %v1162 = vld [vmem:[%s756 + $0x1e8] sm:$0xff]
        %v1163 = vld [vmem:[%s756 + $0x1f0] sm:$0xff]
        %v1164 = vld [vmem:[%s756 + $0x1f8] sm:$0xff]
        %v1165 = vld [vmem:[%s756 + $0x200] sm:$0xff]
        %v1166 = vld [vmem:[%s756 + $0x208] sm:$0xff]
        %v1167 = vld [vmem:[%s756 + $0x210] sm:$0xff]
        %v1168 = vld [vmem:[%s756 + $0x218] sm:$0xff]
        %v1169 = vld [vmem:[%s756 + $0x220] sm:$0xff]
        %v1170 = vld [vmem:[%s756 + $0x228] sm:$0xff]
        %v1171 = vld [vmem:[%s756 + $0x230] sm:$0xff]
        %v1172 = vld [vmem:[%s756 + $0x238] sm:$0xff]
        %v1173 = vld [vmem:[%s756 + $0x240] sm:$0xff]
        %v1174 = vld [vmem:[%s756 + $0x248] sm:$0xff]
        %v1175 = vld [vmem:[%s756 + $0x250] sm:$0xff]
        %v1176 = vld [vmem:[%s756 + $0x258] sm:$0xff]
        %v1177 = vld [vmem:[%s756 + $0x260] sm:$0xff]
        %v1178 = vld [vmem:[%s756 + $0x268] sm:$0xff]
        %v1179 = vld [vmem:[%s756 + $0x270] sm:$0xff]
        %v1180 = vld [vmem:[%s756 + $0x278] sm:$0xff]
        %v1181 = vld [vmem:[%s756 + $0x280] sm:$0xff]
        %v1182 = vld [vmem:[%s756 + $0x288] sm:$0xff]
        %v1183 = vld [vmem:[%s756 + $0x290] sm:$0xff]
        %v1184 = vld [vmem:[%s756 + $0x298] sm:$0xff]
        %v1185 = vld [vmem:[%s756 + $0x2a0] sm:$0xff]
        %v1186 = vld [vmem:[%s756 + $0x2a8] sm:$0xff]
        %v1187 = vld [vmem:[%s756 + $0x2b0] sm:$0xff]
        %v1188 = vld [vmem:[%s756 + $0x2b8] sm:$0xff]
        %v1189 = vld [vmem:[%s756 + $0x2c0] sm:$0xff]
        %v1190 = vld [vmem:[%s756 + $0x2c8] sm:$0xff]
        %v1191 = vld [vmem:[%s756 + $0x2d0] sm:$0xff]
        %v1192 = vld [vmem:[%s756 + $0x2d8] sm:$0xff]
        %v1193 = vld [vmem:[%s756 + $0x2e0] sm:$0xff]
        %v1194 = vld [vmem:[%s756 + $0x2e8] sm:$0xff]
        %v1195 = vld [vmem:[%s756 + $0x2f0] sm:$0xff]
        %v1196 = vld [vmem:[%s756 + $0x2f8] sm:$0xff]
        %v1293 = vunpack.c.l.b16 %v1101
        %v1294 = vunpack.c.h.b16 %v1101
        %v1295 = vunpack.c.l.b16 %v1102
        %v1296 = vunpack.c.h.b16 %v1102
        %v1297 = vunpack.c.l.b16 %v1103
        %v1298 = vunpack.c.h.b16 %v1103
        %v1299 = vunpack.c.l.b16 %v1104
        %v1300 = vunpack.c.h.b16 %v1104
        %v1301 = vunpack.c.l.b16 %v1105
        %v1302 = vunpack.c.h.b16 %v1105
        %v1303 = vunpack.c.l.b16 %v1106
        %v1304 = vunpack.c.h.b16 %v1106
        %v1305 = vunpack.c.l.b16 %v1107
        %v1306 = vunpack.c.h.b16 %v1107
        %v1307 = vunpack.c.l.b16 %v1108
        %v1308 = vunpack.c.h.b16 %v1108
        %v1309 = vunpack.c.l.b16 %v1109
        %v1310 = vunpack.c.h.b16 %v1109
        %v1311 = vunpack.c.l.b16 %v1110
        %v1312 = vunpack.c.h.b16 %v1110
        %v1313 = vunpack.c.l.b16 %v1111
        %v1314 = vunpack.c.h.b16 %v1111
        %v1315 = vunpack.c.l.b16 %v1112
        %v1316 = vunpack.c.h.b16 %v1112
        %v1317 = vunpack.c.l.b16 %v1113
        %v1318 = vunpack.c.h.b16 %v1113
        %v1319 = vunpack.c.l.b16 %v1114
        %v1320 = vunpack.c.h.b16 %v1114
        %v1321 = vunpack.c.l.b16 %v1115
        %v1322 = vunpack.c.h.b16 %v1115
        %v1323 = vunpack.c.l.b16 %v1116
        %v1324 = vunpack.c.h.b16 %v1116
        %v1325 = vunpack.c.l.b16 %v1117
        %v1326 = vunpack.c.h.b16 %v1117
        %v1327 = vunpack.c.l.b16 %v1118
        %v1328 = vunpack.c.h.b16 %v1118
        %v1329 = vunpack.c.l.b16 %v1119
        %v1330 = vunpack.c.h.b16 %v1119
        %v1331 = vunpack.c.l.b16 %v1120
        %v1332 = vunpack.c.h.b16 %v1120
        %v1333 = vunpack.c.l.b16 %v1121
        %v1334 = vunpack.c.h.b16 %v1121
        %v1335 = vunpack.c.l.b16 %v1122
        %v1336 = vunpack.c.h.b16 %v1122
        %v1337 = vunpack.c.l.b16 %v1123
        %v1338 = vunpack.c.h.b16 %v1123
        %v1339 = vunpack.c.l.b16 %v1124
        %v1340 = vunpack.c.h.b16 %v1124
        %v1341 = vunpack.c.l.b16 %v1125
        %v1342 = vunpack.c.h.b16 %v1125
        %v1343 = vunpack.c.l.b16 %v1126
        %v1344 = vunpack.c.h.b16 %v1126
        %v1345 = vunpack.c.l.b16 %v1127
        %v1346 = vunpack.c.h.b16 %v1127
        %v1347 = vunpack.c.l.b16 %v1128
        %v1348 = vunpack.c.h.b16 %v1128
        %v1349 = vunpack.c.l.b16 %v1129
        %v1350 = vunpack.c.h.b16 %v1129
        %v1351 = vunpack.c.l.b16 %v1130
        %v1352 = vunpack.c.h.b16 %v1130
        %v1353 = vunpack.c.l.b16 %v1131
        %v1354 = vunpack.c.h.b16 %v1131
        %v1355 = vunpack.c.l.b16 %v1132
        %v1356 = vunpack.c.h.b16 %v1132
        %v1357 = vunpack.c.l.b16 %v1133
        %v1358 = vunpack.c.h.b16 %v1133
        %v1359 = vunpack.c.l.b16 %v1134
        %v1360 = vunpack.c.h.b16 %v1134
        %v1361 = vunpack.c.l.b16 %v1135
        %v1362 = vunpack.c.h.b16 %v1135
        %v1363 = vunpack.c.l.b16 %v1136
        %v1364 = vunpack.c.h.b16 %v1136
        %v1365 = vunpack.c.l.b16 %v1137
        %v1366 = vunpack.c.h.b16 %v1137
        %v1367 = vunpack.c.l.b16 %v1138
        %v1368 = vunpack.c.h.b16 %v1138
        %v1369 = vunpack.c.l.b16 %v1139
        %v1370 = vunpack.c.h.b16 %v1139
        %v1371 = vunpack.c.l.b16 %v1140
        %v1372 = vunpack.c.h.b16 %v1140
        %v1373 = vunpack.c.l.b16 %v1141
        %v1374 = vunpack.c.h.b16 %v1141
        %v1375 = vunpack.c.l.b16 %v1142
        %v1376 = vunpack.c.h.b16 %v1142
        %v1377 = vunpack.c.l.b16 %v1143
        %v1378 = vunpack.c.h.b16 %v1143
        %v1379 = vunpack.c.l.b16 %v1144
        %v1380 = vunpack.c.h.b16 %v1144
        %v1381 = vunpack.c.l.b16 %v1145
        %v1382 = vunpack.c.h.b16 %v1145
        %v1383 = vunpack.c.l.b16 %v1146
        %v1384 = vunpack.c.h.b16 %v1146
        %v1385 = vunpack.c.l.b16 %v1147
        %v1386 = vunpack.c.h.b16 %v1147
        %v1387 = vunpack.c.l.b16 %v1148
        %v1388 = vunpack.c.h.b16 %v1148
        %v1389 = vunpack.c.l.b16 %v1149
        %v1390 = vunpack.c.h.b16 %v1149
        %v1391 = vunpack.c.l.b16 %v1150
        %v1392 = vunpack.c.h.b16 %v1150
        %v1393 = vunpack.c.l.b16 %v1151
        %v1394 = vunpack.c.h.b16 %v1151
        %v1395 = vunpack.c.l.b16 %v1152
        %v1396 = vunpack.c.h.b16 %v1152
        %v1397 = vunpack.c.l.b16 %v1153
        %v1398 = vunpack.c.h.b16 %v1153
        %v1399 = vunpack.c.l.b16 %v1154
        %v1400 = vunpack.c.h.b16 %v1154
        %v1401 = vunpack.c.l.b16 %v1155
        %v1402 = vunpack.c.h.b16 %v1155
        %v1403 = vunpack.c.l.b16 %v1156
        %v1404 = vunpack.c.h.b16 %v1156
        %v1405 = vunpack.c.l.b16 %v1157
        %v1406 = vunpack.c.h.b16 %v1157
        %v1407 = vunpack.c.l.b16 %v1158
        %v1408 = vunpack.c.h.b16 %v1158
        %v1409 = vunpack.c.l.b16 %v1159
        %v1410 = vunpack.c.h.b16 %v1159
        %v1411 = vunpack.c.l.b16 %v1160
        %v1412 = vunpack.c.h.b16 %v1160
        %v1413 = vunpack.c.l.b16 %v1161
        %v1414 = vunpack.c.h.b16 %v1161
        %v1415 = vunpack.c.l.b16 %v1162
        %v1416 = vunpack.c.h.b16 %v1162
        %v1417 = vunpack.c.l.b16 %v1163
        %v1418 = vunpack.c.h.b16 %v1163
        %v1419 = vunpack.c.l.b16 %v1164
        %v1420 = vunpack.c.h.b16 %v1164
        %v1421 = vunpack.c.l.b16 %v1165
        %v1422 = vunpack.c.h.b16 %v1165
        %v1423 = vunpack.c.l.b16 %v1166
        %v1424 = vunpack.c.h.b16 %v1166
        %v1425 = vunpack.c.l.b16 %v1167
        %v1426 = vunpack.c.h.b16 %v1167
        %v1427 = vunpack.c.l.b16 %v1168
        %v1428 = vunpack.c.h.b16 %v1168
        %v1429 = vunpack.c.l.b16 %v1169
        %v1430 = vunpack.c.h.b16 %v1169
        %v1431 = vunpack.c.l.b16 %v1170
        %v1432 = vunpack.c.h.b16 %v1170
        %v1433 = vunpack.c.l.b16 %v1171
        %v1434 = vunpack.c.h.b16 %v1171
        %v1435 = vunpack.c.l.b16 %v1172
        %v1436 = vunpack.c.h.b16 %v1172
        %v1437 = vunpack.c.l.b16 %v1173
        %v1438 = vunpack.c.h.b16 %v1173
        %v1439 = vunpack.c.l.b16 %v1174
        %v1440 = vunpack.c.h.b16 %v1174
        %v1441 = vunpack.c.l.b16 %v1175
        %v1442 = vunpack.c.h.b16 %v1175
        %v1443 = vunpack.c.l.b16 %v1176
        %v1444 = vunpack.c.h.b16 %v1176
        %v1445 = vunpack.c.l.b16 %v1177
        %v1446 = vunpack.c.h.b16 %v1177
        %v1447 = vunpack.c.l.b16 %v1178
        %v1448 = vunpack.c.h.b16 %v1178
        %v1449 = vunpack.c.l.b16 %v1179
        %v1450 = vunpack.c.h.b16 %v1179
        %v1451 = vunpack.c.l.b16 %v1180
        %v1452 = vunpack.c.h.b16 %v1180
        %v1453 = vunpack.c.l.b16 %v1181
        %v1454 = vunpack.c.h.b16 %v1181
        %v1455 = vunpack.c.l.b16 %v1182
        %v1456 = vunpack.c.h.b16 %v1182
        %v1457 = vunpack.c.l.b16 %v1183
        %v1458 = vunpack.c.h.b16 %v1183
        %v1459 = vunpack.c.l.b16 %v1184
        %v1460 = vunpack.c.h.b16 %v1184
        %v1461 = vunpack.c.l.b16 %v1185
        %v1462 = vunpack.c.h.b16 %v1185
        %v1463 = vunpack.c.l.b16 %v1186
        %v1464 = vunpack.c.h.b16 %v1186
        %v1465 = vunpack.c.l.b16 %v1187
        %v1466 = vunpack.c.h.b16 %v1187
        %v1467 = vunpack.c.l.b16 %v1188
        %v1468 = vunpack.c.h.b16 %v1188
        %v1469 = vunpack.c.l.b16 %v1189
        %v1470 = vunpack.c.h.b16 %v1189
        %v1471 = vunpack.c.l.b16 %v1190
        %v1472 = vunpack.c.h.b16 %v1190
        %v1473 = vunpack.c.l.b16 %v1191
        %v1474 = vunpack.c.h.b16 %v1191
        %v1475 = vunpack.c.l.b16 %v1192
        %v1476 = vunpack.c.h.b16 %v1192
        %v1477 = vunpack.c.l.b16 %v1193
        %v1478 = vunpack.c.h.b16 %v1193
        %v1479 = vunpack.c.l.b16 %v1194
        %v1480 = vunpack.c.h.b16 %v1194
        %v1481 = vunpack.c.l.b16 %v1195
        %v1482 = vunpack.c.h.b16 %v1195
        %v1483 = vunpack.c.l.b16 %v1196
        %v1484 = vunpack.c.h.b16 %v1196
        %v1485 = vpack.c.b16 %v1305, %v1293
        %v1486 = vpack.c.b16 %v1306, %v1294
        %v1487 = vpack.c.b16 %v1307, %v1295
        %v1488 = vpack.c.b16 %v1308, %v1296
        %v1489 = vpack.c.b16 %v1309, %v1297
        %v1490 = vpack.c.b16 %v1310, %v1298
        %v1491 = vpack.c.b16 %v1311, %v1299
        %v1492 = vpack.c.b16 %v1312, %v1300
        %v1493 = vpack.c.b16 %v1313, %v1301
        %v1494 = vpack.c.b16 %v1314, %v1302
        %v1495 = vpack.c.b16 %v1315, %v1303
        %v1496 = vpack.c.b16 %v1316, %v1304
        %v1497 = vpack.c.b16 %v1329, %v1317
        %v1498 = vpack.c.b16 %v1330, %v1318
        %v1499 = vpack.c.b16 %v1331, %v1319
        %v1500 = vpack.c.b16 %v1332, %v1320
        %v1501 = vpack.c.b16 %v1333, %v1321
        %v1502 = vpack.c.b16 %v1334, %v1322
        %v1503 = vpack.c.b16 %v1335, %v1323
        %v1504 = vpack.c.b16 %v1336, %v1324
        %v1505 = vpack.c.b16 %v1337, %v1325
        %v1506 = vpack.c.b16 %v1338, %v1326
        %v1507 = vpack.c.b16 %v1339, %v1327
        %v1508 = vpack.c.b16 %v1340, %v1328
        %v1509 = vpack.c.b16 %v1353, %v1341
        %v1510 = vpack.c.b16 %v1354, %v1342
        %v1511 = vpack.c.b16 %v1355, %v1343
        %v1512 = vpack.c.b16 %v1356, %v1344
        %v1513 = vpack.c.b16 %v1357, %v1345
        %v1514 = vpack.c.b16 %v1358, %v1346
        %v1515 = vpack.c.b16 %v1359, %v1347
        %v1516 = vpack.c.b16 %v1360, %v1348
        %v1517 = vpack.c.b16 %v1361, %v1349
        %v1518 = vpack.c.b16 %v1362, %v1350
        %v1519 = vpack.c.b16 %v1363, %v1351
        %v1520 = vpack.c.b16 %v1364, %v1352
        %v1521 = vpack.c.b16 %v1377, %v1365
        %v1522 = vpack.c.b16 %v1378, %v1366
        %v1523 = vpack.c.b16 %v1379, %v1367
        %v1524 = vpack.c.b16 %v1380, %v1368
        %v1525 = vpack.c.b16 %v1381, %v1369
        %v1526 = vpack.c.b16 %v1382, %v1370
        %v1527 = vpack.c.b16 %v1383, %v1371
        %v1528 = vpack.c.b16 %v1384, %v1372
        %v1529 = vpack.c.b16 %v1385, %v1373
        %v1530 = vpack.c.b16 %v1386, %v1374
        %v1531 = vpack.c.b16 %v1387, %v1375
        %v1532 = vpack.c.b16 %v1388, %v1376
        %v1533 = vpack.c.b16 %v1401, %v1389
        %v1534 = vpack.c.b16 %v1402, %v1390
        %v1535 = vpack.c.b16 %v1403, %v1391
        %v1536 = vpack.c.b16 %v1404, %v1392
        %v1537 = vpack.c.b16 %v1405, %v1393
        %v1538 = vpack.c.b16 %v1406, %v1394
        %v1539 = vpack.c.b16 %v1407, %v1395
        %v1540 = vpack.c.b16 %v1408, %v1396
        %v1541 = vpack.c.b16 %v1409, %v1397
        %v1542 = vpack.c.b16 %v1410, %v1398
        %v1543 = vpack.c.b16 %v1411, %v1399
        %v1544 = vpack.c.b16 %v1412, %v1400
        %v1545 = vpack.c.b16 %v1425, %v1413
        %v1546 = vpack.c.b16 %v1426, %v1414
        %v1547 = vpack.c.b16 %v1427, %v1415
        %v1548 = vpack.c.b16 %v1428, %v1416
        %v1549 = vpack.c.b16 %v1429, %v1417
        %v1550 = vpack.c.b16 %v1430, %v1418
        %v1551 = vpack.c.b16 %v1431, %v1419
        %v1552 = vpack.c.b16 %v1432, %v1420
        %v1553 = vpack.c.b16 %v1433, %v1421
        %v1554 = vpack.c.b16 %v1434, %v1422
        %v1555 = vpack.c.b16 %v1435, %v1423
        %v1556 = vpack.c.b16 %v1436, %v1424
        %v1557 = vpack.c.b16 %v1449, %v1437
        %v1558 = vpack.c.b16 %v1450, %v1438
        %v1559 = vpack.c.b16 %v1451, %v1439
        %v1560 = vpack.c.b16 %v1452, %v1440
        %v1561 = vpack.c.b16 %v1453, %v1441
        %v1562 = vpack.c.b16 %v1454, %v1442
        %v1563 = vpack.c.b16 %v1455, %v1443
        %v1564 = vpack.c.b16 %v1456, %v1444
        %v1565 = vpack.c.b16 %v1457, %v1445
        %v1566 = vpack.c.b16 %v1458, %v1446
        %v1567 = vpack.c.b16 %v1459, %v1447
        %v1568 = vpack.c.b16 %v1460, %v1448
        %v1569 = vpack.c.b16 %v1473, %v1461
        %v1570 = vpack.c.b16 %v1474, %v1462
        %v1571 = vpack.c.b16 %v1475, %v1463
        %v1572 = vpack.c.b16 %v1476, %v1464
        %v1573 = vpack.c.b16 %v1477, %v1465
        %v1574 = vpack.c.b16 %v1478, %v1466
        %v1575 = vpack.c.b16 %v1479, %v1467
        %v1576 = vpack.c.b16 %v1480, %v1468
        %v1577 = vpack.c.b16 %v1481, %v1469
        %v1578 = vpack.c.b16 %v1482, %v1470
        %v1579 = vpack.c.b16 %v1483, %v1471
        %v1580 = vpack.c.b16 %v1484, %v1472
        %1677 = vmatprep.subr.bf16.mxu0 %v1486
        %1678 = vmatpush1.bf16.msra.mxu0 %v1485
        %1679 = vmatprep.subr.bf16.mxu0 %v1498
        %1680 = vmatpush1.bf16.msra.mxu0 %v1497
        %1681 = vmatprep.subr.bf16.mxu0 %v1510
        %1682 = vmatpush1.bf16.msra.mxu0 %v1509
        %1683 = vmatprep.subr.bf16.mxu0 %v1522
        %1684 = vmatpush1.bf16.msra.mxu0 %v1521
        %1685 = vmatprep.subr.bf16.mxu0 %v1534
        %1686 = vmatpush1.bf16.msra.mxu0 %v1533
        %1687 = vmatprep.subr.bf16.mxu0 %v1546
        %1688 = vmatpush1.bf16.msra.mxu0 %v1545
        %1689 = vmatprep.subr.bf16.mxu0 %v1558
        %1690 = vmatpush1.bf16.msra.mxu0 %v1557
        %1691 = vmatprep.subr.bf16.mxu0 %v1570
        %1692 = vmatpush1.bf16.msra.mxu0 %v1569
        %1693 = vmatprep.subr.bf16.mxu0 0
        %1694 = vmatpush1.bf16.msra.mxu0 0
        %1695 = vmatprep.subr.bf16.mxu0 0
        %1696 = vmatpush1.bf16.msra.mxu0 0
        %1697 = vmatprep.subr.bf16.mxu0 0
        %1698 = vmatpush1.bf16.msra.mxu0 0
        %1699 = vmatprep.subr.bf16.mxu0 0
        %1700 = vmatpush1.bf16.msra.mxu0 0
        %1701 = vmatprep.subr.bf16.mxu0 0
        %1702 = vmatpush1.bf16.msra.mxu0 0
        %1703 = vmatprep.subr.bf16.mxu0 0
        %1704 = vmatpush1.bf16.msra.mxu0 0
        %1705 = vmatprep.subr.bf16.mxu0 0
        %1706 = vmatpush1.bf16.msra.mxu0 0
        %1707 = vmatprep.subr.bf16.mxu0 0
        %1708 = vmatpush1.bf16.msra.mxu0 0
        %1709 = vmatprep.mubr.bf16.mxu0 0
        %1710 = vmatmul.mubr.bf16.gmra.mrb[0].mxu0 %v1099
        %v1711 = vpop.f32.mrb[0].mxu0
        %v1712 = vadd.f32 0.0, %v1711
        %v1713 = vpop.f32.mrb[0].mxu0
        %v1714 = vadd.f32 0.0, %v1713
        %v1715 = vpop.f32.mrb[0].mxu0
        %v1716 = vadd.f32 0.0, %v1715
        %v1717 = vpop.f32.mrb[0].mxu0
        %v1718 = vadd.f32 0.0, %v1717
        %1719 = vmatprep.mubr.bf16.mxu0 0
        %1720 = vmatmul.mubr.bf16.gmra.mrb[0].mxu0 %v1100
        %v1721 = vpop.f32.mrb[0].mxu0
        %v1722 = vadd.f32 0.0, %v1721
        %v1723 = vpop.f32.mrb[0].mxu0
        %v1724 = vadd.f32 0.0, %v1723
        %v1725 = vpop.f32.mrb[0].mxu0
        %v1726 = vpop.f32.mrb[0].mxu0
        %1727 = vdwg.mxu0
        %1728 = vmatprep.subr.bf16.mxu0 %v1488
        %1729 = vmatpush1.bf16.msra.mxu0 %v1487
        %1730 = vmatprep.subr.bf16.mxu0 %v1500
        %1731 = vmatpush1.bf16.msra.mxu0 %v1499
        %1732 = vmatprep.subr.bf16.mxu0 %v1512
        %1733 = vmatpush1.bf16.msra.mxu0 %v1511
        %1734 = vmatprep.subr.bf16.mxu0 %v1524
        %1735 = vmatpush1.bf16.msra.mxu0 %v1523
        %1736 = vmatprep.subr.bf16.mxu0 %v1536
        %1737 = vmatpush1.bf16.msra.mxu0 %v1535
        %1738 = vmatprep.subr.bf16.mxu0 %v1548
        %1739 = vmatpush1.bf16.msra.mxu0 %v1547
        %1740 = vmatprep.subr.bf16.mxu0 %v1560
        %1741 = vmatpush1.bf16.msra.mxu0 %v1559
        %1742 = vmatprep.subr.bf16.mxu0 %v1572
        %1743 = vmatpush1.bf16.msra.mxu0 %v1571
        %1744 = vmatprep.subr.bf16.mxu0 0
        %1745 = vmatpush1.bf16.msra.mxu0 0
        %1746 = vmatprep.subr.bf16.mxu0 0
        %1747 = vmatpush1.bf16.msra.mxu0 0
        %1748 = vmatprep.subr.bf16.mxu0 0
        %1749 = vmatpush1.bf16.msra.mxu0 0
        %1750 = vmatprep.subr.bf16.mxu0 0
        %1751 = vmatpush1.bf16.msra.mxu0 0
        %1752 = vmatprep.subr.bf16.mxu0 0
        %1753 = vmatpush1.bf16.msra.mxu0 0
        %1754 = vmatprep.subr.bf16.mxu0 0
        %1755 = vmatpush1.bf16.msra.mxu0 0
        %1756 = vmatprep.subr.bf16.mxu0 0
        %1757 = vmatpush1.bf16.msra.mxu0 0
        %1758 = vmatprep.subr.bf16.mxu0 0
        %1759 = vmatpush1.bf16.msra.mxu0 0
        %1760 = vmatprep.mubr.bf16.mxu0 0
        %1761 = vmatmul.mubr.bf16.gmra.mrb[0].mxu0 %v1099
        %v1762 = vpop.f32.mrb[0].mxu0
        %v1763 = vadd.f32 0.0, %v1762
        %v1764 = vpop.f32.mrb[0].mxu0
        %v1765 = vadd.f32 0.0, %v1764
        %v1766 = vpop.f32.mrb[0].mxu0
        %v1767 = vadd.f32 0.0, %v1766
        %v1768 = vpop.f32.mrb[0].mxu0
        %v1769 = vadd.f32 0.0, %v1768
        %1770 = vmatprep.mubr.bf16.mxu0 0
        %1771 = vmatmul.mubr.bf16.gmra.mrb[0].mxu0 %v1100
        %v1772 = vpop.f32.mrb[0].mxu0
        %v1773 = vadd.f32 0.0, %v1772
        %v1774 = vpop.f32.mrb[0].mxu0
        %v1775 = vadd.f32 0.0, %v1774
        %v1776 = vpop.f32.mrb[0].mxu0
        %v1777 = vpop.f32.mrb[0].mxu0
        %1778 = vdwg.mxu0
        %1779 = vmatprep.subr.bf16.mxu0 %v1490
        %1780 = vmatpush1.bf16.msra.mxu0 %v1489
        %1781 = vmatprep.subr.bf16.mxu0 %v1502
        %1782 = vmatpush1.bf16.msra.mxu0 %v1501
        %1783 = vmatprep.subr.bf16.mxu0 %v1514
        %1784 = vmatpush1.bf16.msra.mxu0 %v1513
        %1785 = vmatprep.subr.bf16.mxu0 %v1526
        %1786 = vmatpush1.bf16.msra.mxu0 %v1525
        %1787 = vmatprep.subr.bf16.mxu0 %v1538
        %1788 = vmatpush1.bf16.msra.mxu0 %v1537
        %1789 = vmatprep.subr.bf16.mxu0 %v1550
        %1790 = vmatpush1.bf16.msra.mxu0 %v1549
        %1791 = vmatprep.subr.bf16.mxu0 %v1562
        %1792 = vmatpush1.bf16.msra.mxu0 %v1561
        %1793 = vmatprep.subr.bf16.mxu0 %v1574
        %1794 = vmatpush1.bf16.msra.mxu0 %v1573
        %1795 = vmatprep.subr.bf16.mxu0 0
        %1796 = vmatpush1.bf16.msra.mxu0 0
        %1797 = vmatprep.subr.bf16.mxu0 0
        %1798 = vmatpush1.bf16.msra.mxu0 0
        %1799 = vmatprep.subr.bf16.mxu0 0
        %1800 = vmatpush1.bf16.msra.mxu0 0
        %1801 = vmatprep.subr.bf16.mxu0 0
        %1802 = vmatpush1.bf16.msra.mxu0 0
        %1803 = vmatprep.subr.bf16.mxu0 0
        %1804 = vmatpush1.bf16.msra.mxu0 0
        %1805 = vmatprep.subr.bf16.mxu0 0
        %1806 = vmatpush1.bf16.msra.mxu0 0
        %1807 = vmatprep.subr.bf16.mxu0 0
        %1808 = vmatpush1.bf16.msra.mxu0 0
        %1809 = vmatprep.subr.bf16.mxu0 0
        %1810 = vmatpush1.bf16.msra.mxu0 0
        %1811 = vmatprep.mubr.bf16.mxu0 0
        %1812 = vmatmul.mubr.bf16.gmra.mrb[0].mxu0 %v1099
        %v1813 = vpop.f32.mrb[0].mxu0
        %v1814 = vadd.f32 0.0, %v1813
        %v1815 = vpop.f32.mrb[0].mxu0
        %v1816 = vadd.f32 0.0, %v1815
        %v1817 = vpop.f32.mrb[0].mxu0
        %v1818 = vadd.f32 0.0, %v1817
        %v1819 = vpop.f32.mrb[0].mxu0
        %v1820 = vadd.f32 0.0, %v1819
        %1821 = vmatprep.mubr.bf16.mxu0 0
        %1822 = vmatmul.mubr.bf16.gmra.mrb[0].mxu0 %v1100
        %v1823 = vpop.f32.mrb[0].mxu0
        %v1824 = vadd.f32 0.0, %v1823
        %v1825 = vpop.f32.mrb[0].mxu0
        %v1826 = vadd.f32 0.0, %v1825
        %v1827 = vpop.f32.mrb[0].mxu0
        %v1828 = vpop.f32.mrb[0].mxu0
        %1829 = vdwg.mxu0
        %1830 = vmatprep.subr.bf16.mxu0 %v1492
        %1831 = vmatpush1.bf16.msra.mxu0 %v1491
        %1832 = vmatprep.subr.bf16.mxu0 %v1504
        %1833 = vmatpush1.bf16.msra.mxu0 %v1503
        %1834 = vmatprep.subr.bf16.mxu0 %v1516
        %1835 = vmatpush1.bf16.msra.mxu0 %v1515
        %1836 = vmatprep.subr.bf16.mxu0 %v1528
        %1837 = vmatpush1.bf16.msra.mxu0 %v1527
        %1838 = vmatprep.subr.bf16.mxu0 %v1540
        %1839 = vmatpush1.bf16.msra.mxu0 %v1539
        %1840 = vmatprep.subr.bf16.mxu0 %v1552
        %1841 = vmatpush1.bf16.msra.mxu0 %v1551
        %1842 = vmatprep.subr.bf16.mxu0 %v1564
        %1843 = vmatpush1.bf16.msra.mxu0 %v1563
        %1844 = vmatprep.subr.bf16.mxu0 %v1576
        %1845 = vmatpush1.bf16.msra.mxu0 %v1575
        %1846 = vmatprep.subr.bf16.mxu0 0
        %1847 = vmatpush1.bf16.msra.mxu0 0
        %1848 = vmatprep.subr.bf16.mxu0 0
        %1849 = vmatpush1.bf16.msra.mxu0 0
        %1850 = vmatprep.subr.bf16.mxu0 0
        %1851 = vmatpush1.bf16.msra.mxu0 0
        %1852 = vmatprep.subr.bf16.mxu0 0
        %1853 = vmatpush1.bf16.msra.mxu0 0
        %1854 = vmatprep.subr.bf16.mxu0 0
        %1855 = vmatpush1.bf16.msra.mxu0 0
        %1856 = vmatprep.subr.bf16.mxu0 0
        %1857 = vmatpush1.bf16.msra.mxu0 0
        %1858 = vmatprep.subr.bf16.mxu0 0
        %1859 = vmatpush1.bf16.msra.mxu0 0
        %1860 = vmatprep.subr.bf16.mxu0 0
        %1861 = vmatpush1.bf16.msra.mxu0 0
        %1862 = vmatprep.mubr.bf16.mxu0 0
        %1863 = vmatmul.mubr.bf16.gmra.mrb[0].mxu0 %v1099
        %v1864 = vpop.f32.mrb[0].mxu0
        %v1865 = vadd.f32 0.0, %v1864
        %v1866 = vpop.f32.mrb[0].mxu0
        %v1867 = vadd.f32 0.0, %v1866
        %v1868 = vpop.f32.mrb[0].mxu0
        %v1869 = vadd.f32 0.0, %v1868
        %v1870 = vpop.f32.mrb[0].mxu0
        %v1871 = vadd.f32 0.0, %v1870
        %1872 = vmatprep.mubr.bf16.mxu0 0
        %1873 = vmatmul.mubr.bf16.gmra.mrb[0].mxu0 %v1100
        %v1874 = vpop.f32.mrb[0].mxu0
        %v1875 = vadd.f32 0.0, %v1874
        %v1876 = vpop.f32.mrb[0].mxu0
        %v1877 = vadd.f32 0.0, %v1876
        %v1878 = vpop.f32.mrb[0].mxu0
        %v1879 = vpop.f32.mrb[0].mxu0
        %1880 = vdwg.mxu0
        %1881 = vmatprep.subr.bf16.mxu0 %v1494
        %1882 = vmatpush1.bf16.msra.mxu0 %v1493
        %1883 = vmatprep.subr.bf16.mxu0 %v1506
        %1884 = vmatpush1.bf16.msra.mxu0 %v1505
        %1885 = vmatprep.subr.bf16.mxu0 %v1518
        %1886 = vmatpush1.bf16.msra.mxu0 %v1517
        %1887 = vmatprep.subr.bf16.mxu0 %v1530
        %1888 = vmatpush1.bf16.msra.mxu0 %v1529
        %1889 = vmatprep.subr.bf16.mxu0 %v1542
        %1890 = vmatpush1.bf16.msra.mxu0 %v1541
        %1891 = vmatprep.subr.bf16.mxu0 %v1554
        %1892 = vmatpush1.bf16.msra.mxu0 %v1553
        %1893 = vmatprep.subr.bf16.mxu0 %v1566
        %1894 = vmatpush1.bf16.msra.mxu0 %v1565
        %1895 = vmatprep.subr.bf16.mxu0 %v1578
        %1896 = vmatpush1.bf16.msra.mxu0 %v1577
        %1897 = vmatprep.subr.bf16.mxu0 0
        %1898 = vmatpush1.bf16.msra.mxu0 0
        %1899 = vmatprep.subr.bf16.mxu0 0
        %1900 = vmatpush1.bf16.msra.mxu0 0
        %1901 = vmatprep.subr.bf16.mxu0 0
        %1902 = vmatpush1.bf16.msra.mxu0 0
        %1903 = vmatprep.subr.bf16.mxu0 0
        %1904 = vmatpush1.bf16.msra.mxu0 0
        %1905 = vmatprep.subr.bf16.mxu0 0
        %1906 = vmatpush1.bf16.msra.mxu0 0
        %1907 = vmatprep.subr.bf16.mxu0 0
        %1908 = vmatpush1.bf16.msra.mxu0 0
        %1909 = vmatprep.subr.bf16.mxu0 0
        %1910 = vmatpush1.bf16.msra.mxu0 0
        %1911 = vmatprep.subr.bf16.mxu0 0
        %1912 = vmatpush1.bf16.msra.mxu0 0
        %1913 = vmatprep.mubr.bf16.mxu0 0
        %1914 = vmatmul.mubr.bf16.gmra.mrb[0].mxu0 %v1099
        %v1915 = vpop.f32.mrb[0].mxu0
        %v1916 = vadd.f32 0.0, %v1915
        %v1917 = vpop.f32.mrb[0].mxu0
        %v1918 = vadd.f32 0.0, %v1917
        %v1919 = vpop.f32.mrb[0].mxu0
        %v1920 = vadd.f32 0.0, %v1919
        %v1921 = vpop.f32.mrb[0].mxu0
        %v1922 = vadd.f32 0.0, %v1921
        %1923 = vmatprep.mubr.bf16.mxu0 0
        %1924 = vmatmul.mubr.bf16.gmra.mrb[0].mxu0 %v1100
        %v1925 = vpop.f32.mrb[0].mxu0
        %v1926 = vadd.f32 0.0, %v1925
        %v1927 = vpop.f32.mrb[0].mxu0
        %v1928 = vadd.f32 0.0, %v1927
        %v1929 = vpop.f32.mrb[0].mxu0
        %v1930 = vpop.f32.mrb[0].mxu0
        %1931 = vdwg.mxu0
        %1932 = vmatprep.subr.bf16.mxu0 %v1496
        %1933 = vmatpush1.bf16.msra.mxu0 %v1495
        %1934 = vmatprep.subr.bf16.mxu0 %v1508
        %1935 = vmatpush1.bf16.msra.mxu0 %v1507
        %1936 = vmatprep.subr.bf16.mxu0 %v1520
        %1937 = vmatpush1.bf16.msra.mxu0 %v1519
        %1938 = vmatprep.subr.bf16.mxu0 %v1532
        %1939 = vmatpush1.bf16.msra.mxu0 %v1531
        %1940 = vmatprep.subr.bf16.mxu0 %v1544
        %1941 = vmatpush1.bf16.msra.mxu0 %v1543
        %1942 = vmatprep.subr.bf16.mxu0 %v1556
        %1943 = vmatpush1.bf16.msra.mxu0 %v1555
        %1944 = vmatprep.subr.bf16.mxu0 %v1568
        %1945 = vmatpush1.bf16.msra.mxu0 %v1567
        %1946 = vmatprep.subr.bf16.mxu0 %v1580
        %1947 = vmatpush1.bf16.msra.mxu0 %v1579
        %1948 = vmatprep.subr.bf16.mxu0 0
        %1949 = vmatpush1.bf16.msra.mxu0 0
        %1950 = vmatprep.subr.bf16.mxu0 0
        %1951 = vmatpush1.bf16.msra.mxu0 0
        %1952 = vmatprep.subr.bf16.mxu0 0
        %1953 = vmatpush1.bf16.msra.mxu0 0
        %1954 = vmatprep.subr.bf16.mxu0 0
        %1955 = vmatpush1.bf16.msra.mxu0 0
        %1956 = vmatprep.subr.bf16.mxu0 0
        %1957 = vmatpush1.bf16.msra.mxu0 0
        %1958 = vmatprep.subr.bf16.mxu0 0
        %1959 = vmatpush1.bf16.msra.mxu0 0
        %1960 = vmatprep.subr.bf16.mxu0 0
        %1961 = vmatpush1.bf16.msra.mxu0 0
        %1962 = vmatprep.subr.bf16.mxu0 0
        %1963 = vmatpush1.bf16.msra.mxu0 0
        %1964 = vmatprep.mubr.bf16.mxu0 0
        %1965 = vmatmul.mubr.bf16.gmra.mrb[0].mxu0 %v1099
        %v1966 = vpop.f32.mrb[0].mxu0
        %v1967 = vadd.f32 0.0, %v1966
        %v1968 = vpop.f32.mrb[0].mxu0
        %v1969 = vadd.f32 0.0, %v1968
        %v1970 = vpop.f32.mrb[0].mxu0
        %v1971 = vadd.f32 0.0, %v1970
        %v1972 = vpop.f32.mrb[0].mxu0
        %v1973 = vadd.f32 0.0, %v1972
        %1974 = vmatprep.mubr.bf16.mxu0 0
        %1975 = vmatmul.mubr.bf16.gmra.mrb[0].mxu0 %v1100
        %v1976 = vpop.f32.mrb[0].mxu0
        %v1977 = vadd.f32 0.0, %v1976
        %v1978 = vpop.f32.mrb[0].mxu0
        %v1979 = vadd.f32 0.0, %v1978
        %v1980 = vpop.f32.mrb[0].mxu0
        %v1981 = vpop.f32.mrb[0].mxu0
        %1982 = vdwg.mxu0
        %v1983 = vpack.c.bf16 %v1716, %v1712
        %v1984 = vpack.c.bf16 %v1718, %v1714
        %v1985 = vpack.c.bf16 %v1767, %v1763
        %v1986 = vpack.c.bf16 %v1769, %v1765
        %v1987 = vpack.c.bf16 %v1818, %v1814
        %v1988 = vpack.c.bf16 %v1820, %v1816
        %v1989 = vpack.c.bf16 %v1869, %v1865
        %v1990 = vpack.c.bf16 %v1871, %v1867
        %v1991 = vpack.c.bf16 %v1920, %v1916
        %v1992 = vpack.c.bf16 %v1922, %v1918
        %v1993 = vpack.c.bf16 %v1971, %v1967
        %v1994 = vpack.c.bf16 %v1973, %v1969
        %v1995 = vpack.c.bf16 %v1722, %v1722
        %v1996 = vpack.c.bf16 %v1724, %v1724
        %v1997 = vpack.c.bf16 %v1773, %v1773
        %v1998 = vpack.c.bf16 %v1775, %v1775
        %v1999 = vpack.c.bf16 %v1824, %v1824
        %v2000 = vpack.c.bf16 %v1826, %v1826
        %v2001 = vpack.c.bf16 %v1875, %v1875
        %v2002 = vpack.c.bf16 %v1877, %v1877
        %v2003 = vpack.c.bf16 %v1926, %v1926
        %v2004 = vpack.c.bf16 %v1928, %v1928
        %v2005 = vpack.c.bf16 %v1977, %v1977
        %v2006 = vpack.c.bf16 %v1979, %v1979
        %v2007 = vlaneseq
        %v2008 = vand.u32 %v2007, 127
        %vm2009 = vcmp.lt.s32.totalorder %v2008, 17
        %2010 = vmatprep.subr.bf16.mxu0 0
        %2011 = vmatpush1.bf16.xpose.msra.mxu0 %v1987
        %2012 = vmatprep.subr.bf16.mxu0 0
        %2013 = vmatpush1.bf16.xpose.msra.mxu0 %v1999
        %2014 = vmatprep.subr.bf16.mxu0 0
        %2015 = vmatpush1.bf16.xpose.msra.mxu0 0
        %2016 = vmatprep.subr.bf16.mxu0 0
        %2017 = vmatpush1.bf16.xpose.msra.mxu0 0
        %2018 = vmatprep.subr.bf16.mxu0 0
        %2019 = vmatpush1.bf16.xpose.msra.mxu0 0
        %2020 = vmatprep.subr.bf16.mxu0 0
        %2021 = vmatpush1.bf16.xpose.msra.mxu0 0
        %2022 = vmatprep.subr.bf16.mxu0 0
        %2023 = vmatpush1.bf16.xpose.msra.mxu0 0
        %2024 = vmatprep.subr.bf16.mxu0 0
        %2025 = vmatpush1.bf16.xpose.msra.mxu0 0
        %2026 = vmatprep.subr.bf16.mxu0 0
        %2027 = vmatpush1.bf16.xpose.msra.mxu0 0
        %2028 = vmatprep.subr.bf16.mxu0 0
        %2029 = vmatpush1.bf16.xpose.msra.mxu0 0
        %2030 = vmatprep.subr.bf16.mxu0 0
        %2031 = vmatpush1.bf16.xpose.msra.mxu0 0
        %2032 = vmatprep.subr.bf16.mxu0 0
        %2033 = vmatpush1.bf16.xpose.msra.mxu0 0
        %2034 = vmatprep.subr.bf16.mxu0 0
        %2035 = vmatpush1.bf16.xpose.msra.mxu0 0
        %2036 = vmatprep.subr.bf16.mxu0 0
        %2037 = vmatpush1.bf16.xpose.msra.mxu0 0
        %2038 = vmatprep.subr.bf16.mxu0 0
        %2039 = vmatpush1.bf16.xpose.msra.mxu0 0
        %2040 = vmatprep.subr.bf16.mxu0 0
        %2041 = vmatpush1.bf16.xpose.msra.mxu0 0
        %2042 = vmatprep.mubr.bf16.mxu0 0
        %2043 = vmatmul.mubr.bf16.gmra.mrb[0].mxu0 %v1983
        %v2044 = vpop.f32.mrb[0].mxu0
        %v2045 = vadd.f32 0.0, %v2044
        %v2046 = vpop.f32.mrb[0].mxu0
        %v2047 = vpop.f32.mrb[0].mxu0
        %v2048 = vadd.f32 0.0, %v2047
        %v2049 = vpop.f32.mrb[0].mxu0
        %2050 = vmatprep.mubr.bf16.mxu0 0
        %2051 = vmatmul.mubr.bf16.gmra.mrb[0].mxu0 %v1995
        %v2052 = vpop.f32.mrb[0].mxu0
        %v2053 = vadd.f32 0.0, %v2052
        %v2054 = vpop.f32.mrb[0].mxu0
        %v2055 = vpop.f32.mrb[0].mxu0
        %v2056 = vpop.f32.mrb[0].mxu0
        %2057 = vdwg.mxu0
        %v2058 = vmul.f32 %v2045, 0.35355338
        %v2059 = vmul.f32 %v2048, 0.35355338
        %v2060 = vmul.f32 %v2053, 0.35355338
        %v2061 = vsel %vm2009, %v2058, -1e+30
        %v2062 = vsel %vm2009, %v2059, -1e+30
        %v2063 = vsel %vm2009, %v2060, -1e+30
        %vm2064 = vcmask 195584
        %v2065 = vsel %vm2064, %v2061, -inf
        %2066 = vmax.xlane.f32.xlu0 %v2065
        %v2067 = vpop.xlane.xlu0 %2066
        %v2068 = vsel %vm2064, %v2062, -inf
        %2069 = vmax.xlane.f32.xlu0 %v2068
        %v2070 = vpop.xlane.xlu0 %2069
        %v2071 = vsel %vm2064, %v2063, -inf
        %2072 = vmax.xlane.f32.xlu0 %v2071
        %v2073 = vpop.xlane.xlu0 %2072
        %v2074 = vsub.f32 %v2061, %v2067
        %v2075 = vsub.f32 %v2062, %v2070
        %v2076 = vsub.f32 %v2063, %v2073
        %v2077 = vmul.f32 %v2074, 1.442695
        %v2078 = vpow.pop %v2077
        %v2079 = vmul.f32 %v2075, 1.442695
        %v2080 = vpow.pop %v2079
        %v2081 = vmul.f32 %v2076, 1.442695
        %v2082 = vpow.pop %v2081
        %v2083 = vsel %vm2064, %v2078, 0.0
        %2084 = vadd.xlane.f32.xlu0 %v2083
        %v2085 = vpop.xlane.xlu0 %2084
        %v2086 = vsel %vm2064, %v2080, 0.0
        %2087 = vadd.xlane.f32.xlu0 %v2086
        %v2088 = vpop.xlane.xlu0 %2087
        %v2089 = vsel %vm2064, %v2082, 0.0
        %2090 = vadd.xlane.f32.xlu0 %v2089
        %v2091 = vpop.xlane.xlu0 %2090
        %v2092 = vrcp.pop %v2085
        %v2093 = vrcp.pop %v2088
        %v2094 = vrcp.pop %v2091
        %v2095 = vmul.f32 %v2078, %v2092
        %v2096 = vmul.f32 %v2080, %v2093
        %v2097 = vmul.f32 %v2082, %v2094
        %v2098 = vpack.c.bf16 %v2096, %v2095
        %v2099 = vpack.c.bf16 %v2097, %v2097
        %v2101 = vsel %vm2064, %v2098, 0
        %v2104 = vsel %vm2064, %v2099, 0
        %vm2106 = vcmask 1043456
        %v2108 = vsel %vm2106, %v2003, 0
        %2110 = vmatprep.subr.bf16.mxu0 0
        %2111 = vmatpush1.bf16.msra.mxu0 %v1991
        %2112 = vmatprep.subr.bf16.mxu0 0
        %2113 = vmatpush1.bf16.msra.mxu0 %v2108
        %2114 = vmatprep.subr.bf16.mxu0 0
        %2115 = vmatpush1.bf16.msra.mxu0 0
        %2116 = vmatprep.subr.bf16.mxu0 0
        %2117 = vmatpush1.bf16.msra.mxu0 0
        %2118 = vmatprep.subr.bf16.mxu0 0
        %2119 = vmatpush1.bf16.msra.mxu0 0
        %2120 = vmatprep.subr.bf16.mxu0 0
        %2121 = vmatpush1.bf16.msra.mxu0 0
        %2122 = vmatprep.subr.bf16.mxu0 0
        %2123 = vmatpush1.bf16.msra.mxu0 0
        %2124 = vmatprep.subr.bf16.mxu0 0
        %2125 = vmatpush1.bf16.msra.mxu0 0
        %2126 = vmatprep.subr.bf16.mxu0 0
        %2127 = vmatpush1.bf16.msra.mxu0 0
        %2128 = vmatprep.subr.bf16.mxu0 0
        %2129 = vmatpush1.bf16.msra.mxu0 0
        %2130 = vmatprep.subr.bf16.mxu0 0
        %2131 = vmatpush1.bf16.msra.mxu0 0
        %2132 = vmatprep.subr.bf16.mxu0 0
        %2133 = vmatpush1.bf16.msra.mxu0 0
        %2134 = vmatprep.subr.bf16.mxu0 0
        %2135 = vmatpush1.bf16.msra.mxu0 0
        %2136 = vmatprep.subr.bf16.mxu0 0
        %2137 = vmatpush1.bf16.msra.mxu0 0
        %2138 = vmatprep.subr.bf16.mxu0 0
        %2139 = vmatpush1.bf16.msra.mxu0 0
        %2140 = vmatprep.subr.bf16.mxu0 0
        %2141 = vmatpush1.bf16.msra.mxu0 0
        %2142 = vmatprep.mubr.bf16.mxu0 0
        %2143 = vmatmul.mubr.bf16.gmra.mrb[0].mxu0 %v2101
        %v2144 = vpop.f32.mrb[0].mxu0
        %v2145 = vadd.f32 0.0, %v2144
        %v2146 = vpop.f32.mrb[0].mxu0
        %v2147 = vpop.f32.mrb[0].mxu0
        %v2148 = vadd.f32 0.0, %v2147
        %v2149 = vpop.f32.mrb[0].mxu0
        %2150 = vmatprep.mubr.bf16.mxu0 0
        %2151 = vmatmul.mubr.bf16.gmra.mrb[0].mxu0 %v2104
        %v2152 = vpop.f32.mrb[0].mxu0
        %v2153 = vadd.f32 0.0, %v2152
        %v2154 = vpop.f32.mrb[0].mxu0
        %v2155 = vpop.f32.mrb[0].mxu0
        %v2156 = vpop.f32.mrb[0].mxu0
        %2157 = vdwg.mxu0
        %v2158 = vpack.c.bf16 %v2148, %v2145
        %v2159 = vpack.c.bf16 %v2153, %v2153
        %v2160 = vld [vmem:[%s765] sm:$0xf]
        %v2161 = vld [vmem:[%s765 + $0x4] sm:$0xf]
        %v2162 = vld [vmem:[%s765 + $0x8] sm:$0xf]
        %v2163 = vld [vmem:[%s765 + $0xc] sm:$0xf]
        %v2164 = vld [vmem:[%s765 + $0x10] sm:$0xf]
        %v2165 = vld [vmem:[%s765 + $0x14] sm:$0xf]
        %v2166 = vld [vmem:[%s765 + $0x18] sm:$0xf]
        %v2167 = vld [vmem:[%s765 + $0x1c] sm:$0xf]
        %v2168 = vld [vmem:[%s765 + $0x20] sm:$0xf]
        %v2169 = vld [vmem:[%s765 + $0x24] sm:$0xf]
        %v2170 = vld [vmem:[%s765 + $0x28] sm:$0xf]
        %v2171 = vld [vmem:[%s765 + $0x2c] sm:$0xf]
        %v2172 = vld [vmem:[%s765 + $0x30] sm:$0xf]
        %v2173 = vld [vmem:[%s765 + $0x34] sm:$0xf]
        %v2174 = vld [vmem:[%s765 + $0x38] sm:$0xf]
        %v2175 = vld [vmem:[%s765 + $0x3c] sm:$0xf]
        %2176 = vmatprep.subr.bf16.mxu0 0
        %2177 = vmatpush1.bf16.xpose.msra.mxu0 %v1988
        %2178 = vmatprep.subr.bf16.mxu0 0
        %2179 = vmatpush1.bf16.xpose.msra.mxu0 %v2000
        %2180 = vmatprep.subr.bf16.mxu0 0
        %2181 = vmatpush1.bf16.xpose.msra.mxu0 0
        %2182 = vmatprep.subr.bf16.mxu0 0
        %2183 = vmatpush1.bf16.xpose.msra.mxu0 0
        %2184 = vmatprep.subr.bf16.mxu0 0
        %2185 = vmatpush1.bf16.xpose.msra.mxu0 0
        %2186 = vmatprep.subr.bf16.mxu0 0
        %2187 = vmatpush1.bf16.xpose.msra.mxu0 0
        %2188 = vmatprep.subr.bf16.mxu0 0
        %2189 = vmatpush1.bf16.xpose.msra.mxu0 0
        %2190 = vmatprep.subr.bf16.mxu0 0
        %2191 = vmatpush1.bf16.xpose.msra.mxu0 0
        %2192 = vmatprep.subr.bf16.mxu0 0
        %2193 = vmatpush1.bf16.xpose.msra.mxu0 0
        %2194 = vmatprep.subr.bf16.mxu0 0
        %2195 = vmatpush1.bf16.xpose.msra.mxu0 0
        %2196 = vmatprep.subr.bf16.mxu0 0
        %2197 = vmatpush1.bf16.xpose.msra.mxu0 0
        %2198 = vmatprep.subr.bf16.mxu0 0
        %2199 = vmatpush1.bf16.xpose.msra.mxu0 0
        %2200 = vmatprep.subr.bf16.mxu0 0
        %2201 = vmatpush1.bf16.xpose.msra.mxu0 0
        %2202 = vmatprep.subr.bf16.mxu0 0
        %2203 = vmatpush1.bf16.xpose.msra.mxu0 0
        %2204 = vmatprep.subr.bf16.mxu0 0
        %2205 = vmatpush1.bf16.xpose.msra.mxu0 0
        %2206 = vmatprep.subr.bf16.mxu0 0
        %2207 = vmatpush1.bf16.xpose.msra.mxu0 0
        %2208 = vmatprep.mubr.bf16.mxu0 0
        %2209 = vmatmul.mubr.bf16.gmra.mrb[0].mxu0 %v1984
        %v2210 = vpop.f32.mrb[0].mxu0
        %v2211 = vadd.f32 0.0, %v2210
        %v2212 = vpop.f32.mrb[0].mxu0
        %v2213 = vpop.f32.mrb[0].mxu0
        %v2214 = vadd.f32 0.0, %v2213
        %v2215 = vpop.f32.mrb[0].mxu0
        %2216 = vmatprep.mubr.bf16.mxu0 0
        %2217 = vmatmul.mubr.bf16.gmra.mrb[0].mxu0 %v1996
        %v2218 = vpop.f32.mrb[0].mxu0
        %v2219 = vadd.f32 0.0, %v2218
        %v2220 = vpop.f32.mrb[0].mxu0
        %v2221 = vpop.f32.mrb[0].mxu0
        %v2222 = vpop.f32.mrb[0].mxu0
        %2223 = vdwg.mxu0
        %v2224 = vmul.f32 %v2211, 0.35355338
        %v2225 = vmul.f32 %v2214, 0.35355338
        %v2226 = vmul.f32 %v2219, 0.35355338
        %v2227 = vsel %vm2009, %v2224, -1e+30
        %v2228 = vsel %vm2009, %v2225, -1e+30
        %v2229 = vsel %vm2009, %v2226, -1e+30
        %v2230 = vsel %vm2064, %v2227, -inf
        %2231 = vmax.xlane.f32.xlu0 %v2230
        %v2232 = vpop.xlane.xlu0 %2231
        %v2233 = vsel %vm2064, %v2228, -inf
        %2234 = vmax.xlane.f32.xlu0 %v2233
        %v2235 = vpop.xlane.xlu0 %2234
        %v2236 = vsel %vm2064, %v2229, -inf
        %2237 = vmax.xlane.f32.xlu0 %v2236
        %v2238 = vpop.xlane.xlu0 %2237
        %v2239 = vsub.f32 %v2227, %v2232
        %v2240 = vsub.f32 %v2228, %v2235
        %v2241 = vsub.f32 %v2229, %v2238
        %v2242 = vmul.f32 %v2239, 1.442695
        %v2243 = vpow.pop %v2242
        %v2244 = vmul.f32 %v2240, 1.442695
        %v2245 = vpow.pop %v2244
        %v2246 = vmul.f32 %v2241, 1.442695
        %v2247 = vpow.pop %v2246
        %v2248 = vsel %vm2064, %v2243, 0.0
        %2249 = vadd.xlane.f32.xlu0 %v2248
        %v2250 = vpop.xlane.xlu0 %2249
        %v2251 = vsel %vm2064, %v2245, 0.0
        %2252 = vadd.xlane.f32.xlu0 %v2251
        %v2253 = vpop.xlane.xlu0 %2252
        %v2254 = vsel %vm2064, %v2247, 0.0
        %2255 = vadd.xlane.f32.xlu0 %v2254
        %v2256 = vpop.xlane.xlu0 %2255
        %v2257 = vrcp.pop %v2250
        %v2258 = vrcp.pop %v2253
        %v2259 = vrcp.pop %v2256
        %v2260 = vmul.f32 %v2243, %v2257
        %v2261 = vmul.f32 %v2245, %v2258
        %v2262 = vmul.f32 %v2247, %v2259
        %v2263 = vpack.c.bf16 %v2261, %v2260
        %v2264 = vpack.c.bf16 %v2262, %v2262
        %v2266 = vsel %vm2064, %v2263, 0
        %v2269 = vsel %vm2064, %v2264, 0
        %v2272 = vsel %vm2106, %v2004, 0
        %2274 = vmatprep.subr.bf16.mxu0 0
        %2275 = vmatpush1.bf16.msra.mxu0 %v1992
        %2276 = vmatprep.subr.bf16.mxu0 0
        %2277 = vmatpush1.bf16.msra.mxu0 %v2272
        %2278 = vmatprep.subr.bf16.mxu0 0
        %2279 = vmatpush1.bf16.msra.mxu0 0
        %2280 = vmatprep.subr.bf16.mxu0 0
        %2281 = vmatpush1.bf16.msra.mxu0 0
        %2282 = vmatprep.subr.bf16.mxu0 0
        %2283 = vmatpush1.bf16.msra.mxu0 0
        %2284 = vmatprep.subr.bf16.mxu0 0
        %2285 = vmatpush1.bf16.msra.mxu0 0
        %2286 = vmatprep.subr.bf16.mxu0 0
        %2287 = vmatpush1.bf16.msra.mxu0 0
        %2288 = vmatprep.subr.bf16.mxu0 0
        %2289 = vmatpush1.bf16.msra.mxu0 0
        %2290 = vmatprep.subr.bf16.mxu0 0
        %2291 = vmatpush1.bf16.msra.mxu0 0
        %2292 = vmatprep.subr.bf16.mxu0 0
        %2293 = vmatpush1.bf16.msra.mxu0 0
        %2294 = vmatprep.subr.bf16.mxu0 0
        %2295 = vmatpush1.bf16.msra.mxu0 0
        %2296 = vmatprep.subr.bf16.mxu0 0
        %2297 = vmatpush1.bf16.msra.mxu0 0
        %2298 = vmatprep.subr.bf16.mxu0 0
        %2299 = vmatpush1.bf16.msra.mxu0 0
        %2300 = vmatprep.subr.bf16.mxu0 0
        %2301 = vmatpush1.bf16.msra.mxu0 0
        %2302 = vmatprep.subr.bf16.mxu0 0
        %2303 = vmatpush1.bf16.msra.mxu0 0
        %2304 = vmatprep.subr.bf16.mxu0 0
        %2305 = vmatpush1.bf16.msra.mxu0 0
        %2306 = vmatprep.mubr.bf16.mxu0 0
        %2307 = vmatmul.mubr.bf16.gmra.mrb[0].mxu0 %v2266
        %v2308 = vpop.f32.mrb[0].mxu0
        %v2309 = vadd.f32 0.0, %v2308
        %v2310 = vpop.f32.mrb[0].mxu0
        %v2311 = vpop.f32.mrb[0].mxu0
        %v2312 = vadd.f32 0.0, %v2311
        %v2313 = vpop.f32.mrb[0].mxu0
        %2314 = vmatprep.mubr.bf16.mxu0 0
        %2315 = vmatmul.mubr.bf16.gmra.mrb[0].mxu0 %v2269
        %v2316 = vpop.f32.mrb[0].mxu0
        %v2317 = vadd.f32 0.0, %v2316
        %v2318 = vpop.f32.mrb[0].mxu0
        %v2319 = vpop.f32.mrb[0].mxu0
        %v2320 = vpop.f32.mrb[0].mxu0
        %2321 = vdwg.mxu0
        %v2322 = vpack.c.bf16 %v2312, %v2309
        %v2323 = vpack.c.bf16 %v2317, %v2317
        %s2324 = scalar_lea.vmem %s765, 64 [#allocation11]
        %v2325 = vld [vmem:[%s2324] sm:$0xf]
        %v2326 = vld [vmem:[%s2324 + $0x4] sm:$0xf]
        %v2327 = vld [vmem:[%s2324 + $0x8] sm:$0xf]
        %v2328 = vld [vmem:[%s2324 + $0xc] sm:$0xf]
        %v2329 = vld [vmem:[%s2324 + $0x10] sm:$0xf]
        %v2330 = vld [vmem:[%s2324 + $0x14] sm:$0xf]
        %v2331 = vld [vmem:[%s2324 + $0x18] sm:$0xf]
        %v2332 = vld [vmem:[%s2324 + $0x1c] sm:$0xf]
        %v2333 = vld [vmem:[%s2324 + $0x20] sm:$0xf]
        %v2334 = vld [vmem:[%s2324 + $0x24] sm:$0xf]
        %v2335 = vld [vmem:[%s2324 + $0x28] sm:$0xf]
        %v2336 = vld [vmem:[%s2324 + $0x2c] sm:$0xf]
        %v2337 = vld [vmem:[%s2324 + $0x30] sm:$0xf]
        %v2338 = vld [vmem:[%s2324 + $0x34] sm:$0xf]
        %v2339 = vld [vmem:[%s2324 + $0x38] sm:$0xf]
        %v2340 = vld [vmem:[%s2324 + $0x3c] sm:$0xf]
        %v2357 = vunpack.c.l.b16 %v2325
        %v2358 = vunpack.c.l.b16 %v2326
        %v2359 = vunpack.c.l.b16 %v2327
        %v2360 = vunpack.c.l.b16 %v2328
        %v2361 = vunpack.c.l.b16 %v2329
        %v2362 = vunpack.c.l.b16 %v2330
        %v2363 = vunpack.c.l.b16 %v2331
        %v2364 = vunpack.c.l.b16 %v2332
        %v2365 = vunpack.c.l.b16 %v2333
        %v2366 = vunpack.c.l.b16 %v2334
        %v2367 = vunpack.c.l.b16 %v2335
        %v2368 = vunpack.c.l.b16 %v2336
        %v2369 = vunpack.c.l.b16 %v2337
        %v2370 = vunpack.c.l.b16 %v2338
        %v2371 = vunpack.c.l.b16 %v2339
        %v2372 = vunpack.c.l.b16 %v2340
        %v2373 = vpack.c.b16 %v2358, %v2357
        %v2374 = vpack.c.b16 %v2360, %v2359
        %v2375 = vpack.c.b16 %v2362, %v2361
        %v2376 = vpack.c.b16 %v2364, %v2363
        %v2377 = vpack.c.b16 %v2366, %v2365
        %v2378 = vpack.c.b16 %v2368, %v2367
        %v2379 = vpack.c.b16 %v2370, %v2369
        %v2380 = vpack.c.b16 %v2372, %v2371
        %2389 = vmatprep.subr.bf16.mxu0 0
        %2390 = vmatpush1.bf16.msra.mxu0 %v2373
        %2391 = vmatprep.subr.bf16.mxu0 0
        %2392 = vmatpush1.bf16.msra.mxu0 %v2374
        %2393 = vmatprep.subr.bf16.mxu0 0
        %2394 = vmatpush1.bf16.msra.mxu0 %v2375
        %2395 = vmatprep.subr.bf16.mxu0 0
        %2396 = vmatpush1.bf16.msra.mxu0 %v2376
        %2397 = vmatprep.subr.bf16.mxu0 0
        %2398 = vmatpush1.bf16.msra.mxu0 %v2377
        %2399 = vmatprep.subr.bf16.mxu0 0
        %2400 = vmatpush1.bf16.msra.mxu0 %v2378
        %2401 = vmatprep.subr.bf16.mxu0 0
        %2402 = vmatpush1.bf16.msra.mxu0 %v2379
        %2403 = vmatprep.subr.bf16.mxu0 0
        %2404 = vmatpush1.bf16.msra.mxu0 %v2380
        %2405 = vmatprep.subr.bf16.mxu0 0
        %2406 = vmatpush1.bf16.msra.mxu0 0
        %2407 = vmatprep.subr.bf16.mxu0 0
        %2408 = vmatpush1.bf16.msra.mxu0 0
        %2409 = vmatprep.subr.bf16.mxu0 0
        %2410 = vmatpush1.bf16.msra.mxu0 0
        %2411 = vmatprep.subr.bf16.mxu0 0
        %2412 = vmatpush1.bf16.msra.mxu0 0
        %2413 = vmatprep.subr.bf16.mxu0 0
        %2414 = vmatpush1.bf16.msra.mxu0 0
        %2415 = vmatprep.subr.bf16.mxu0 0
        %2416 = vmatpush1.bf16.msra.mxu0 0
        %2417 = vmatprep.subr.bf16.mxu0 0
        %2418 = vmatpush1.bf16.msra.mxu0 0
        %2419 = vmatprep.subr.bf16.mxu0 0
        %2420 = vmatpush1.bf16.msra.mxu0 0
        %2421 = vmatprep.mubr.bf16.mxu0 0
        %2422 = vmatmul.mubr.bf16.gmra.mrb[0].mxu0 %v2322
        %v2423 = vpop.f32.mrb[0].mxu0
        %v2424 = vadd.f32 0.0, %v2423
        %v2425 = vpop.f32.mrb[0].mxu0
        %v2426 = vpop.f32.mrb[0].mxu0
        %v2427 = vadd.f32 0.0, %v2426
        %v2428 = vpop.f32.mrb[0].mxu0
        %2429 = vmatprep.mubr.bf16.mxu0 0
        %2430 = vmatmul.mubr.bf16.gmra.mrb[0].mxu0 %v2323
        %v2431 = vpop.f32.mrb[0].mxu0
        %v2432 = vadd.f32 0.0, %v2431
        %v2433 = vpop.f32.mrb[0].mxu0
        %v2434 = vpop.f32.mrb[0].mxu0
        %v2435 = vpop.f32.mrb[0].mxu0
        %2436 = vdwg.mxu0
        %v2453 = vunpack.c.l.b16 %v2160
        %v2454 = vunpack.c.l.b16 %v2161
        %v2455 = vunpack.c.l.b16 %v2162
        %v2456 = vunpack.c.l.b16 %v2163
        %v2457 = vunpack.c.l.b16 %v2164
        %v2458 = vunpack.c.l.b16 %v2165
        %v2459 = vunpack.c.l.b16 %v2166
        %v2460 = vunpack.c.l.b16 %v2167
        %v2461 = vunpack.c.l.b16 %v2168
        %v2462 = vunpack.c.l.b16 %v2169
        %v2463 = vunpack.c.l.b16 %v2170
        %v2464 = vunpack.c.l.b16 %v2171
        %v2465 = vunpack.c.l.b16 %v2172
        %v2466 = vunpack.c.l.b16 %v2173
        %v2467 = vunpack.c.l.b16 %v2174
        %v2468 = vunpack.c.l.b16 %v2175
        %v2469 = vpack.c.b16 %v2454, %v2453
        %v2470 = vpack.c.b16 %v2456, %v2455
        %v2471 = vpack.c.b16 %v2458, %v2457
        %v2472 = vpack.c.b16 %v2460, %v2459
        %v2473 = vpack.c.b16 %v2462, %v2461
        %v2474 = vpack.c.b16 %v2464, %v2463
        %v2475 = vpack.c.b16 %v2466, %v2465
        %v2476 = vpack.c.b16 %v2468, %v2467
        %2485 = vmatprep.subr.bf16.mxu0 0
        %2486 = vmatpush1.bf16.msra.mxu0 %v2469
        %2487 = vmatprep.subr.bf16.mxu0 0
        %2488 = vmatpush1.bf16.msra.mxu0 %v2470
        %2489 = vmatprep.subr.bf16.mxu0 0
        %2490 = vmatpush1.bf16.msra.mxu0 %v2471
        %2491 = vmatprep.subr.bf16.mxu0 0
        %2492 = vmatpush1.bf16.msra.mxu0 %v2472
        %2493 = vmatprep.subr.bf16.mxu0 0
        %2494 = vmatpush1.bf16.msra.mxu0 %v2473
        %2495 = vmatprep.subr.bf16.mxu0 0
        %2496 = vmatpush1.bf16.msra.mxu0 %v2474
        %2497 = vmatprep.subr.bf16.mxu0 0
        %2498 = vmatpush1.bf16.msra.mxu0 %v2475
        %2499 = vmatprep.subr.bf16.mxu0 0
        %2500 = vmatpush1.bf16.msra.mxu0 %v2476
        %2501 = vmatprep.subr.bf16.mxu0 0
        %2502 = vmatpush1.bf16.msra.mxu0 0
        %2503 = vmatprep.subr.bf16.mxu0 0
        %2504 = vmatpush1.bf16.msra.mxu0 0
        %2505 = vmatprep.subr.bf16.mxu0 0
        %2506 = vmatpush1.bf16.msra.mxu0 0
        %2507 = vmatprep.subr.bf16.mxu0 0
        %2508 = vmatpush1.bf16.msra.mxu0 0
        %2509 = vmatprep.subr.bf16.mxu0 0
        %2510 = vmatpush1.bf16.msra.mxu0 0
        %2511 = vmatprep.subr.bf16.mxu0 0
        %2512 = vmatpush1.bf16.msra.mxu0 0
        %2513 = vmatprep.subr.bf16.mxu0 0
        %2514 = vmatpush1.bf16.msra.mxu0 0
        %2515 = vmatprep.subr.bf16.mxu0 0
        %2516 = vmatpush1.bf16.msra.mxu0 0
        %2517 = vmatprep.mubr.bf16.mxu0 0
        %2518 = vmatmul.mubr.bf16.gmra.mrb[0].mxu0 %v2158
        %v2519 = vpop.f32.mrb[0].mxu0
        %v2520 = vadd.f32 %v2424, %v2519
        %v2521 = vpop.f32.mrb[0].mxu0
        %v2522 = vpop.f32.mrb[0].mxu0
        %v2523 = vadd.f32 %v2427, %v2522
        %v2524 = vpop.f32.mrb[0].mxu0
        %2525 = vmatprep.mubr.bf16.mxu0 0
        %2526 = vmatmul.mubr.bf16.gmra.mrb[0].mxu0 %v2159
        %v2527 = vpop.f32.mrb[0].mxu0
        %v2528 = vadd.f32 %v2432, %v2527
        %v2529 = vpop.f32.mrb[0].mxu0
        %v2530 = vpop.f32.mrb[0].mxu0
        %v2531 = vpop.f32.mrb[0].mxu0
        %2532 = vdwg.mxu0
        %2533 = vmatprep.subr.bf16.mxu0 0
        %2534 = vmatpush1.bf16.xpose.msra.mxu0 %v1989
        %2535 = vmatprep.subr.bf16.mxu0 0
        %2536 = vmatpush1.bf16.xpose.msra.mxu0 %v2001
        %2537 = vmatprep.subr.bf16.mxu0 0
        %2538 = vmatpush1.bf16.xpose.msra.mxu0 0
        %2539 = vmatprep.subr.bf16.mxu0 0
        %2540 = vmatpush1.bf16.xpose.msra.mxu0 0
        %2541 = vmatprep.subr.bf16.mxu0 0
        %2542 = vmatpush1.bf16.xpose.msra.mxu0 0
        %2543 = vmatprep.subr.bf16.mxu0 0
        %2544 = vmatpush1.bf16.xpose.msra.mxu0 0
        %2545 = vmatprep.subr.bf16.mxu0 0
        %2546 = vmatpush1.bf16.xpose.msra.mxu0 0
        %2547 = vmatprep.subr.bf16.mxu0 0
        %2548 = vmatpush1.bf16.xpose.msra.mxu0 0
        %2549 = vmatprep.subr.bf16.mxu0 0
        %2550 = vmatpush1.bf16.xpose.msra.mxu0 0
        %2551 = vmatprep.subr.bf16.mxu0 0
        %2552 = vmatpush1.bf16.xpose.msra.mxu0 0
        %2553 = vmatprep.subr.bf16.mxu0 0
        %2554 = vmatpush1.bf16.xpose.msra.mxu0 0
        %2555 = vmatprep.subr.bf16.mxu0 0
        %2556 = vmatpush1.bf16.xpose.msra.mxu0 0
        %2557 = vmatprep.subr.bf16.mxu0 0
        %2558 = vmatpush1.bf16.xpose.msra.mxu0 0
        %2559 = vmatprep.subr.bf16.mxu0 0
        %2560 = vmatpush1.bf16.xpose.msra.mxu0 0
        %2561 = vmatprep.subr.bf16.mxu0 0
        %2562 = vmatpush1.bf16.xpose.msra.mxu0 0
        %2563 = vmatprep.subr.bf16.mxu0 0
        %2564 = vmatpush1.bf16.xpose.msra.mxu0 0
        %2565 = vmatprep.mubr.bf16.mxu0 0
        %2566 = vmatmul.mubr.bf16.gmra.mrb[0].mxu0 %v1985
        %v2567 = vpop.f32.mrb[0].mxu0
        %v2568 = vadd.f32 0.0, %v2567
        %v2569 = vpop.f32.mrb[0].mxu0
        %v2570 = vpop.f32.mrb[0].mxu0
        %v2571 = vadd.f32 0.0, %v2570
        %v2572 = vpop.f32.mrb[0].mxu0
        %2573 = vmatprep.mubr.bf16.mxu0 0
        %2574 = vmatmul.mubr.bf16.gmra.mrb[0].mxu0 %v1997
        %v2575 = vpop.f32.mrb[0].mxu0
        %v2576 = vadd.f32 0.0, %v2575
        %v2577 = vpop.f32.mrb[0].mxu0
        %v2578 = vpop.f32.mrb[0].mxu0
        %v2579 = vpop.f32.mrb[0].mxu0
        %2580 = vdwg.mxu0
        %v2581 = vmul.f32 %v2568, 0.35355338
        %v2582 = vmul.f32 %v2571, 0.35355338
        %v2583 = vmul.f32 %v2576, 0.35355338
        %v2584 = vsel %vm2009, %v2581, -1e+30
        %v2585 = vsel %vm2009, %v2582, -1e+30
        %v2586 = vsel %vm2009, %v2583, -1e+30
        %v2587 = vsel %vm2064, %v2584, -inf
        %2588 = vmax.xlane.f32.xlu0 %v2587
        %v2589 = vpop.xlane.xlu0 %2588
        %v2590 = vsel %vm2064, %v2585, -inf
        %2591 = vmax.xlane.f32.xlu0 %v2590
        %v2592 = vpop.xlane.xlu0 %2591
        %v2593 = vsel %vm2064, %v2586, -inf
        %2594 = vmax.xlane.f32.xlu0 %v2593
        %v2595 = vpop.xlane.xlu0 %2594
        %v2596 = vsub.f32 %v2584, %v2589
        %v2597 = vsub.f32 %v2585, %v2592
        %v2598 = vsub.f32 %v2586, %v2595
        %v2599 = vmul.f32 %v2596, 1.442695
        %v2600 = vpow.pop %v2599
        %v2601 = vmul.f32 %v2597, 1.442695
        %v2602 = vpow.pop %v2601
        %v2603 = vmul.f32 %v2598, 1.442695
        %v2604 = vpow.pop %v2603
        %v2605 = vsel %vm2064, %v2600, 0.0
        %2606 = vadd.xlane.f32.xlu0 %v2605
        %v2607 = vpop.xlane.xlu0 %2606
        %v2608 = vsel %vm2064, %v2602, 0.0
        %2609 = vadd.xlane.f32.xlu0 %v2608
        %v2610 = vpop.xlane.xlu0 %2609
        %v2611 = vsel %vm2064, %v2604, 0.0
        %2612 = vadd.xlane.f32.xlu0 %v2611
        %v2613 = vpop.xlane.xlu0 %2612
        %v2614 = vrcp.pop %v2607
        %v2615 = vrcp.pop %v2610
        %v2616 = vrcp.pop %v2613
        %v2617 = vmul.f32 %v2600, %v2614
        %v2618 = vmul.f32 %v2602, %v2615
        %v2619 = vmul.f32 %v2604, %v2616
        %v2620 = vpack.c.bf16 %v2618, %v2617
        %v2621 = vpack.c.bf16 %v2619, %v2619
        %v2623 = vsel %vm2064, %v2620, 0
        %v2626 = vsel %vm2064, %v2621, 0
        %v2629 = vsel %vm2106, %v2005, 0
        %2631 = vmatprep.subr.bf16.mxu0 0
        %2632 = vmatpush1.bf16.msra.mxu0 %v1993
        %2633 = vmatprep.subr.bf16.mxu0 0
        %2634 = vmatpush1.bf16.msra.mxu0 %v2629
        %2635 = vmatprep.subr.bf16.mxu0 0
        %2636 = vmatpush1.bf16.msra.mxu0 0
        %2637 = vmatprep.subr.bf16.mxu0 0
        %2638 = vmatpush1.bf16.msra.mxu0 0
        %2639 = vmatprep.subr.bf16.mxu0 0
        %2640 = vmatpush1.bf16.msra.mxu0 0
        %2641 = vmatprep.subr.bf16.mxu0 0
        %2642 = vmatpush1.bf16.msra.mxu0 0
        %2643 = vmatprep.subr.bf16.mxu0 0
        %2644 = vmatpush1.bf16.msra.mxu0 0
        %2645 = vmatprep.subr.bf16.mxu0 0
        %2646 = vmatpush1.bf16.msra.mxu0 0
        %2647 = vmatprep.subr.bf16.mxu0 0
        %2648 = vmatpush1.bf16.msra.mxu0 0
        %2649 = vmatprep.subr.bf16.mxu0 0
        %2650 = vmatpush1.bf16.msra.mxu0 0
        %2651 = vmatprep.subr.bf16.mxu0 0
        %2652 = vmatpush1.bf16.msra.mxu0 0
        %2653 = vmatprep.subr.bf16.mxu0 0
        %2654 = vmatpush1.bf16.msra.mxu0 0
        %2655 = vmatprep.subr.bf16.mxu0 0
        %2656 = vmatpush1.bf16.msra.mxu0 0
        %2657 = vmatprep.subr.bf16.mxu0 0
        %2658 = vmatpush1.bf16.msra.mxu0 0
        %2659 = vmatprep.subr.bf16.mxu0 0
        %2660 = vmatpush1.bf16.msra.mxu0 0
        %2661 = vmatprep.subr.bf16.mxu0 0
        %2662 = vmatpush1.bf16.msra.mxu0 0
        %2663 = vmatprep.mubr.bf16.mxu0 0
        %2664 = vmatmul.mubr.bf16.gmra.mrb[0].mxu0 %v2623
        %v2665 = vpop.f32.mrb[0].mxu0
        %v2666 = vadd.f32 0.0, %v2665
        %v2667 = vpop.f32.mrb[0].mxu0
        %v2668 = vpop.f32.mrb[0].mxu0
        %v2669 = vadd.f32 0.0, %v2668
        %v2670 = vpop.f32.mrb[0].mxu0
        %2671 = vmatprep.mubr.bf16.mxu0 0
        %2672 = vmatmul.mubr.bf16.gmra.mrb[0].mxu0 %v2626
        %v2673 = vpop.f32.mrb[0].mxu0
        %v2674 = vadd.f32 0.0, %v2673
        %v2675 = vpop.f32.mrb[0].mxu0
        %v2676 = vpop.f32.mrb[0].mxu0
        %v2677 = vpop.f32.mrb[0].mxu0
        %2678 = vdwg.mxu0
        %v2679 = vpack.c.bf16 %v2669, %v2666
        %v2680 = vpack.c.bf16 %v2674, %v2674
        %s2681 = scalar_lea.vmem %s765, 128 [#allocation11]
        %v2682 = vld [vmem:[%s2681] sm:$0xf]
        %v2683 = vld [vmem:[%s2681 + $0x4] sm:$0xf]
        %v2684 = vld [vmem:[%s2681 + $0x8] sm:$0xf]
        %v2685 = vld [vmem:[%s2681 + $0xc] sm:$0xf]
        %v2686 = vld [vmem:[%s2681 + $0x10] sm:$0xf]
        %v2687 = vld [vmem:[%s2681 + $0x14] sm:$0xf]
        %v2688 = vld [vmem:[%s2681 + $0x18] sm:$0xf]
        %v2689 = vld [vmem:[%s2681 + $0x1c] sm:$0xf]
        %v2690 = vld [vmem:[%s2681 + $0x20] sm:$0xf]
        %v2691 = vld [vmem:[%s2681 + $0x24] sm:$0xf]
        %v2692 = vld [vmem:[%s2681 + $0x28] sm:$0xf]
        %v2693 = vld [vmem:[%s2681 + $0x2c] sm:$0xf]
        %v2694 = vld [vmem:[%s2681 + $0x30] sm:$0xf]
        %v2695 = vld [vmem:[%s2681 + $0x34] sm:$0xf]
        %v2696 = vld [vmem:[%s2681 + $0x38] sm:$0xf]
        %v2697 = vld [vmem:[%s2681 + $0x3c] sm:$0xf]
        %v2714 = vunpack.c.l.b16 %v2682
        %v2715 = vunpack.c.l.b16 %v2683
        %v2716 = vunpack.c.l.b16 %v2684
        %v2717 = vunpack.c.l.b16 %v2685
        %v2718 = vunpack.c.l.b16 %v2686
        %v2719 = vunpack.c.l.b16 %v2687
        %v2720 = vunpack.c.l.b16 %v2688
        %v2721 = vunpack.c.l.b16 %v2689
        %v2722 = vunpack.c.l.b16 %v2690
        %v2723 = vunpack.c.l.b16 %v2691
        %v2724 = vunpack.c.l.b16 %v2692
        %v2725 = vunpack.c.l.b16 %v2693
        %v2726 = vunpack.c.l.b16 %v2694
        %v2727 = vunpack.c.l.b16 %v2695
        %v2728 = vunpack.c.l.b16 %v2696
        %v2729 = vunpack.c.l.b16 %v2697
        %v2730 = vpack.c.b16 %v2715, %v2714
        %v2731 = vpack.c.b16 %v2717, %v2716
        %v2732 = vpack.c.b16 %v2719, %v2718
        %v2733 = vpack.c.b16 %v2721, %v2720
        %v2734 = vpack.c.b16 %v2723, %v2722
        %v2735 = vpack.c.b16 %v2725, %v2724
        %v2736 = vpack.c.b16 %v2727, %v2726
        %v2737 = vpack.c.b16 %v2729, %v2728
        %2746 = vmatprep.subr.bf16.mxu0 0
        %2747 = vmatpush1.bf16.msra.mxu0 %v2730
        %2748 = vmatprep.subr.bf16.mxu0 0
        %2749 = vmatpush1.bf16.msra.mxu0 %v2731
        %2750 = vmatprep.subr.bf16.mxu0 0
        %2751 = vmatpush1.bf16.msra.mxu0 %v2732
        %2752 = vmatprep.subr.bf16.mxu0 0
        %2753 = vmatpush1.bf16.msra.mxu0 %v2733
        %2754 = vmatprep.subr.bf16.mxu0 0
        %2755 = vmatpush1.bf16.msra.mxu0 %v2734
        %2756 = vmatprep.subr.bf16.mxu0 0
        %2757 = vmatpush1.bf16.msra.mxu0 %v2735
        %2758 = vmatprep.subr.bf16.mxu0 0
        %2759 = vmatpush1.bf16.msra.mxu0 %v2736
        %2760 = vmatprep.subr.bf16.mxu0 0
        %2761 = vmatpush1.bf16.msra.mxu0 %v2737
        %2762 = vmatprep.subr.bf16.mxu0 0
        %2763 = vmatpush1.bf16.msra.mxu0 0
        %2764 = vmatprep.subr.bf16.mxu0 0
        %2765 = vmatpush1.bf16.msra.mxu0 0
        %2766 = vmatprep.subr.bf16.mxu0 0
        %2767 = vmatpush1.bf16.msra.mxu0 0
        %2768 = vmatprep.subr.bf16.mxu0 0
        %2769 = vmatpush1.bf16.msra.mxu0 0
        %2770 = vmatprep.subr.bf16.mxu0 0
        %2771 = vmatpush1.bf16.msra.mxu0 0
        %2772 = vmatprep.subr.bf16.mxu0 0
        %2773 = vmatpush1.bf16.msra.mxu0 0
        %2774 = vmatprep.subr.bf16.mxu0 0
        %2775 = vmatpush1.bf16.msra.mxu0 0
        %2776 = vmatprep.subr.bf16.mxu0 0
        %2777 = vmatpush1.bf16.msra.mxu0 0
        %2778 = vmatprep.mubr.bf16.mxu0 0
        %2779 = vmatmul.mubr.bf16.gmra.mrb[0].mxu0 %v2679
        %v2780 = vpop.f32.mrb[0].mxu0
        %v2781 = vadd.f32 0.0, %v2780
        %v2782 = vpop.f32.mrb[0].mxu0
        %v2783 = vpop.f32.mrb[0].mxu0
        %v2784 = vadd.f32 0.0, %v2783
        %v2785 = vpop.f32.mrb[0].mxu0
        %2786 = vmatprep.mubr.bf16.mxu0 0
        %2787 = vmatmul.mubr.bf16.gmra.mrb[0].mxu0 %v2680
        %v2788 = vpop.f32.mrb[0].mxu0
        %v2789 = vadd.f32 0.0, %v2788
        %v2790 = vpop.f32.mrb[0].mxu0
        %v2791 = vpop.f32.mrb[0].mxu0
        %v2792 = vpop.f32.mrb[0].mxu0
        %2793 = vdwg.mxu0
        %v2794 = vadd.f32 %v2520, %v2781
        %v2795 = vadd.f32 %v2523, %v2784
        %v2796 = vadd.f32 %v2528, %v2789
        %2797 = vmatprep.subr.bf16.mxu0 0
        %2798 = vmatpush1.bf16.xpose.msra.mxu0 %v1990
        %2799 = vmatprep.subr.bf16.mxu0 0
        %2800 = vmatpush1.bf16.xpose.msra.mxu0 %v2002
        %2801 = vmatprep.subr.bf16.mxu0 0
        %2802 = vmatpush1.bf16.xpose.msra.mxu0 0
        %2803 = vmatprep.subr.bf16.mxu0 0
        %2804 = vmatpush1.bf16.xpose.msra.mxu0 0
        %2805 = vmatprep.subr.bf16.mxu0 0
        %2806 = vmatpush1.bf16.xpose.msra.mxu0 0
        %2807 = vmatprep.subr.bf16.mxu0 0
        %2808 = vmatpush1.bf16.xpose.msra.mxu0 0
        %2809 = vmatprep.subr.bf16.mxu0 0
        %2810 = vmatpush1.bf16.xpose.msra.mxu0 0
        %2811 = vmatprep.subr.bf16.mxu0 0
        %2812 = vmatpush1.bf16.xpose.msra.mxu0 0
        %2813 = vmatprep.subr.bf16.mxu0 0
        %2814 = vmatpush1.bf16.xpose.msra.mxu0 0
        %2815 = vmatprep.subr.bf16.mxu0 0
        %2816 = vmatpush1.bf16.xpose.msra.mxu0 0
        %2817 = vmatprep.subr.bf16.mxu0 0
        %2818 = vmatpush1.bf16.xpose.msra.mxu0 0
        %2819 = vmatprep.subr.bf16.mxu0 0
        %2820 = vmatpush1.bf16.xpose.msra.mxu0 0
        %2821 = vmatprep.subr.bf16.mxu0 0
        %2822 = vmatpush1.bf16.xpose.msra.mxu0 0
        %2823 = vmatprep.subr.bf16.mxu0 0
        %2824 = vmatpush1.bf16.xpose.msra.mxu0 0
        %2825 = vmatprep.subr.bf16.mxu0 0
        %2826 = vmatpush1.bf16.xpose.msra.mxu0 0
        %2827 = vmatprep.subr.bf16.mxu0 0
        %2828 = vmatpush1.bf16.xpose.msra.mxu0 0
        %2829 = vmatprep.mubr.bf16.mxu0 0
        %2830 = vmatmul.mubr.bf16.gmra.mrb[0].mxu0 %v1986
        %v2831 = vpop.f32.mrb[0].mxu0
        %v2832 = vadd.f32 0.0, %v2831
        %v2833 = vpop.f32.mrb[0].mxu0
        %v2834 = vpop.f32.mrb[0].mxu0
        %v2835 = vadd.f32 0.0, %v2834
        %v2836 = vpop.f32.mrb[0].mxu0
        %2837 = vmatprep.mubr.bf16.mxu0 0
        %2838 = vmatmul.mubr.bf16.gmra.mrb[0].mxu0 %v1998
        %v2839 = vpop.f32.mrb[0].mxu0
        %v2840 = vadd.f32 0.0, %v2839
        %v2841 = vpop.f32.mrb[0].mxu0
        %v2842 = vpop.f32.mrb[0].mxu0
        %v2843 = vpop.f32.mrb[0].mxu0
        %2844 = vdwg.mxu0
        %v2845 = vmul.f32 %v2832, 0.35355338
        %v2846 = vmul.f32 %v2835, 0.35355338
        %v2847 = vmul.f32 %v2840, 0.35355338
        %v2848 = vsel %vm2009, %v2845, -1e+30
        %v2849 = vsel %vm2009, %v2846, -1e+30
        %v2850 = vsel %vm2009, %v2847, -1e+30
        %v2851 = vsel %vm2064, %v2848, -inf
        %2852 = vmax.xlane.f32.xlu0 %v2851
        %v2853 = vpop.xlane.xlu0 %2852
        %v2854 = vsel %vm2064, %v2849, -inf
        %2855 = vmax.xlane.f32.xlu0 %v2854
        %v2856 = vpop.xlane.xlu0 %2855
        %v2857 = vsel %vm2064, %v2850, -inf
        %2858 = vmax.xlane.f32.xlu0 %v2857
        %v2859 = vpop.xlane.xlu0 %2858
        %v2860 = vsub.f32 %v2848, %v2853
        %v2861 = vsub.f32 %v2849, %v2856
        %v2862 = vsub.f32 %v2850, %v2859
        %v2863 = vmul.f32 %v2860, 1.442695
        %v2864 = vpow.pop %v2863
        %v2865 = vmul.f32 %v2861, 1.442695
        %v2866 = vpow.pop %v2865
        %v2867 = vmul.f32 %v2862, 1.442695
        %v2868 = vpow.pop %v2867
        %v2869 = vsel %vm2064, %v2864, 0.0
        %2870 = vadd.xlane.f32.xlu0 %v2869
        %v2871 = vpop.xlane.xlu0 %2870
        %v2872 = vsel %vm2064, %v2866, 0.0
        %2873 = vadd.xlane.f32.xlu0 %v2872
        %v2874 = vpop.xlane.xlu0 %2873
        %v2875 = vsel %vm2064, %v2868, 0.0
        %2876 = vadd.xlane.f32.xlu0 %v2875
        %v2877 = vpop.xlane.xlu0 %2876
        %v2878 = vrcp.pop %v2871
        %v2879 = vrcp.pop %v2874
        %v2880 = vrcp.pop %v2877
        %v2881 = vmul.f32 %v2864, %v2878
        %v2882 = vmul.f32 %v2866, %v2879
        %v2883 = vmul.f32 %v2868, %v2880
        %v2884 = vpack.c.bf16 %v2882, %v2881
        %v2885 = vpack.c.bf16 %v2883, %v2883
        %v2887 = vsel %vm2064, %v2884, 0
        %v2890 = vsel %vm2064, %v2885, 0
        %v2893 = vsel %vm2106, %v2006, 0
        %2895 = vmatprep.subr.bf16.mxu0 0
        %2896 = vmatpush1.bf16.msra.mxu0 %v1994
        %2897 = vmatprep.subr.bf16.mxu0 0
        %2898 = vmatpush1.bf16.msra.mxu0 %v2893
        %2899 = vmatprep.subr.bf16.mxu0 0
        %2900 = vmatpush1.bf16.msra.mxu0 0
        %2901 = vmatprep.subr.bf16.mxu0 0
        %2902 = vmatpush1.bf16.msra.mxu0 0
        %2903 = vmatprep.subr.bf16.mxu0 0
        %2904 = vmatpush1.bf16.msra.mxu0 0
        %2905 = vmatprep.subr.bf16.mxu0 0
        %2906 = vmatpush1.bf16.msra.mxu0 0
        %2907 = vmatprep.subr.bf16.mxu0 0
        %2908 = vmatpush1.bf16.msra.mxu0 0
        %2909 = vmatprep.subr.bf16.mxu0 0
        %2910 = vmatpush1.bf16.msra.mxu0 0
        %2911 = vmatprep.subr.bf16.mxu0 0
        %2912 = vmatpush1.bf16.msra.mxu0 0
        %2913 = vmatprep.subr.bf16.mxu0 0
        %2914 = vmatpush1.bf16.msra.mxu0 0
        %2915 = vmatprep.subr.bf16.mxu0 0
        %2916 = vmatpush1.bf16.msra.mxu0 0
        %2917 = vmatprep.subr.bf16.mxu0 0
        %2918 = vmatpush1.bf16.msra.mxu0 0
        %2919 = vmatprep.subr.bf16.mxu0 0
        %2920 = vmatpush1.bf16.msra.mxu0 0
        %2921 = vmatprep.subr.bf16.mxu0 0
        %2922 = vmatpush1.bf16.msra.mxu0 0
        %2923 = vmatprep.subr.bf16.mxu0 0
        %2924 = vmatpush1.bf16.msra.mxu0 0
        %2925 = vmatprep.subr.bf16.mxu0 0
        %2926 = vmatpush1.bf16.msra.mxu0 0
        %2927 = vmatprep.mubr.bf16.mxu0 0
        %2928 = vmatmul.mubr.bf16.gmra.mrb[0].mxu0 %v2887
        %v2929 = vpop.f32.mrb[0].mxu0
        %v2930 = vadd.f32 0.0, %v2929
        %v2931 = vpop.f32.mrb[0].mxu0
        %v2932 = vpop.f32.mrb[0].mxu0
        %v2933 = vadd.f32 0.0, %v2932
        %v2934 = vpop.f32.mrb[0].mxu0
        %2935 = vmatprep.mubr.bf16.mxu0 0
        %2936 = vmatmul.mubr.bf16.gmra.mrb[0].mxu0 %v2890
        %v2937 = vpop.f32.mrb[0].mxu0
        %v2938 = vadd.f32 0.0, %v2937
        %v2939 = vpop.f32.mrb[0].mxu0
        %v2940 = vpop.f32.mrb[0].mxu0
        %v2941 = vpop.f32.mrb[0].mxu0
        %2942 = vdwg.mxu0
        %v2943 = vpack.c.bf16 %v2933, %v2930
        %v2944 = vpack.c.bf16 %v2938, %v2938
        %s2945 = scalar_lea.vmem %s765, 192 [#allocation11]
        %v2946 = vld [vmem:[%s2945] sm:$0xf]
        %v2947 = vld [vmem:[%s2945 + $0x4] sm:$0xf]
        %v2948 = vld [vmem:[%s2945 + $0x8] sm:$0xf]
        %v2949 = vld [vmem:[%s2945 + $0xc] sm:$0xf]
        %v2950 = vld [vmem:[%s2945 + $0x10] sm:$0xf]
        %v2951 = vld [vmem:[%s2945 + $0x14] sm:$0xf]
        %v2952 = vld [vmem:[%s2945 + $0x18] sm:$0xf]
        %v2953 = vld [vmem:[%s2945 + $0x1c] sm:$0xf]
        %v2954 = vld [vmem:[%s2945 + $0x20] sm:$0xf]
        %v2955 = vld [vmem:[%s2945 + $0x24] sm:$0xf]
        %v2956 = vld [vmem:[%s2945 + $0x28] sm:$0xf]
        %v2957 = vld [vmem:[%s2945 + $0x2c] sm:$0xf]
        %v2958 = vld [vmem:[%s2945 + $0x30] sm:$0xf]
        %v2959 = vld [vmem:[%s2945 + $0x34] sm:$0xf]
        %v2960 = vld [vmem:[%s2945 + $0x38] sm:$0xf]
        %v2961 = vld [vmem:[%s2945 + $0x3c] sm:$0xf]
        %v2978 = vunpack.c.l.b16 %v2946
        %v2979 = vunpack.c.l.b16 %v2947
        %v2980 = vunpack.c.l.b16 %v2948
        %v2981 = vunpack.c.l.b16 %v2949
        %v2982 = vunpack.c.l.b16 %v2950
        %v2983 = vunpack.c.l.b16 %v2951
        %v2984 = vunpack.c.l.b16 %v2952
        %v2985 = vunpack.c.l.b16 %v2953
        %v2986 = vunpack.c.l.b16 %v2954
        %v2987 = vunpack.c.l.b16 %v2955
        %v2988 = vunpack.c.l.b16 %v2956
        %v2989 = vunpack.c.l.b16 %v2957
        %v2990 = vunpack.c.l.b16 %v2958
        %v2991 = vunpack.c.l.b16 %v2959
        %v2992 = vunpack.c.l.b16 %v2960
        %v2993 = vunpack.c.l.b16 %v2961
        %v2994 = vpack.c.b16 %v2979, %v2978
        %v2995 = vpack.c.b16 %v2981, %v2980
        %v2996 = vpack.c.b16 %v2983, %v2982
        %v2997 = vpack.c.b16 %v2985, %v2984
        %v2998 = vpack.c.b16 %v2987, %v2986
        %v2999 = vpack.c.b16 %v2989, %v2988
        %v3000 = vpack.c.b16 %v2991, %v2990
        %v3001 = vpack.c.b16 %v2993, %v2992
        %3010 = vmatprep.subr.bf16.mxu0 0
        %3011 = vmatpush1.bf16.msra.mxu0 %v2994
        %3012 = vmatprep.subr.bf16.mxu0 0
        %3013 = vmatpush1.bf16.msra.mxu0 %v2995
        %3014 = vmatprep.subr.bf16.mxu0 0
        %3015 = vmatpush1.bf16.msra.mxu0 %v2996
        %3016 = vmatprep.subr.bf16.mxu0 0
        %3017 = vmatpush1.bf16.msra.mxu0 %v2997
        %3018 = vmatprep.subr.bf16.mxu0 0
        %3019 = vmatpush1.bf16.msra.mxu0 %v2998
        %3020 = vmatprep.subr.bf16.mxu0 0
        %3021 = vmatpush1.bf16.msra.mxu0 %v2999
        %3022 = vmatprep.subr.bf16.mxu0 0
        %3023 = vmatpush1.bf16.msra.mxu0 %v3000
        %3024 = vmatprep.subr.bf16.mxu0 0
        %3025 = vmatpush1.bf16.msra.mxu0 %v3001
        %3026 = vmatprep.subr.bf16.mxu0 0
        %3027 = vmatpush1.bf16.msra.mxu0 0
        %3028 = vmatprep.subr.bf16.mxu0 0
        %3029 = vmatpush1.bf16.msra.mxu0 0
        %3030 = vmatprep.subr.bf16.mxu0 0
        %3031 = vmatpush1.bf16.msra.mxu0 0
        %3032 = vmatprep.subr.bf16.mxu0 0
        %3033 = vmatpush1.bf16.msra.mxu0 0
        %3034 = vmatprep.subr.bf16.mxu0 0
        %3035 = vmatpush1.bf16.msra.mxu0 0
        %3036 = vmatprep.subr.bf16.mxu0 0
        %3037 = vmatpush1.bf16.msra.mxu0 0
        %3038 = vmatprep.subr.bf16.mxu0 0
        %3039 = vmatpush1.bf16.msra.mxu0 0
        %3040 = vmatprep.subr.bf16.mxu0 0
        %3041 = vmatpush1.bf16.msra.mxu0 0
        %3042 = vmatprep.mubr.bf16.mxu0 0
        %3043 = vmatmul.mubr.bf16.gmra.mrb[0].mxu0 %v2943
        %v3044 = vpop.f32.mrb[0].mxu0
        %v3045 = vadd.f32 0.0, %v3044
        %v3046 = vpop.f32.mrb[0].mxu0
        %v3047 = vpop.f32.mrb[0].mxu0
        %v3048 = vadd.f32 0.0, %v3047
        %v3049 = vpop.f32.mrb[0].mxu0
        %3050 = vmatprep.mubr.bf16.mxu0 0
        %3051 = vmatmul.mubr.bf16.gmra.mrb[0].mxu0 %v2944
        %v3052 = vpop.f32.mrb[0].mxu0
        %v3053 = vadd.f32 0.0, %v3052
        %v3054 = vpop.f32.mrb[0].mxu0
        %v3055 = vpop.f32.mrb[0].mxu0
        %v3056 = vpop.f32.mrb[0].mxu0
        %3057 = vdwg.mxu0
        %v3058 = vadd.f32 %v2794, %v3045
        %v3059 = vadd.f32 %v2795, %v3048
        %v3060 = vadd.f32 %v2796, %v3053
        %v3061 = vadd.f32 %v1037, %v3058
        %v3062 = vadd.f32 %v1038, %v3059
        %v3063 = vadd.f32 %v1039, %v3060
        %v3064 = vld [vmem:[%s888] sm:$0x1]
        %v3066 = vlaneseq
        %v3067 = vshrl.u32 %v3066, 7
        %v3068 = vsub.s32 0, %v3067
        %v3069 = vrot.slane %v3064, %v3068
        %v3071 = vadd.f32 %v3061, %v3069
        %v3072 = vadd.f32 %v3062, %v3069
        %v3073 = vadd.f32 %v3063, %v3069
        %v3074 = vld [vmem:[%s891] sm:$0x1]
        %v3075 = vld [vmem:[%s894] sm:$0x1]
        %3076 = vadd.xlane.f32.xlu0 %v3071
        %v3077 = vpop.xlane.xlu0 %3076
        %3078 = vadd.xlane.f32.xlu0 %v3072
        %v3079 = vpop.xlane.xlu0 %3078
        %3080 = vadd.xlane.f32.xlu0 %v3073
        %v3081 = vpop.xlane.xlu0 %3080
        %v3082 = vmul.f32 %v3077, 0.03125
        %v3083 = vmul.f32 %v3079, 0.03125
        %v3084 = vmul.f32 %v3081, 0.03125
        %v3085 = vmul.f32 %v3071, %v3071
        %v3086 = vmul.f32 %v3072, %v3072
        %v3087 = vmul.f32 %v3073, %v3073
        %3088 = vadd.xlane.f32.xlu0 %v3085
        %v3089 = vpop.xlane.xlu0 %3088
        %3090 = vadd.xlane.f32.xlu0 %v3086
        %v3091 = vpop.xlane.xlu0 %3090
        %3092 = vadd.xlane.f32.xlu0 %v3087
        %v3093 = vpop.xlane.xlu0 %3092
        %v3094 = vmul.f32 %v3089, 0.03125
        %v3095 = vmul.f32 %v3091, 0.03125
        %v3096 = vmul.f32 %v3093, 0.03125
        %v3097 = vmul.f32 %v3082, %v3082
        %v3098 = vmul.f32 %v3083, %v3083
        %v3099 = vmul.f32 %v3084, %v3084
        %v3100 = vsub.f32 %v3094, %v3097
        %v3101 = vsub.f32 %v3095, %v3098
        %v3102 = vsub.f32 %v3096, %v3099
        %v3103 = vadd.f32 %v3100, 1e-05
        %v3104 = vadd.f32 %v3101, 1e-05
        %v3105 = vadd.f32 %v3102, 1e-05
        %v3106 = vrsqrt.pop %v3103
        %v3107 = vrsqrt.pop %v3104
        %v3108 = vrsqrt.pop %v3105
        %v3109 = vsub.f32 %v3071, %v3082
        %v3110 = vsub.f32 %v3072, %v3083
        %v3111 = vsub.f32 %v3073, %v3084
        %v3112 = vmul.f32 %v3109, %v3106
        %v3113 = vmul.f32 %v3110, %v3107
        %v3114 = vmul.f32 %v3111, %v3108
        %v3116 = vlaneseq
        %v3117 = vshrl.u32 %v3116, 7
        %v3118 = vsub.s32 0, %v3117
        %v3119 = vrot.slane %v3074, %v3118
        %v3121 = vmul.f32 %v3112, %v3119
        %v3122 = vmul.f32 %v3113, %v3119
        %v3123 = vmul.f32 %v3114, %v3119
        %v3125 = vlaneseq
        %v3126 = vshrl.u32 %v3125, 7
        %v3127 = vsub.s32 0, %v3126
        %v3128 = vrot.slane %v3075, %v3127
        %v3130 = vadd.f32 %v3121, %v3128
        %v3131 = vadd.f32 %v3122, %v3128
        %v3132 = vadd.f32 %v3123, %v3128
        %v3133 = vpack.c.bf16 %v3131, %v3130
        %v3134 = vpack.c.bf16 %v3132, %v3132
        %v3135 = vld [vmem:[%s774] sm:$0xf]
        %v3136 = vld [vmem:[%s774 + $0x4] sm:$0xf]
        %v3137 = vld [vmem:[%s774 + $0x8] sm:$0xf]
        %v3138 = vld [vmem:[%s774 + $0xc] sm:$0xf]
        %v3139 = vld [vmem:[%s774 + $0x10] sm:$0xf]
        %v3140 = vld [vmem:[%s774 + $0x14] sm:$0xf]
        %v3141 = vld [vmem:[%s774 + $0x18] sm:$0xf]
        %v3142 = vld [vmem:[%s774 + $0x1c] sm:$0xf]
        %v3143 = vld [vmem:[%s774 + $0x20] sm:$0xf]
        %v3144 = vld [vmem:[%s774 + $0x24] sm:$0xf]
        %v3145 = vld [vmem:[%s774 + $0x28] sm:$0xf]
        %v3146 = vld [vmem:[%s774 + $0x2c] sm:$0xf]
        %v3147 = vld [vmem:[%s774 + $0x30] sm:$0xf]
        %v3148 = vld [vmem:[%s774 + $0x34] sm:$0xf]
        %v3149 = vld [vmem:[%s774 + $0x38] sm:$0xf]
        %v3150 = vld [vmem:[%s774 + $0x3c] sm:$0xf]
        %v3151 = vld [vmem:[%s897] sm:$0x1]
        %v3153 = vlaneseq
        %v3154 = vshrl.u32 %v3153, 7
        %v3155 = vsub.s32 0, %v3154
        %v3156 = vrot.slane %v3151, %v3155
        %v3174 = vunpack.c.l.b16 %v3135
        %v3175 = vunpack.c.l.b16 %v3136
        %v3176 = vunpack.c.l.b16 %v3137
        %v3177 = vunpack.c.l.b16 %v3138
        %v3178 = vunpack.c.l.b16 %v3139
        %v3179 = vunpack.c.l.b16 %v3140
        %v3180 = vunpack.c.l.b16 %v3141
        %v3181 = vunpack.c.l.b16 %v3142
        %v3182 = vunpack.c.l.b16 %v3143
        %v3183 = vunpack.c.l.b16 %v3144
        %v3184 = vunpack.c.l.b16 %v3145
        %v3185 = vunpack.c.l.b16 %v3146
        %v3186 = vunpack.c.l.b16 %v3147
        %v3187 = vunpack.c.l.b16 %v3148
        %v3188 = vunpack.c.l.b16 %v3149
        %v3189 = vunpack.c.l.b16 %v3150
        %v3190 = vpack.c.b16 %v3175, %v3174
        %v3191 = vpack.c.b16 %v3177, %v3176
        %v3192 = vpack.c.b16 %v3179, %v3178
        %v3193 = vpack.c.b16 %v3181, %v3180
        %v3194 = vpack.c.b16 %v3183, %v3182
        %v3195 = vpack.c.b16 %v3185, %v3184
        %v3196 = vpack.c.b16 %v3187, %v3186
        %v3197 = vpack.c.b16 %v3189, %v3188
        %3206 = vmatprep.subr.bf16.mxu0 0
        %3207 = vmatpush1.bf16.msra.mxu0 %v3190
        %3208 = vmatprep.subr.bf16.mxu0 0
        %3209 = vmatpush1.bf16.msra.mxu0 %v3191
        %3210 = vmatprep.subr.bf16.mxu0 0
        %3211 = vmatpush1.bf16.msra.mxu0 %v3192
        %3212 = vmatprep.subr.bf16.mxu0 0
        %3213 = vmatpush1.bf16.msra.mxu0 %v3193
        %3214 = vmatprep.subr.bf16.mxu0 0
        %3215 = vmatpush1.bf16.msra.mxu0 %v3194
        %3216 = vmatprep.subr.bf16.mxu0 0
        %3217 = vmatpush1.bf16.msra.mxu0 %v3195
        %3218 = vmatprep.subr.bf16.mxu0 0
        %3219 = vmatpush1.bf16.msra.mxu0 %v3196
        %3220 = vmatprep.subr.bf16.mxu0 0
        %3221 = vmatpush1.bf16.msra.mxu0 %v3197
        %3222 = vmatprep.subr.bf16.mxu0 0
        %3223 = vmatpush1.bf16.msra.mxu0 0
        %3224 = vmatprep.subr.bf16.mxu0 0
        %3225 = vmatpush1.bf16.msra.mxu0 0
        %3226 = vmatprep.subr.bf16.mxu0 0
        %3227 = vmatpush1.bf16.msra.mxu0 0
        %3228 = vmatprep.subr.bf16.mxu0 0
        %3229 = vmatpush1.bf16.msra.mxu0 0
        %3230 = vmatprep.subr.bf16.mxu0 0
        %3231 = vmatpush1.bf16.msra.mxu0 0
        %3232 = vmatprep.subr.bf16.mxu0 0
        %3233 = vmatpush1.bf16.msra.mxu0 0
        %3234 = vmatprep.subr.bf16.mxu0 0
        %3235 = vmatpush1.bf16.msra.mxu0 0
        %3236 = vmatprep.subr.bf16.mxu0 0
        %3237 = vmatpush1.bf16.msra.mxu0 0
        %3238 = vmatprep.mubr.bf16.mxu0 0
        %3239 = vmatmul.mubr.bf16.gmra.mrb[0].mxu0 %v3133
        %v3240 = vpop.f32.mrb[0].mxu0
        %v3241 = vadd.f32 %v3156, %v3240
        %v3242 = vpop.f32.mrb[0].mxu0
        %v3243 = vpop.f32.mrb[0].mxu0
        %v3244 = vadd.f32 %v3156, %v3243
        %v3245 = vpop.f32.mrb[0].mxu0
        %3246 = vmatprep.mubr.bf16.mxu0 0
        %3247 = vmatmul.mubr.bf16.gmra.mrb[0].mxu0 %v3134
        %v3248 = vpop.f32.mrb[0].mxu0
        %v3249 = vadd.f32 %v3156, %v3248
        %v3250 = vpop.f32.mrb[0].mxu0
        %v3251 = vpop.f32.mrb[0].mxu0
        %v3252 = vpop.f32.mrb[0].mxu0
        %3253 = vdwg.mxu0
        %v3254 = vmul.f32 %v3241, 0.5
        %v3255 = vmul.f32 %v3244, 0.5
        %v3256 = vmul.f32 %v3249, 0.5
        %v3257 = vmul.f32 %v3241, %v3241
        %v3258 = vmul.f32 %v3244, %v3244
        %v3259 = vmul.f32 %v3249, %v3249
        %v3260 = vmul.f32 %v3257, %v3241
        %v3261 = vmul.f32 %v3258, %v3244
        %v3262 = vmul.f32 %v3259, %v3249
        %v3263 = vmul.f32 %v3260, 0.044715
        %v3264 = vmul.f32 %v3261, 0.044715
        %v3265 = vmul.f32 %v3262, 0.044715
        %v3266 = vadd.f32 %v3241, %v3263
        %v3267 = vadd.f32 %v3244, %v3264
        %v3268 = vadd.f32 %v3249, %v3265
        %v3269 = vmul.f32 %v3266, 0.7978846
        %v3270 = vmul.f32 %v3267, 0.7978846
        %v3271 = vmul.f32 %v3268, 0.7978846
        %v3272 = vtanh.pop %v3269
        %v3273 = vtanh.pop %v3270
        %v3274 = vtanh.pop %v3271
        %v3275 = vadd.f32 %v3272, 1.0
        %v3276 = vadd.f32 %v3273, 1.0
        %v3277 = vadd.f32 %v3274, 1.0
        %v3278 = vmul.f32 %v3254, %v3275
        %v3279 = vmul.f32 %v3255, %v3276
        %v3280 = vmul.f32 %v3256, %v3277
        %v3281 = vpack.c.bf16 %v3279, %v3278
        %v3282 = vpack.c.bf16 %v3280, %v3280
        %v3283 = vld [vmem:[%s783] sm:$0xf]
        %v3284 = vld [vmem:[%s783 + $0x4] sm:$0xf]
        %v3285 = vld [vmem:[%s783 + $0x8] sm:$0xf]
        %v3286 = vld [vmem:[%s783 + $0xc] sm:$0xf]
        %v3287 = vld [vmem:[%s783 + $0x10] sm:$0xf]
        %v3288 = vld [vmem:[%s783 + $0x14] sm:$0xf]
        %v3289 = vld [vmem:[%s783 + $0x18] sm:$0xf]
        %v3290 = vld [vmem:[%s783 + $0x1c] sm:$0xf]
        %v3291 = vld [vmem:[%s783 + $0x20] sm:$0xf]
        %v3292 = vld [vmem:[%s783 + $0x24] sm:$0xf]
        %v3293 = vld [vmem:[%s783 + $0x28] sm:$0xf]
        %v3294 = vld [vmem:[%s783 + $0x2c] sm:$0xf]
        %v3295 = vld [vmem:[%s783 + $0x30] sm:$0xf]
        %v3296 = vld [vmem:[%s783 + $0x34] sm:$0xf]
        %v3297 = vld [vmem:[%s783 + $0x38] sm:$0xf]
        %v3298 = vld [vmem:[%s783 + $0x3c] sm:$0xf]
        %v3299 = vld [vmem:[%s900] sm:$0x1]
        %v3301 = vlaneseq
        %v3302 = vshrl.u32 %v3301, 7
        %v3303 = vsub.s32 0, %v3302
        %v3304 = vrot.slane %v3299, %v3303
        %v3322 = vunpack.c.l.b16 %v3283
        %v3323 = vunpack.c.l.b16 %v3284
        %v3324 = vunpack.c.l.b16 %v3285
        %v3325 = vunpack.c.l.b16 %v3286
        %v3326 = vunpack.c.l.b16 %v3287
        %v3327 = vunpack.c.l.b16 %v3288
        %v3328 = vunpack.c.l.b16 %v3289
        %v3329 = vunpack.c.l.b16 %v3290
        %v3330 = vunpack.c.l.b16 %v3291
        %v3331 = vunpack.c.l.b16 %v3292
        %v3332 = vunpack.c.l.b16 %v3293
        %v3333 = vunpack.c.l.b16 %v3294
        %v3334 = vunpack.c.l.b16 %v3295
        %v3335 = vunpack.c.l.b16 %v3296
        %v3336 = vunpack.c.l.b16 %v3297
        %v3337 = vunpack.c.l.b16 %v3298
        %v3338 = vpack.c.b16 %v3323, %v3322
        %v3339 = vpack.c.b16 %v3325, %v3324
        %v3340 = vpack.c.b16 %v3327, %v3326
        %v3341 = vpack.c.b16 %v3329, %v3328
        %v3342 = vpack.c.b16 %v3331, %v3330
        %v3343 = vpack.c.b16 %v3333, %v3332
        %v3344 = vpack.c.b16 %v3335, %v3334
        %v3345 = vpack.c.b16 %v3337, %v3336
        %3354 = vmatprep.subr.bf16.mxu0 0
        %3355 = vmatpush1.bf16.msra.mxu0 %v3338
        %3356 = vmatprep.subr.bf16.mxu0 0
        %3357 = vmatpush1.bf16.msra.mxu0 %v3339
        %3358 = vmatprep.subr.bf16.mxu0 0
        %3359 = vmatpush1.bf16.msra.mxu0 %v3340
        %3360 = vmatprep.subr.bf16.mxu0 0
        %3361 = vmatpush1.bf16.msra.mxu0 %v3341
        %3362 = vmatprep.subr.bf16.mxu0 0
        %3363 = vmatpush1.bf16.msra.mxu0 %v3342
        %3364 = vmatprep.subr.bf16.mxu0 0
        %3365 = vmatpush1.bf16.msra.mxu0 %v3343
        %3366 = vmatprep.subr.bf16.mxu0 0
        %3367 = vmatpush1.bf16.msra.mxu0 %v3344
        %3368 = vmatprep.subr.bf16.mxu0 0
        %3369 = vmatpush1.bf16.msra.mxu0 %v3345
        %3370 = vmatprep.subr.bf16.mxu0 0
        %3371 = vmatpush1.bf16.msra.mxu0 0
        %3372 = vmatprep.subr.bf16.mxu0 0
        %3373 = vmatpush1.bf16.msra.mxu0 0
        %3374 = vmatprep.subr.bf16.mxu0 0
        %3375 = vmatpush1.bf16.msra.mxu0 0
        %3376 = vmatprep.subr.bf16.mxu0 0
        %3377 = vmatpush1.bf16.msra.mxu0 0
        %3378 = vmatprep.subr.bf16.mxu0 0
        %3379 = vmatpush1.bf16.msra.mxu0 0
        %3380 = vmatprep.subr.bf16.mxu0 0
        %3381 = vmatpush1.bf16.msra.mxu0 0
        %3382 = vmatprep.subr.bf16.mxu0 0
        %3383 = vmatpush1.bf16.msra.mxu0 0
        %3384 = vmatprep.subr.bf16.mxu0 0
        %3385 = vmatpush1.bf16.msra.mxu0 0
        %3386 = vmatprep.mubr.bf16.mxu0 0
        %3387 = vmatmul.mubr.bf16.gmra.mrb[0].mxu0 %v3281
        %v3388 = vpop.f32.mrb[0].mxu0
        %v3389 = vadd.f32 %v3304, %v3388
        %v3390 = vpop.f32.mrb[0].mxu0
        %v3391 = vpop.f32.mrb[0].mxu0
        %v3392 = vadd.f32 %v3304, %v3391
        %v3393 = vpop.f32.mrb[0].mxu0
        %3394 = vmatprep.mubr.bf16.mxu0 0
        %3395 = vmatmul.mubr.bf16.gmra.mrb[0].mxu0 %v3282
        %v3396 = vpop.f32.mrb[0].mxu0
        %v3397 = vadd.f32 %v3304, %v3396
        %v3398 = vpop.f32.mrb[0].mxu0
        %v3399 = vpop.f32.mrb[0].mxu0
        %v3400 = vpop.f32.mrb[0].mxu0
        %3401 = vdwg.mxu0
        %v3402 = vadd.f32 %v3071, %v3389
        %v3403 = vadd.f32 %v3072, %v3392
        %v3404 = vadd.f32 %v3073, %v3397
        %3405 = vst [vmem:[#allocation2] sm:$0xff] %v3402
        %3406 = vst [vmem:[#allocation2 + $0x8] sm:$0xff] %v3403
        %3407 = vst [vmem:[#allocation2 + $0x10] sm:$0xff] %v3404
        %p3408 = scmp.eq.s32.totalorder %s48, 1
        // Predicated region
        $region129: #{tpu_custom_call.1} parent=91 // pred_check
          %p3409 = pneg %p3408
        $region130: #{tpu_custom_call.1} parent=91 // pred_check_branch
          %3411 = sbr.rel (%p3409) target = $region132
        $region131: #{tpu_custom_call.1} parent=91 // pred_region
          %v3412 = vld [vmem:[%s14] sm:$0x1]
          %v3413 = vld [vmem:[%s15] sm:$0x1]
          %vm3414 = vcmask 1040384
          %v3415 = vsel %vm3414, %v3402, 0.0
          %3416 = vadd.xlane.f32.xlu0 %v3415
          %v3417 = vpop.xlane.xlu0 %3416
          %v3418 = vmul.f32 %v3417, 0.03125
          %v3419 = vmul.f32 %v3402, %v3402
          %v3420 = vsel %vm3414, %v3419, 0.0
          %3421 = vadd.xlane.f32.xlu0 %v3420
          %v3422 = vpop.xlane.xlu0 %3421
          %v3423 = vmul.f32 %v3422, 0.03125
          %v3424 = vmul.f32 %v3418, %v3418
          %v3425 = vsub.f32 %v3423, %v3424
          %v3426 = vadd.f32 %v3425, 1e-05
          %v3427 = vrsqrt.pop %v3426
          %v3428 = vsub.f32 %v3402, %v3418
          %v3429 = vmul.f32 %v3428, %v3427
          %v3430 = vmul.f32 %v3429, %v3412
          %v3431 = vadd.f32 %v3430, %v3413
          %v3432 = vpack.c.bf16 %v3431, %v3431
          %v3433 = vld [vmem:[#allocation15] sm:$0xf]
          %v3434 = vld [vmem:[#allocation15 + $0x4] sm:$0xf]
          %v3435 = vld [vmem:[#allocation15 + $0x8] sm:$0xf]
          %v3436 = vld [vmem:[#allocation15 + $0xc] sm:$0xf]
          %v3437 = vld [vmem:[#allocation15 + $0x10] sm:$0xf]
          %v3438 = vld [vmem:[#allocation15 + $0x14] sm:$0xf]
          %v3439 = vld [vmem:[#allocation15 + $0x18] sm:$0xf]
          %v3440 = vld [vmem:[#allocation15 + $0x1c] sm:$0xf]
          %v3441 = vld [vmem:[#allocation15 + $0x20] sm:$0xf]
          %v3442 = vld [vmem:[#allocation15 + $0x24] sm:$0xf]
          %v3443 = vld [vmem:[#allocation15 + $0x28] sm:$0xf]
          %v3444 = vld [vmem:[#allocation15 + $0x2c] sm:$0xf]
          %v3445 = vld [vmem:[#allocation15 + $0x30] sm:$0xf]
          %v3446 = vld [vmem:[#allocation15 + $0x34] sm:$0xf]
          %v3447 = vld [vmem:[#allocation15 + $0x38] sm:$0xf]
          %v3448 = vld [vmem:[#allocation15 + $0x3c] sm:$0xf]
          %v3449 = vld [vmem:[%s17] sm:$0x1]
          %v3466 = vunpack.c.l.b16 %v3433
          %v3467 = vunpack.c.l.b16 %v3434
          %v3468 = vunpack.c.l.b16 %v3435
          %v3469 = vunpack.c.l.b16 %v3436
          %v3470 = vunpack.c.l.b16 %v3437
          %v3471 = vunpack.c.l.b16 %v3438
          %v3472 = vunpack.c.l.b16 %v3439
          %v3473 = vunpack.c.l.b16 %v3440
          %v3474 = vunpack.c.l.b16 %v3441
          %v3475 = vunpack.c.l.b16 %v3442
          %v3476 = vunpack.c.l.b16 %v3443
          %v3477 = vunpack.c.l.b16 %v3444
          %v3478 = vunpack.c.l.b16 %v3445
          %v3479 = vunpack.c.l.b16 %v3446
          %v3480 = vunpack.c.l.b16 %v3447
          %v3481 = vunpack.c.l.b16 %v3448
          %v3482 = vpack.c.b16 %v3467, %v3466
          %v3483 = vpack.c.b16 %v3469, %v3468
          %v3484 = vpack.c.b16 %v3471, %v3470
          %v3485 = vpack.c.b16 %v3473, %v3472
          %v3486 = vpack.c.b16 %v3475, %v3474
          %v3487 = vpack.c.b16 %v3477, %v3476
          %v3488 = vpack.c.b16 %v3479, %v3478
          %v3489 = vpack.c.b16 %v3481, %v3480
          %3498 = vmatprep.subr.bf16.mxu0 0
          %3499 = vmatpush1.bf16.msra.mxu0 %v3482
          %3500 = vmatprep.subr.bf16.mxu0 0
          %3501 = vmatpush1.bf16.msra.mxu0 %v3483
          %3502 = vmatprep.subr.bf16.mxu0 0
          %3503 = vmatpush1.bf16.msra.mxu0 %v3484
          %3504 = vmatprep.subr.bf16.mxu0 0
          %3505 = vmatpush1.bf16.msra.mxu0 %v3485
          %3506 = vmatprep.subr.bf16.mxu0 0
          %3507 = vmatpush1.bf16.msra.mxu0 %v3486
          %3508 = vmatprep.subr.bf16.mxu0 0
          %3509 = vmatpush1.bf16.msra.mxu0 %v3487
          %3510 = vmatprep.subr.bf16.mxu0 0
          %3511 = vmatpush1.bf16.msra.mxu0 %v3488
          %3512 = vmatprep.subr.bf16.mxu0 0
          %3513 = vmatpush1.bf16.msra.mxu0 %v3489
          %3514 = vmatprep.subr.bf16.mxu0 0
          %3515 = vmatpush1.bf16.msra.mxu0 0
          %3516 = vmatprep.subr.bf16.mxu0 0
          %3517 = vmatpush1.bf16.msra.mxu0 0
          %3518 = vmatprep.subr.bf16.mxu0 0
          %3519 = vmatpush1.bf16.msra.mxu0 0
          %3520 = vmatprep.subr.bf16.mxu0 0
          %3521 = vmatpush1.bf16.msra.mxu0 0
          %3522 = vmatprep.subr.bf16.mxu0 0
          %3523 = vmatpush1.bf16.msra.mxu0 0
          %3524 = vmatprep.subr.bf16.mxu0 0
          %3525 = vmatpush1.bf16.msra.mxu0 0
          %3526 = vmatprep.subr.bf16.mxu0 0
          %3527 = vmatpush1.bf16.msra.mxu0 0
          %3528 = vmatprep.subr.bf16.mxu0 0
          %3529 = vmatpush1.bf16.msra.mxu0 0
          %3530 = vmatprep.mubr.bf16.mxu0 0
          %3531 = vmatmul.mubr.bf16.gmra.mrb[0].mxu0 %v3432
          %v3532 = vpop.f32.mrb[0].mxu0
          %v3533 = vadd.f32 %v3449, %v3532
          %v3534 = vpop.f32.mrb[0].mxu0
          %v3535 = vpop.f32.mrb[0].mxu0
          %v3536 = vpop.f32.mrb[0].mxu0
          %3537 = vdwg.mxu0
          %3538 = vst [vmem:[%s879] sm:$0x1] %v3533
        $region132: #{tpu_custom_call.1} parent=91 // pred_fallthru
          _
        %s3539 = sand.u32 %s501, 1
        %s3540 = scalar_lea.sflag [#allocation5], %s3539
        %s3541 = sand.u32 %s501, 1
        %s3542 = scalar_lea.vmem [#allocation17], %s3541
        // Predicated region
        $region133: #{tpu_custom_call.1} parent=91 // pred_check
          %p3543 = pneg %p511
        $region134: #{tpu_custom_call.1} parent=91 // pred_check_branch
          %3545 = sbr.rel (%p3543) target = $region136
        $region135: #{tpu_custom_call.1} parent=91 // pred_region
          %s3547 = ssub.s32 16, 16
          %3548 = vsyncadd %s3540, %s3547
          %s3549 = smul.addr %s47, 16
          %s3550 = scalar_lea.hbm %s18, %s3549
          %s3552 = sshll.u32 %s3542, 4
          %s3553 = int_to_ptr.vmem [resolvable:$true] %s3552
          %3555 = dma.vmem_to_hbm [thread:$0]  %s3553, 16, %s3550, %s3540
        $region136: #{tpu_custom_call.1} parent=91 // pred_fallthru
          _
      $region92: #{tpu_custom_call.1} parent=5 // pred_fallthru
        _
      %p3556 = scmp.le.s32.totalorder 2, %s38
      // Predicated region
      $region137: #{tpu_custom_call.1} parent=5 // pred_check
        %p3557 = pneg %p3556
      $region138: #{tpu_custom_call.1} parent=5 // pred_check_branch
        %3559 = sbr.rel (%p3557) target = $region140
      $region139: #{tpu_custom_call.1} parent=5 // pred_region
        %s3560 = ssub.s32 %s38, 2
        // Predicated region
        $region141: #{tpu_custom_call.1} parent=139 // pred_check
          %p3561 = pneg %p517
        $region142: #{tpu_custom_call.1} parent=139 // pred_check_branch
          %3563 = sbr.rel (%p3561) target = $region144
        $region143: #{tpu_custom_call.1} parent=139 // pred_region
          %s3564 = sand.u32 %s502, 1
          %s3565 = scalar_lea.sflag [#allocation5], %s3564
          %s3566 = sand.u32 %s502, 1
          %s3567 = scalar_lea.vmem [#allocation17], %s3566
          %3568 = dma.done %s3565, 16
        $region144: #{tpu_custom_call.1} parent=139 // pred_fallthru
          _
      $region140: #{tpu_custom_call.1} parent=5 // pred_fallthru
        _
    $region6: #{tpu_custom_call.1} parent=1 // loop_footer
      %s42 = sadd.s32 1, %s38
    $region7: #{tpu_custom_call.1} parent=1 // loop_footer_branch
      %37 = sbr.rel target = $region3
    $region8: #{tpu_custom_call.1} parent=1 // loop_exit
      _
    %3569 = vsyncpa [#allocation4], 1
    %s3570 = scalar_lea.sflag [#allocation4], 1
    %3571 = vsyncpa %s3570, 1
    %3572 = vsyncpa [#allocation7], 1
    %3573 = vsyncpa [#allocation10], 1
    %s3574 = scalar_lea.sflag [#allocation10], 1
    %3575 = vsyncpa %s3574, 1
    %3576 = vsyncpa [#allocation13], 1
    %s3577 = scalar_lea.sflag [#allocation13], 1
    %3578 = vsyncpa %s3577, 1
    %3579 = vsyncpa [#allocation16], 1
    %3580 = vsyncpa [#allocation5], 1
    %s3581 = scalar_lea.sflag [#allocation5], 1
    %3582 = vsyncpa %s3581, 1

</llo_original>
